<compile_context>
chip_gen: v7x
topology: tpu7x:2x2x1
jax: 0.10.0
libtpu: 0.0.40
codegen_flags: <defaults>
</compile_context>

<pallas_src>
import functools

import jax
import jax.numpy as jnp
from jax import lax
from jax.experimental import pallas as pl
from jax.experimental.pallas import tpu as pltpu


def _round_up(n, m):
    return ((n + m - 1) // m) * m


def _vmem_tile_bytes(shape, dtype):
    """Crude (8,128)-padded VMEM footprint of one buffer (used only for budgeting)."""
    s = list(shape)
    s[-1] = _round_up(s[-1], 128)
    if len(s) >= 2:
        s[-2] = _round_up(s[-2], 8)
    n = 1
    for d in s:
        n *= int(d)
    return n * jnp.dtype(dtype).itemsize


# --------------------------------------------------------------------------- #
# Fused kernel: one grid step == one chunk of t_chunk timesteps.
#   1) pre  = x_chunk @ W_ih^T + (b_ih + b_hh)     -- one MXU matmul per chunk
#   2) h_t  = tanh(pre_t + h_{t-1} @ W_hh^T)        -- one MXU matmul per step, f32 carry in VMEM
#   3) out  = h_chunk @ W_fc^T + b_fc               -- one MXU matmul per chunk
# hn (f32) is written from the carry exactly at global step S-1.
# --------------------------------------------------------------------------- #
def _fused_rnn_kernel(x_ref, wih_ref, whh_ref, wfc_ref, brnn_ref, bfc_ref,
                      out_ref, hn_ref,
                      h_carry, pre_scratch, hs_scratch,
                      *, t_chunk, seq_len, compute_dtype, unroll):
    f32 = jnp.float32
    c = pl.program_id(0)

    @pl.when(c == 0)
    def _init():
        h_carry[...] = jnp.zeros(h_carry.shape, h_carry.dtype)   # h0 = zeros (init_hidden)
        hn_ref[...] = jnp.zeros(hn_ref.shape, hn_ref.dtype)

    t, bp, i_dim = x_ref.shape
    hp = pre_scratch.shape[-1]

    # ---- 1) input projection for the whole chunk (lane-dense, one matmul) ---- #
    x2d = x_ref[...].reshape(t * bp, i_dim)
    pre = jnp.dot(x2d, wih_ref[...], preferred_element_type=f32) + brnn_ref[...]
    pre_scratch[...] = pre.reshape(pre_scratch.shape)

    # ---- 2) serial recurrence: only W_hh^T feeds the MXU per step ------------ #
    # TODO(synk): for Hp that fits one MXU tile, pltpu.matmul_push_rhs could hold W_hh^T in the
    # MXU staging registers across the chunk instead of re-feeding it through jnp.dot each step.
    def step(i, h):
        z = pre_scratch[i] + jnp.dot(h.astype(compute_dtype), whh_ref[...],
                                     preferred_element_type=f32)
        h_new = jnp.tanh(z)                           # f32 tanh (EUP), f32 carry (v5e-safe)
        hs_scratch[i] = h_new.astype(hs_scratch.dtype)

        @pl.when(c * t_chunk + i == seq_len - 1)      # exact f32 final hidden state
        def _():
            hn_ref[...] = h_new

        return h_new

    h_carry[...] = lax.fori_loop(0, t_chunk, step, h_carry[...], unroll=unroll)

    # ---- 3) FC head over the whole chunk (one matmul) ------------------------ #
    hs2d = hs_scratch[...].reshape(t * bp, hp)
    out = jnp.dot(hs2d, wfc_ref[...], preferred_element_type=f32) + bfc_ref[...]
    out_ref[...] = out.reshape(out_ref.shape).astype(out_ref.dtype)


def chimera_rnn_forward(x, w_ih, w_hh, b_ih, b_hh, w_fc, b_fc, *,
                        compute_dtype=jnp.float32, t_chunk=32, unroll=8,
                        vmem_budget_bytes=40 * 2**20):
    """Forward pass of chimeraRNN (num_layers=1, nonlinearity='tanh', batch_first=False).

    x: (S, B, I).  PyTorch parameter conventions:
      w_ih (H, I), w_hh (H, H), b_ih (H,), b_hh (H,), w_fc (O, H), b_fc (O,).
    Returns (out (S, B, O) float32, hn (1, B, H) float32).

    compute_dtype=jnp.bfloat16 halves weight DMA/VMEM and uses the fast MXU path (v6e/v7x)
    while keeping f32 accumulation, f32 tanh and an f32 hidden-state carry.
    """
    f32 = jnp.float32
    x = jnp.asarray(x, f32)
    S, B, I = x.shape
    H = w_hh.shape[0]
    O = w_fc.shape[0]

    cbytes = jnp.dtype(compute_dtype).itemsize
    sublane = 8 * (4 // cbytes)                 # 8 for f32, 16 for bf16
    Bp = _round_up(B, sublane)
    Hp = _round_up(H, 128)
    Op = _round_up(O, 128)

    # ---- choose the time chunk: large (amortizes ~0.35us/grid-step) but VMEM-bounded ---- #
    t_chunk = max(1, min(t_chunk, S))

    def vmem_estimate(tc):
        est = 0
        est += 2 * _vmem_tile_bytes((tc, Bp, I), compute_dtype)       # x chunk (double-buffered)
        est += _vmem_tile_bytes((I, Hp), compute_dtype)               # W_ih^T  (Buffered(1))
        est += _vmem_tile_bytes((Hp, Hp), compute_dtype)              # W_hh^T  (Buffered(1))
        est += _vmem_tile_bytes((Hp, Op), compute_dtype)              # W_fc^T  (Buffered(1))
        est += _vmem_tile_bytes((1, Hp), f32) + _vmem_tile_bytes((1, Op), f32)
        est += 2 * _vmem_tile_bytes((tc, Bp, Op), f32)                # out chunk (double-buffered)
        est += 2 * _vmem_tile_bytes((Bp, Hp), f32)                    # hn (resident output)
        est += _vmem_tile_bytes((Bp, Hp), f32)                        # hidden-state carry
        est += _vmem_tile_bytes((tc, Bp, Hp), f32)                    # pre scratch
        est += _vmem_tile_bytes((tc, Bp, Hp), compute_dtype)          # hs scratch (FC input)
        return est

    while t_chunk > 1 and vmem_estimate(t_chunk) > vmem_budget_bytes:
        t_chunk //= 2
    # TODO(synk): hidden sizes whose resident W_hh^T alone exceeds the budget would need
    # K-tiling of the recurrent weight; not implemented here.

    unroll = max(1, min(unroll, t_chunk))
    Sp = _round_up(S, t_chunk)
    est = vmem_estimate(t_chunk)
    vmem_limit = int(min(max(int(est * 1.5) + (2 << 20), 32 << 20), 60 << 20))

    # ---- one-time weight prep (plain JAX glue) ------------------------------------------ #
    def pad2(a, r, c):
        return jnp.pad(a, ((0, r - a.shape[0]), (0, c - a.shape[1])))

    wih_t = pad2(jnp.asarray(w_ih, f32).T, I, Hp).astype(compute_dtype)      # (I,  Hp)
    whh_t = pad2(jnp.asarray(w_hh, f32).T, Hp, Hp).astype(compute_dtype)     # (Hp, Hp)
    wfc_t = pad2(jnp.asarray(w_fc, f32).T, Hp, Op).astype(compute_dtype)     # (Hp, Op)
    b_rnn = pad2((jnp.asarray(b_ih, f32) + jnp.asarray(b_hh, f32))[None], 1, Hp)   # fused bias
    b_out = pad2(jnp.asarray(b_fc, f32)[None], 1, Op)

    x_pad = jnp.pad(x, ((0, Sp - S), (0, Bp - B), (0, 0))).astype(compute_dtype)   # (Sp, Bp, I)

    kernel = functools.partial(_fused_rnn_kernel, t_chunk=t_chunk, seq_len=S,
                               compute_dtype=compute_dtype, unroll=unroll)

    def build(single_buffer_resident):
        # Grid-invariant operands: single-buffer them when supported (halves weight VMEM).
        mode = dict(pipeline_mode=pl.Buffered(1)) if single_buffer_resident else {}

        def resident(shape, index_map):
            return pl.BlockSpec(shape, index_map, **mode)

        return pl.pallas_call(
            kernel,
            out_shape=(jax.ShapeDtypeStruct((Sp, Bp, Op), f32),
                       jax.ShapeDtypeStruct((Bp, Hp), f32)),
            grid_spec=pltpu.PrefetchScalarGridSpec(
                num_scalar_prefetch=0,
                grid=(Sp // t_chunk,),
                in_specs=[
                    pl.BlockSpec((t_chunk, Bp, I), lambda c: (c, 0, 0)),   # x chunk
                    resident((I, Hp), lambda c: (0, 0)),                   # W_ih^T
                    resident((Hp, Hp), lambda c: (0, 0)),                  # W_hh^T
                    resident((Hp, Op), lambda c: (0, 0)),                  # W_fc^T
                    resident((1, Hp), lambda c: (0, 0)),                   # b_ih + b_hh
                    resident((1, Op), lambda c: (0, 0)),                   # b_fc
                ],
                out_specs=[
                    pl.BlockSpec((t_chunk, Bp, Op), lambda c: (c, 0, 0)),  # out chunk
                    pl.BlockSpec((Bp, Hp), lambda c: (0, 0)),              # hn (resident)
                ],
                scratch_shapes=[
                    pltpu.VMEM((Bp, Hp), f32),                       # hidden-state carry
                    pltpu.VMEM((t_chunk, Bp, Hp), f32),              # chunk input projection
                    pltpu.VMEM((t_chunk, Bp, Hp), compute_dtype),    # chunk hidden states
                ],
            ),
            compiler_params=pltpu.CompilerParams(
                dimension_semantics=("arbitrary",),      # time is a true serial dependency
                vmem_limit_bytes=vmem_limit,
            ),
        )

    args = (x_pad, wih_t, whh_t, wfc_t, b_rnn, b_out)
    try:
        out_pad, hn_pad = build(True)(*args)
    except Exception:
        # Fallback for jax versions that reject single-buffered (Buffered(1)) BlockSpecs.
        out_pad, hn_pad = build(False)(*args)

    out = out_pad[:S, :B, :O]
    hn = hn_pad[:B, :H][None]            # (1, B, H), exact f32 carry at step S-1
    return out, hn


def _reference_forward(x, w_ih, w_hh, b_ih, b_hh, w_fc, b_fc):
    """Pure-JAX reference replicating nn.RNN(tanh, 1 layer) + nn.Linear."""
    S, B, I = x.shape
    H = w_hh.shape[0]
    h = jnp.zeros((B, H), jnp.float32)

    def step(h, x_t):
        h_new = jnp.tanh(x_t @ w_ih.T + b_ih + h @ w_hh.T + b_hh)
        return h_new, h_new

    hn, hs = jax.lax.scan(step, h, x)
    out = hs @ w_fc.T + b_fc
    return out, hn[None]


if __name__ == "__main__":
    # Small shapes consistent with the module's forward (seq, batch, input_size)
    S, B, I, H, O = 8, 2, 4, 32, 4   # output_size defaults to input_size

    key = jax.random.PRNGKey(0)
    ks = jax.random.split(key, 7)
    scale = 1.0 / jnp.sqrt(H)
    x    = jax.random.normal(ks[0], (S, B, I), jnp.float32)
    w_ih = jax.random.uniform(ks[1], (H, I), jnp.float32, -scale, scale)
    w_hh = jax.random.uniform(ks[2], (H, H), jnp.float32, -scale, scale)
    b_ih = jax.random.uniform(ks[3], (H,),   jnp.float32, -scale, scale)
    b_hh = jax.random.uniform(ks[4], (H,),   jnp.float32, -scale, scale)
    w_fc = jax.random.uniform(ks[5], (O, H), jnp.float32, -scale, scale)
    b_fc = jax.random.uniform(ks[6], (O,),   jnp.float32, -scale, scale)

    args = (x, w_ih, w_hh, b_ih, b_hh, w_fc, b_fc)
    out_ref, hn_ref = _reference_forward(*args)

    # f32 path, default chunking (t_chunk clamps to S -> single chunk)
    out, hn = chimera_rnn_forward(*args, compute_dtype=jnp.float32)
    jax.block_until_ready((out, hn))
    assert out.shape == (S, B, O) and hn.shape == (1, B, H)
    assert jnp.allclose(out, out_ref, atol=1e-5, rtol=1e-5)
    assert jnp.allclose(hn, hn_ref, atol=1e-5, rtol=1e-5)

    # f32 path where t_chunk does not divide S (exercises padded time + in-kernel hn capture)
    out2, hn2 = chimera_rnn_forward(*args, compute_dtype=jnp.float32, t_chunk=3)
    jax.block_until_ready((out2, hn2))
    assert jnp.allclose(out2, out_ref, atol=1e-5, rtol=1e-5)
    assert jnp.allclose(hn2, hn_ref, atol=1e-5, rtol=1e-5)

    # bf16 MXU path (v6e/v7x fast path); f32 accumulation/tanh/carry, loose tolerance
    out3, hn3 = chimera_rnn_forward(*args, compute_dtype=jnp.bfloat16, t_chunk=4)
    jax.block_until_ready((out3, hn3))
    assert jnp.allclose(out3, out_ref, atol=1e-1, rtol=1e-1)
    assert jnp.allclose(hn3, hn_ref, atol=1e-1, rtol=1e-1)

    print("KERNEL_OK")
</pallas_src>

<mosaic_0001>
module attributes {stable_mosaic.version = 11 : i64} {
  func.func @_fused_rnn_kernel(%arg0: i32, %arg1: memref<8x8x4xf32, #tpu.memory_space<vmem>>, %arg2: memref<4x128xf32, #tpu.memory_space<vmem>>, %arg3: memref<128x128xf32, #tpu.memory_space<vmem>>, %arg4: memref<128x128xf32, #tpu.memory_space<vmem>>, %arg5: memref<1x128xf32, #tpu.memory_space<vmem>>, %arg6: memref<1x128xf32, #tpu.memory_space<vmem>>, %arg7: memref<8x8x128xf32, #tpu.memory_space<vmem>>, %arg8: memref<8x128xf32, #tpu.memory_space<vmem>>, %arg9: memref<8x128xf32, #tpu.memory_space<vmem>>, %arg10: memref<8x8x128xf32, #tpu.memory_space<vmem>>, %arg11: memref<8x8x128xf32, #tpu.memory_space<vmem>>) attributes {dimension_semantics = [#tpu.dimension_semantics<arbitrary>], iteration_bounds = array<i64: 1>, scalar_prefetch = 0 : i64, scratch_operands = 3 : i64, tpu.core_type = #tpu.core_type<tc>, window_params = [{transform_indices = @transform_0, window_bounds = array<i64: 8, 8, 4>}, {pipeline_mode = #tpu.pipeline_mode<synchronous>, transform_indices = @transform_1, window_bounds = array<i64: 4, 128>}, {pipeline_mode = #tpu.pipeline_mode<synchronous>, transform_indices = @transform_2, window_bounds = array<i64: 128, 128>}, {pipeline_mode = #tpu.pipeline_mode<synchronous>, transform_indices = @transform_3, window_bounds = array<i64: 128, 128>}, {pipeline_mode = #tpu.pipeline_mode<synchronous>, transform_indices = @transform_4, window_bounds = array<i64: 1, 128>}, {pipeline_mode = #tpu.pipeline_mode<synchronous>, transform_indices = @transform_5, window_bounds = array<i64: 1, 128>}, {transform_indices = @transform_6, window_bounds = array<i64: 8, 8, 128>}, {pipeline_mode = #tpu.pipeline_mode<synchronous>, transform_indices = @transform_7, window_bounds = array<i64: 8, 128>}]} {
    %c0_i32 = arith.constant 0 : i32
    %0 = arith.cmpi eq, %arg0, %c0_i32 : i32
    %1 = arith.extui %0 : i1 to i32
    %c0_i32_0 = arith.constant 0 : i32
    %2 = arith.cmpi ne, %1, %c0_i32_0 : i32
    scf.if %2 {
      %cst_106 = arith.constant 0.000000e+00 : f32
      %151 = vector.broadcast %cst_106 : f32 to vector<8x128xf32>
      %c0_107 = arith.constant 0 : index
      %c0_108 = arith.constant 0 : index
      %152 = vector.load %arg9[%c0_107, %c0_108] : memref<8x128xf32, #tpu.memory_space<vmem>>, vector<8x128xf32>
      tpu.vector_store %arg9[%c0_107, %c0_108], %151 {strides = array<i32>} : memref<8x128xf32, #tpu.memory_space<vmem>>, vector<8x128xf32>,
      %cst_109 = arith.constant 0.000000e+00 : f32
      %153 = vector.broadcast %cst_109 : f32 to vector<8x128xf32>
      %c0_110 = arith.constant 0 : index
      %c0_111 = arith.constant 0 : index
      %154 = vector.load %arg8[%c0_110, %c0_111] : memref<8x128xf32, #tpu.memory_space<vmem>>, vector<8x128xf32>
      tpu.vector_store %arg8[%c0_110, %c0_111], %153 {strides = array<i32>} : memref<8x128xf32, #tpu.memory_space<vmem>>, vector<8x128xf32>,
    } else {
    }
    %c0 = arith.constant 0 : index
    %c0_1 = arith.constant 0 : index
    %c0_2 = arith.constant 0 : index
    %3 = vector.load %arg1[%c0, %c0_1, %c0_2] : memref<8x8x4xf32, #tpu.memory_space<vmem>>, vector<8x8x4xf32>
    %4 = vector.shape_cast %3 : vector<8x8x4xf32> to vector<64x4xf32>
    %c0_3 = arith.constant 0 : index
    %c0_4 = arith.constant 0 : index
    %5 = vector.load %arg2[%c0_3, %c0_4] : memref<4x128xf32, #tpu.memory_space<vmem>>, vector<4x128xf32>
    %cst = arith.constant dense<0.000000e+00> : vector<64x128xf32>
    %6 = tpu.matmul %4, %5, %cst {dimension_numbers = #tpu.dot_dimension_numbers<[1], [0], [0], [1], [0, 0, 1, 1], [], []>} : vector<64x4xf32>, vector<4x128xf32>, vector<64x128xf32> -> vector<64x128xf32>
    %c0_5 = arith.constant 0 : index
    %c0_6 = arith.constant 0 : index
    %7 = vector.load %arg5[%c0_5, %c0_6] : memref<1x128xf32, #tpu.memory_space<vmem>>, vector<1x128xf32>
    %8 = vector.broadcast %7 : vector<1x128xf32> to vector<64x128xf32>
    %9 = arith.addf %6, %8 : vector<64x128xf32>
    %10 = vector.shape_cast %9 : vector<64x128xf32> to vector<8x8x128xf32>
    %c0_7 = arith.constant 0 : index
    %c0_8 = arith.constant 0 : index
    %c0_9 = arith.constant 0 : index
    %11 = vector.load %arg10[%c0_7, %c0_8, %c0_9] : memref<8x8x128xf32, #tpu.memory_space<vmem>>, vector<8x8x128xf32>
    tpu.vector_store %arg10[%c0_7, %c0_8, %c0_9], %10 {strides = array<i32>} : memref<8x8x128xf32, #tpu.memory_space<vmem>>, vector<8x8x128xf32>,
    %c0_10 = arith.constant 0 : index
    %c0_11 = arith.constant 0 : index
    %12 = vector.load %arg9[%c0_10, %c0_11] : memref<8x128xf32, #tpu.memory_space<vmem>>, vector<8x128xf32>
    %c0_i32_12 = arith.constant 0 : i32
    %13 = arith.index_cast %c0_i32_12 : i32 to index
    %c0_13 = arith.constant 0 : index
    %c0_14 = arith.constant 0 : index
    %14 = vector.load %arg10[%13, %c0_13, %c0_14] : memref<8x8x128xf32, #tpu.memory_space<vmem>>, vector<1x8x128xf32>
    %15 = vector.shape_cast %14 : vector<1x8x128xf32> to vector<8x128xf32>
    %c0_15 = arith.constant 0 : index
    %c0_16 = arith.constant 0 : index
    %16 = vector.load %arg3[%c0_15, %c0_16] : memref<128x128xf32, #tpu.memory_space<vmem>>, vector<128x128xf32>
    %cst_17 = arith.constant dense<0.000000e+00> : vector<8x128xf32>
    %17 = tpu.matmul %12, %16, %cst_17 {dimension_numbers = #tpu.dot_dimension_numbers<[1], [0], [0], [1], [0, 0, 1, 1], [], []>} : vector<8x128xf32>, vector<128x128xf32>, vector<8x128xf32> -> vector<8x128xf32>
    %18 = arith.addf %15, %17 : vector<8x128xf32>
    %19 = math.tanh %18 : vector<8x128xf32>
    %20 = arith.index_cast %c0_i32_12 : i32 to index
    %c0_18 = arith.constant 0 : index
    %c0_19 = arith.constant 0 : index
    %21 = vector.load %arg11[%20, %c0_18, %c0_19] : memref<8x8x128xf32, #tpu.memory_space<vmem>>, vector<1x8x128xf32>
    %22 = vector.shape_cast %21 : vector<1x8x128xf32> to vector<8x128xf32>
    %23 = vector.shape_cast %19 : vector<8x128xf32> to vector<1x8x128xf32>
    tpu.vector_store %arg11[%20, %c0_18, %c0_19], %23 {strides = array<i32>} : memref<8x8x128xf32, #tpu.memory_space<vmem>>, vector<1x8x128xf32>,
    %c8_i32 = arith.constant 8 : i32
    %24 = arith.muli %arg0, %c8_i32 : i32
    %25 = arith.addi %24, %c0_i32_12 : i32
    %c7_i32 = arith.constant 7 : i32
    %26 = arith.cmpi eq, %25, %c7_i32 : i32
    %27 = arith.extui %26 : i1 to i32
    %c0_i32_20 = arith.constant 0 : i32
    %28 = arith.cmpi ne, %27, %c0_i32_20 : i32
    scf.if %28 {
      %c0_106 = arith.constant 0 : index
      %c0_107 = arith.constant 0 : index
      %151 = vector.load %arg8[%c0_106, %c0_107] : memref<8x128xf32, #tpu.memory_space<vmem>>, vector<8x128xf32>
      tpu.vector_store %arg8[%c0_106, %c0_107], %19 {strides = array<i32>} : memref<8x128xf32, #tpu.memory_space<vmem>>, vector<8x128xf32>,
    } else {
    }
    %c1_i32 = arith.constant 1 : i32
    %29 = arith.index_cast %c1_i32 : i32 to index
    %c0_21 = arith.constant 0 : index
    %c0_22 = arith.constant 0 : index
    %30 = vector.load %arg10[%29, %c0_21, %c0_22] : memref<8x8x128xf32, #tpu.memory_space<vmem>>, vector<1x8x128xf32>
    %31 = vector.shape_cast %30 : vector<1x8x128xf32> to vector<8x128xf32>
    %c0_23 = arith.constant 0 : index
    %c0_24 = arith.constant 0 : index
    %32 = vector.load %arg3[%c0_23, %c0_24] : memref<128x128xf32, #tpu.memory_space<vmem>>, vector<128x128xf32>
    %cst_25 = arith.constant dense<0.000000e+00> : vector<8x128xf32>
    %33 = tpu.matmul %19, %32, %cst_25 {dimension_numbers = #tpu.dot_dimension_numbers<[1], [0], [0], [1], [0, 0, 1, 1], [], []>} : vector<8x128xf32>, vector<128x128xf32>, vector<8x128xf32> -> vector<8x128xf32>
    %34 = arith.addf %31, %33 : vector<8x128xf32>
    %35 = math.tanh %34 : vector<8x128xf32>
    %36 = arith.index_cast %c1_i32 : i32 to index
    %c0_26 = arith.constant 0 : index
    %c0_27 = arith.constant 0 : index
    %37 = vector.load %arg11[%36, %c0_26, %c0_27] : memref<8x8x128xf32, #tpu.memory_space<vmem>>, vector<1x8x128xf32>
    %38 = vector.shape_cast %37 : vector<1x8x128xf32> to vector<8x128xf32>
    %39 = vector.shape_cast %35 : vector<8x128xf32> to vector<1x8x128xf32>
    tpu.vector_store %arg11[%36, %c0_26, %c0_27], %39 {strides = array<i32>} : memref<8x8x128xf32, #tpu.memory_space<vmem>>, vector<1x8x128xf32>,
    %c8_i32_28 = arith.constant 8 : i32
    %40 = arith.muli %arg0, %c8_i32_28 : i32
    %41 = arith.addi %40, %c1_i32 : i32
    %c7_i32_29 = arith.constant 7 : i32
    %42 = arith.cmpi eq, %41, %c7_i32_29 : i32
    %43 = arith.extui %42 : i1 to i32
    %c0_i32_30 = arith.constant 0 : i32
    %44 = arith.cmpi ne, %43, %c0_i32_30 : i32
    scf.if %44 {
      %c0_106 = arith.constant 0 : index
      %c0_107 = arith.constant 0 : index
      %151 = vector.load %arg8[%c0_106, %c0_107] : memref<8x128xf32, #tpu.memory_space<vmem>>, vector<8x128xf32>
      tpu.vector_store %arg8[%c0_106, %c0_107], %35 {strides = array<i32>} : memref<8x128xf32, #tpu.memory_space<vmem>>, vector<8x128xf32>,
    } else {
    }
    %c2_i32 = arith.constant 2 : i32
    %45 = arith.index_cast %c2_i32 : i32 to index
    %c0_31 = arith.constant 0 : index
    %c0_32 = arith.constant 0 : index
    %46 = vector.load %arg10[%45, %c0_31, %c0_32] : memref<8x8x128xf32, #tpu.memory_space<vmem>>, vector<1x8x128xf32>
    %47 = vector.shape_cast %46 : vector<1x8x128xf32> to vector<8x128xf32>
    %c0_33 = arith.constant 0 : index
    %c0_34 = arith.constant 0 : index
    %48 = vector.load %arg3[%c0_33, %c0_34] : memref<128x128xf32, #tpu.memory_space<vmem>>, vector<128x128xf32>
    %cst_35 = arith.constant dense<0.000000e+00> : vector<8x128xf32>
    %49 = tpu.matmul %35, %48, %cst_35 {dimension_numbers = #tpu.dot_dimension_numbers<[1], [0], [0], [1], [0, 0, 1, 1], [], []>} : vector<8x128xf32>, vector<128x128xf32>, vector<8x128xf32> -> vector<8x128xf32>
    %50 = arith.addf %47, %49 : vector<8x128xf32>
    %51 = math.tanh %50 : vector<8x128xf32>
    %52 = arith.index_cast %c2_i32 : i32 to index
    %c0_36 = arith.constant 0 : index
    %c0_37 = arith.constant 0 : index
    %53 = vector.load %arg11[%52, %c0_36, %c0_37] : memref<8x8x128xf32, #tpu.memory_space<vmem>>, vector<1x8x128xf32>
    %54 = vector.shape_cast %53 : vector<1x8x128xf32> to vector<8x128xf32>
    %55 = vector.shape_cast %51 : vector<8x128xf32> to vector<1x8x128xf32>
    tpu.vector_store %arg11[%52, %c0_36, %c0_37], %55 {strides = array<i32>} : memref<8x8x128xf32, #tpu.memory_space<vmem>>, vector<1x8x128xf32>,
    %c8_i32_38 = arith.constant 8 : i32
    %56 = arith.muli %arg0, %c8_i32_38 : i32
    %57 = arith.addi %56, %c2_i32 : i32
    %c7_i32_39 = arith.constant 7 : i32
    %58 = arith.cmpi eq, %57, %c7_i32_39 : i32
    %59 = arith.extui %58 : i1 to i32
    %c0_i32_40 = arith.constant 0 : i32
    %60 = arith.cmpi ne, %59, %c0_i32_40 : i32
    scf.if %60 {
      %c0_106 = arith.constant 0 : index
      %c0_107 = arith.constant 0 : index
      %151 = vector.load %arg8[%c0_106, %c0_107] : memref<8x128xf32, #tpu.memory_space<vmem>>, vector<8x128xf32>
      tpu.vector_store %arg8[%c0_106, %c0_107], %51 {strides = array<i32>} : memref<8x128xf32, #tpu.memory_space<vmem>>, vector<8x128xf32>,
    } else {
    }
    %c3_i32 = arith.constant 3 : i32
    %61 = arith.index_cast %c3_i32 : i32 to index
    %c0_41 = arith.constant 0 : index
    %c0_42 = arith.constant 0 : index
    %62 = vector.load %arg10[%61, %c0_41, %c0_42] : memref<8x8x128xf32, #tpu.memory_space<vmem>>, vector<1x8x128xf32>
    %63 = vector.shape_cast %62 : vector<1x8x128xf32> to vector<8x128xf32>
    %c0_43 = arith.constant 0 : index
    %c0_44 = arith.constant 0 : index
    %64 = vector.load %arg3[%c0_43, %c0_44] : memref<128x128xf32, #tpu.memory_space<vmem>>, vector<128x128xf32>
    %cst_45 = arith.constant dense<0.000000e+00> : vector<8x128xf32>
    %65 = tpu.matmul %51, %64, %cst_45 {dimension_numbers = #tpu.dot_dimension_numbers<[1], [0], [0], [1], [0, 0, 1, 1], [], []>} : vector<8x128xf32>, vector<128x128xf32>, vector<8x128xf32> -> vector<8x128xf32>
    %66 = arith.addf %63, %65 : vector<8x128xf32>
    %67 = math.tanh %66 : vector<8x128xf32>
    %68 = arith.index_cast %c3_i32 : i32 to index
    %c0_46 = arith.constant 0 : index
    %c0_47 = arith.constant 0 : index
    %69 = vector.load %arg11[%68, %c0_46, %c0_47] : memref<8x8x128xf32, #tpu.memory_space<vmem>>, vector<1x8x128xf32>
    %70 = vector.shape_cast %69 : vector<1x8x128xf32> to vector<8x128xf32>
    %71 = vector.shape_cast %67 : vector<8x128xf32> to vector<1x8x128xf32>
    tpu.vector_store %arg11[%68, %c0_46, %c0_47], %71 {strides = array<i32>} : memref<8x8x128xf32, #tpu.memory_space<vmem>>, vector<1x8x128xf32>,
    %c8_i32_48 = arith.constant 8 : i32
    %72 = arith.muli %arg0, %c8_i32_48 : i32
    %73 = arith.addi %72, %c3_i32 : i32
    %c7_i32_49 = arith.constant 7 : i32
    %74 = arith.cmpi eq, %73, %c7_i32_49 : i32
    %75 = arith.extui %74 : i1 to i32
    %c0_i32_50 = arith.constant 0 : i32
    %76 = arith.cmpi ne, %75, %c0_i32_50 : i32
    scf.if %76 {
      %c0_106 = arith.constant 0 : index
      %c0_107 = arith.constant 0 : index
      %151 = vector.load %arg8[%c0_106, %c0_107] : memref<8x128xf32, #tpu.memory_space<vmem>>, vector<8x128xf32>
      tpu.vector_store %arg8[%c0_106, %c0_107], %67 {strides = array<i32>} : memref<8x128xf32, #tpu.memory_space<vmem>>, vector<8x128xf32>,
    } else {
    }
    %c4_i32 = arith.constant 4 : i32
    %77 = arith.index_cast %c4_i32 : i32 to index
    %c0_51 = arith.constant 0 : index
    %c0_52 = arith.constant 0 : index
    %78 = vector.load %arg10[%77, %c0_51, %c0_52] : memref<8x8x128xf32, #tpu.memory_space<vmem>>, vector<1x8x128xf32>
    %79 = vector.shape_cast %78 : vector<1x8x128xf32> to vector<8x128xf32>
    %c0_53 = arith.constant 0 : index
    %c0_54 = arith.constant 0 : index
    %80 = vector.load %arg3[%c0_53, %c0_54] : memref<128x128xf32, #tpu.memory_space<vmem>>, vector<128x128xf32>
    %cst_55 = arith.constant dense<0.000000e+00> : vector<8x128xf32>
    %81 = tpu.matmul %67, %80, %cst_55 {dimension_numbers = #tpu.dot_dimension_numbers<[1], [0], [0], [1], [0, 0, 1, 1], [], []>} : vector<8x128xf32>, vector<128x128xf32>, vector<8x128xf32> -> vector<8x128xf32>
    %82 = arith.addf %79, %81 : vector<8x128xf32>
    %83 = math.tanh %82 : vector<8x128xf32>
    %84 = arith.index_cast %c4_i32 : i32 to index
    %c0_56 = arith.constant 0 : index
    %c0_57 = arith.constant 0 : index
    %85 = vector.load %arg11[%84, %c0_56, %c0_57] : memref<8x8x128xf32, #tpu.memory_space<vmem>>, vector<1x8x128xf32>
    %86 = vector.shape_cast %85 : vector<1x8x128xf32> to vector<8x128xf32>
    %87 = vector.shape_cast %83 : vector<8x128xf32> to vector<1x8x128xf32>
    tpu.vector_store %arg11[%84, %c0_56, %c0_57], %87 {strides = array<i32>} : memref<8x8x128xf32, #tpu.memory_space<vmem>>, vector<1x8x128xf32>,
    %c8_i32_58 = arith.constant 8 : i32
    %88 = arith.muli %arg0, %c8_i32_58 : i32
    %89 = arith.addi %88, %c4_i32 : i32
    %c7_i32_59 = arith.constant 7 : i32
    %90 = arith.cmpi eq, %89, %c7_i32_59 : i32
    %91 = arith.extui %90 : i1 to i32
    %c0_i32_60 = arith.constant 0 : i32
    %92 = arith.cmpi ne, %91, %c0_i32_60 : i32
    scf.if %92 {
      %c0_106 = arith.constant 0 : index
      %c0_107 = arith.constant 0 : index
      %151 = vector.load %arg8[%c0_106, %c0_107] : memref<8x128xf32, #tpu.memory_space<vmem>>, vector<8x128xf32>
      tpu.vector_store %arg8[%c0_106, %c0_107], %83 {strides = array<i32>} : memref<8x128xf32, #tpu.memory_space<vmem>>, vector<8x128xf32>,
    } else {
    }
    %c5_i32 = arith.constant 5 : i32
    %93 = arith.index_cast %c5_i32 : i32 to index
    %c0_61 = arith.constant 0 : index
    %c0_62 = arith.constant 0 : index
    %94 = vector.load %arg10[%93, %c0_61, %c0_62] : memref<8x8x128xf32, #tpu.memory_space<vmem>>, vector<1x8x128xf32>
    %95 = vector.shape_cast %94 : vector<1x8x128xf32> to vector<8x128xf32>
    %c0_63 = arith.constant 0 : index
    %c0_64 = arith.constant 0 : index
    %96 = vector.load %arg3[%c0_63, %c0_64] : memref<128x128xf32, #tpu.memory_space<vmem>>, vector<128x128xf32>
    %cst_65 = arith.constant dense<0.000000e+00> : vector<8x128xf32>
    %97 = tpu.matmul %83, %96, %cst_65 {dimension_numbers = #tpu.dot_dimension_numbers<[1], [0], [0], [1], [0, 0, 1, 1], [], []>} : vector<8x128xf32>, vector<128x128xf32>, vector<8x128xf32> -> vector<8x128xf32>
    %98 = arith.addf %95, %97 : vector<8x128xf32>
    %99 = math.tanh %98 : vector<8x128xf32>
    %100 = arith.index_cast %c5_i32 : i32 to index
    %c0_66 = arith.constant 0 : index
    %c0_67 = arith.constant 0 : index
    %101 = vector.load %arg11[%100, %c0_66, %c0_67] : memref<8x8x128xf32, #tpu.memory_space<vmem>>, vector<1x8x128xf32>
    %102 = vector.shape_cast %101 : vector<1x8x128xf32> to vector<8x128xf32>
    %103 = vector.shape_cast %99 : vector<8x128xf32> to vector<1x8x128xf32>
    tpu.vector_store %arg11[%100, %c0_66, %c0_67], %103 {strides = array<i32>} : memref<8x8x128xf32, #tpu.memory_space<vmem>>, vector<1x8x128xf32>,
    %c8_i32_68 = arith.constant 8 : i32
    %104 = arith.muli %arg0, %c8_i32_68 : i32
    %105 = arith.addi %104, %c5_i32 : i32
    %c7_i32_69 = arith.constant 7 : i32
    %106 = arith.cmpi eq, %105, %c7_i32_69 : i32
    %107 = arith.extui %106 : i1 to i32
    %c0_i32_70 = arith.constant 0 : i32
    %108 = arith.cmpi ne, %107, %c0_i32_70 : i32
    scf.if %108 {
      %c0_106 = arith.constant 0 : index
      %c0_107 = arith.constant 0 : index
      %151 = vector.load %arg8[%c0_106, %c0_107] : memref<8x128xf32, #tpu.memory_space<vmem>>, vector<8x128xf32>
      tpu.vector_store %arg8[%c0_106, %c0_107], %99 {strides = array<i32>} : memref<8x128xf32, #tpu.memory_space<vmem>>, vector<8x128xf32>,
    } else {
    }
    %c6_i32 = arith.constant 6 : i32
    %109 = arith.index_cast %c6_i32 : i32 to index
    %c0_71 = arith.constant 0 : index
    %c0_72 = arith.constant 0 : index
    %110 = vector.load %arg10[%109, %c0_71, %c0_72] : memref<8x8x128xf32, #tpu.memory_space<vmem>>, vector<1x8x128xf32>
    %111 = vector.shape_cast %110 : vector<1x8x128xf32> to vector<8x128xf32>
    %c0_73 = arith.constant 0 : index
    %c0_74 = arith.constant 0 : index
    %112 = vector.load %arg3[%c0_73, %c0_74] : memref<128x128xf32, #tpu.memory_space<vmem>>, vector<128x128xf32>
    %cst_75 = arith.constant dense<0.000000e+00> : vector<8x128xf32>
    %113 = tpu.matmul %99, %112, %cst_75 {dimension_numbers = #tpu.dot_dimension_numbers<[1], [0], [0], [1], [0, 0, 1, 1], [], []>} : vector<8x128xf32>, vector<128x128xf32>, vector<8x128xf32> -> vector<8x128xf32>
    %114 = arith.addf %111, %113 : vector<8x128xf32>
    %115 = math.tanh %114 : vector<8x128xf32>
    %116 = arith.index_cast %c6_i32 : i32 to index
    %c0_76 = arith.constant 0 : index
    %c0_77 = arith.constant 0 : index
    %117 = vector.load %arg11[%116, %c0_76, %c0_77] : memref<8x8x128xf32, #tpu.memory_space<vmem>>, vector<1x8x128xf32>
    %118 = vector.shape_cast %117 : vector<1x8x128xf32> to vector<8x128xf32>
    %119 = vector.shape_cast %115 : vector<8x128xf32> to vector<1x8x128xf32>
    tpu.vector_store %arg11[%116, %c0_76, %c0_77], %119 {strides = array<i32>} : memref<8x8x128xf32, #tpu.memory_space<vmem>>, vector<1x8x128xf32>,
    %c8_i32_78 = arith.constant 8 : i32
    %120 = arith.muli %arg0, %c8_i32_78 : i32
    %121 = arith.addi %120, %c6_i32 : i32
    %c7_i32_79 = arith.constant 7 : i32
    %122 = arith.cmpi eq, %121, %c7_i32_79 : i32
    %123 = arith.extui %122 : i1 to i32
    %c0_i32_80 = arith.constant 0 : i32
    %124 = arith.cmpi ne, %123, %c0_i32_80 : i32
    scf.if %124 {
      %c0_106 = arith.constant 0 : index
      %c0_107 = arith.constant 0 : index
      %151 = vector.load %arg8[%c0_106, %c0_107] : memref<8x128xf32, #tpu.memory_space<vmem>>, vector<8x128xf32>
      tpu.vector_store %arg8[%c0_106, %c0_107], %115 {strides = array<i32>} : memref<8x128xf32, #tpu.memory_space<vmem>>, vector<8x128xf32>,
    } else {
    }
    %c7_i32_81 = arith.constant 7 : i32
    %125 = arith.index_cast %c7_i32_81 : i32 to index
    %c0_82 = arith.constant 0 : index
    %c0_83 = arith.constant 0 : index
    %126 = vector.load %arg10[%125, %c0_82, %c0_83] : memref<8x8x128xf32, #tpu.memory_space<vmem>>, vector<1x8x128xf32>
    %127 = vector.shape_cast %126 : vector<1x8x128xf32> to vector<8x128xf32>
    %c0_84 = arith.constant 0 : index
    %c0_85 = arith.constant 0 : index
    %128 = vector.load %arg3[%c0_84, %c0_85] : memref<128x128xf32, #tpu.memory_space<vmem>>, vector<128x128xf32>
    %cst_86 = arith.constant dense<0.000000e+00> : vector<8x128xf32>
    %129 = tpu.matmul %115, %128, %cst_86 {dimension_numbers = #tpu.dot_dimension_numbers<[1], [0], [0], [1], [0, 0, 1, 1], [], []>} : vector<8x128xf32>, vector<128x128xf32>, vector<8x128xf32> -> vector<8x128xf32>
    %130 = arith.addf %127, %129 : vector<8x128xf32>
    %131 = math.tanh %130 : vector<8x128xf32>
    %132 = arith.index_cast %c7_i32_81 : i32 to index
    %c0_87 = arith.constant 0 : index
    %c0_88 = arith.constant 0 : index
    %133 = vector.load %arg11[%132, %c0_87, %c0_88] : memref<8x8x128xf32, #tpu.memory_space<vmem>>, vector<1x8x128xf32>
    %134 = vector.shape_cast %133 : vector<1x8x128xf32> to vector<8x128xf32>
    %135 = vector.shape_cast %131 : vector<8x128xf32> to vector<1x8x128xf32>
    tpu.vector_store %arg11[%132, %c0_87, %c0_88], %135 {strides = array<i32>} : memref<8x8x128xf32, #tpu.memory_space<vmem>>, vector<1x8x128xf32>,
    %c8_i32_89 = arith.constant 8 : i32
    %136 = arith.muli %arg0, %c8_i32_89 : i32
    %137 = arith.addi %136, %c7_i32_81 : i32
    %c7_i32_90 = arith.constant 7 : i32
    %138 = arith.cmpi eq, %137, %c7_i32_90 : i32
    %139 = arith.extui %138 : i1 to i32
    %c0_i32_91 = arith.constant 0 : i32
    %140 = arith.cmpi ne, %139, %c0_i32_91 : i32
    scf.if %140 {
      %c0_106 = arith.constant 0 : index
      %c0_107 = arith.constant 0 : index
      %151 = vector.load %arg8[%c0_106, %c0_107] : memref<8x128xf32, #tpu.memory_space<vmem>>, vector<8x128xf32>
      tpu.vector_store %arg8[%c0_106, %c0_107], %131 {strides = array<i32>} : memref<8x128xf32, #tpu.memory_space<vmem>>, vector<8x128xf32>,
    } else {
    }
    %c8_i32_92 = arith.constant 8 : i32
    %c0_93 = arith.constant 0 : index
    %c0_94 = arith.constant 0 : index
    %141 = vector.load %arg9[%c0_93, %c0_94] : memref<8x128xf32, #tpu.memory_space<vmem>>, vector<8x128xf32>
    tpu.vector_store %arg9[%c0_93, %c0_94], %131 {strides = array<i32>} : memref<8x128xf32, #tpu.memory_space<vmem>>, vector<8x128xf32>,
    %c0_95 = arith.constant 0 : index
    %c0_96 = arith.constant 0 : index
    %c0_97 = arith.constant 0 : index
    %142 = vector.load %arg11[%c0_95, %c0_96, %c0_97] : memref<8x8x128xf32, #tpu.memory_space<vmem>>, vector<8x8x128xf32>
    %143 = vector.shape_cast %142 : vector<8x8x128xf32> to vector<64x128xf32>
    %c0_98 = arith.constant 0 : index
    %c0_99 = arith.constant 0 : index
    %144 = vector.load %arg4[%c0_98, %c0_99] : memref<128x128xf32, #tpu.memory_space<vmem>>, vector<128x128xf32>
    %cst_100 = arith.constant dense<0.000000e+00> : vector<64x128xf32>
    %145 = tpu.matmul %143, %144, %cst_100 {dimension_numbers = #tpu.dot_dimension_numbers<[1], [0], [0], [1], [0, 0, 1, 1], [], []>} : vector<64x128xf32>, vector<128x128xf32>, vector<64x128xf32> -> vector<64x128xf32>
    %c0_101 = arith.constant 0 : index
    %c0_102 = arith.constant 0 : index
    %146 = vector.load %arg6[%c0_101, %c0_102] : memref<1x128xf32, #tpu.memory_space<vmem>>, vector<1x128xf32>
    %147 = vector.broadcast %146 : vector<1x128xf32> to vector<64x128xf32>
    %148 = arith.addf %145, %147 : vector<64x128xf32>
    %149 = vector.shape_cast %148 : vector<64x128xf32> to vector<8x8x128xf32>
    %c0_103 = arith.constant 0 : index
    %c0_104 = arith.constant 0 : index
    %c0_105 = arith.constant 0 : index
    %150 = vector.load %arg7[%c0_103, %c0_104, %c0_105] : memref<8x8x128xf32, #tpu.memory_space<vmem>>, vector<8x8x128xf32>
    tpu.vector_store %arg7[%c0_103, %c0_104, %c0_105], %149 {strides = array<i32>} : memref<8x8x128xf32, #tpu.memory_space<vmem>>, vector<8x8x128xf32>,
    return
  }
  func.func @transform_0(%arg0: i32) -> (i32, i32, i32) {
    %c0_i32 = arith.constant 0 : i32
    %c0_i32_0 = arith.constant 0 : i32
    %c0_i32_1 = arith.constant 0 : i32
    return %arg0, %c0_i32, %c0_i32_0 : i32, i32, i32
  }
  func.func @transform_1(%arg0: i32) -> (i32, i32) {
    %c0_i32 = arith.constant 0 : i32
    %c0_i32_0 = arith.constant 0 : i32
    %c0_i32_1 = arith.constant 0 : i32
    return %c0_i32, %c0_i32_0 : i32, i32
  }
  func.func @transform_2(%arg0: i32) -> (i32, i32) {
    %c0_i32 = arith.constant 0 : i32
    %c0_i32_0 = arith.constant 0 : i32
    %c0_i32_1 = arith.constant 0 : i32
    return %c0_i32, %c0_i32_0 : i32, i32
  }
  func.func @transform_3(%arg0: i32) -> (i32, i32) {
    %c0_i32 = arith.constant 0 : i32
    %c0_i32_0 = arith.constant 0 : i32
    %c0_i32_1 = arith.constant 0 : i32
    return %c0_i32, %c0_i32_0 : i32, i32
  }
  func.func @transform_4(%arg0: i32) -> (i32, i32) {
    %c0_i32 = arith.constant 0 : i32
    %c0_i32_0 = arith.constant 0 : i32
    %c0_i32_1 = arith.constant 0 : i32
    return %c0_i32, %c0_i32_0 : i32, i32
  }
  func.func @transform_5(%arg0: i32) -> (i32, i32) {
    %c0_i32 = arith.constant 0 : i32
    %c0_i32_0 = arith.constant 0 : i32
    %c0_i32_1 = arith.constant 0 : i32
    return %c0_i32, %c0_i32_0 : i32, i32
  }
  func.func @transform_6(%arg0: i32) -> (i32, i32, i32) {
    %c0_i32 = arith.constant 0 : i32
    %c0_i32_0 = arith.constant 0 : i32
    %c0_i32_1 = arith.constant 0 : i32
    return %arg0, %c0_i32, %c0_i32_0 : i32, i32, i32
  }
  func.func @transform_7(%arg0: i32) -> (i32, i32) {
    %c0_i32 = arith.constant 0 : i32
    %c0_i32_0 = arith.constant 0 : i32
    %c0_i32_1 = arith.constant 0 : i32
    return %c0_i32, %c0_i32_0 : i32, i32
  }
}

module attributes {stable_mosaic.version = 11 : i64} {
  func.func @_fused_rnn_kernel(%arg0: i32, %arg1: memref<8x8x4xf32, #tpu.memory_space<vmem>>, %arg2: memref<4x128xf32, #tpu.memory_space<vmem>>, %arg3: memref<128x128xf32, #tpu.memory_space<vmem>>, %arg4: memref<128x128xf32, #tpu.memory_space<vmem>>, %arg5: memref<1x128xf32, #tpu.memory_space<vmem>>, %arg6: memref<1x128xf32, #tpu.memory_space<vmem>>, %arg7: memref<8x8x128xf32, #tpu.memory_space<vmem>>, %arg8: memref<8x128xf32, #tpu.memory_space<vmem>>, %arg9: memref<8x128xf32, #tpu.memory_space<vmem>>, %arg10: memref<8x8x128xf32, #tpu.memory_space<vmem>>, %arg11: memref<8x8x128xf32, #tpu.memory_space<vmem>>) attributes {dimension_semantics = [#tpu.dimension_semantics<arbitrary>], iteration_bounds = array<i64: 1>, scalar_prefetch = 0 : i64, scratch_operands = 3 : i64, tpu.core_type = #tpu.core_type<tc>, window_params = [{transform_indices = @transform_0, window_bounds = array<i64: 8, 8, 4>}, {pipeline_mode = #tpu.pipeline_mode<synchronous>, transform_indices = @transform_1, window_bounds = array<i64: 4, 128>}, {pipeline_mode = #tpu.pipeline_mode<synchronous>, transform_indices = @transform_2, window_bounds = array<i64: 128, 128>}, {pipeline_mode = #tpu.pipeline_mode<synchronous>, transform_indices = @transform_3, window_bounds = array<i64: 128, 128>}, {pipeline_mode = #tpu.pipeline_mode<synchronous>, transform_indices = @transform_4, window_bounds = array<i64: 1, 128>}, {pipeline_mode = #tpu.pipeline_mode<synchronous>, transform_indices = @transform_5, window_bounds = array<i64: 1, 128>}, {transform_indices = @transform_6, window_bounds = array<i64: 8, 8, 128>}, {pipeline_mode = #tpu.pipeline_mode<synchronous>, transform_indices = @transform_7, window_bounds = array<i64: 8, 128>}]} {
    %c0_i32 = arith.constant 0 : i32
    %0 = arith.cmpi eq, %arg0, %c0_i32 : i32
    %1 = arith.extui %0 : i1 to i32
    %c0_i32_0 = arith.constant 0 : i32
    %2 = arith.cmpi ne, %1, %c0_i32_0 : i32
    scf.if %2 {
      %cst_106 = arith.constant 0.000000e+00 : f32
      %151 = vector.broadcast %cst_106 : f32 to vector<8x128xf32>
      %c0_107 = arith.constant 0 : index
      %c0_108 = arith.constant 0 : index
      %152 = vector.load %arg9[%c0_107, %c0_108] : memref<8x128xf32, #tpu.memory_space<vmem>>, vector<8x128xf32>
      tpu.vector_store %arg9[%c0_107, %c0_108], %151 {strides = array<i32>} : memref<8x128xf32, #tpu.memory_space<vmem>>, vector<8x128xf32>,
      %cst_109 = arith.constant 0.000000e+00 : f32
      %153 = vector.broadcast %cst_109 : f32 to vector<8x128xf32>
      %c0_110 = arith.constant 0 : index
      %c0_111 = arith.constant 0 : index
      %154 = vector.load %arg8[%c0_110, %c0_111] : memref<8x128xf32, #tpu.memory_space<vmem>>, vector<8x128xf32>
      tpu.vector_store %arg8[%c0_110, %c0_111], %153 {strides = array<i32>} : memref<8x128xf32, #tpu.memory_space<vmem>>, vector<8x128xf32>,
    } else {
    }
    %c0 = arith.constant 0 : index
    %c0_1 = arith.constant 0 : index
    %c0_2 = arith.constant 0 : index
    %3 = vector.load %arg1[%c0, %c0_1, %c0_2] : memref<8x8x4xf32, #tpu.memory_space<vmem>>, vector<8x8x4xf32>
    %4 = vector.shape_cast %3 : vector<8x8x4xf32> to vector<64x4xf32>
    %c0_3 = arith.constant 0 : index
    %c0_4 = arith.constant 0 : index
    %5 = vector.load %arg2[%c0_3, %c0_4] : memref<4x128xf32, #tpu.memory_space<vmem>>, vector<4x128xf32>
    %cst = arith.constant dense<0.000000e+00> : vector<64x128xf32>
    %6 = tpu.matmul %4, %5, %cst {dimension_numbers = #tpu.dot_dimension_numbers<[1], [0], [0], [1], [0, 0, 1, 1], [], []>} : vector<64x4xf32>, vector<4x128xf32>, vector<64x128xf32> -> vector<64x128xf32>
    %c0_5 = arith.constant 0 : index
    %c0_6 = arith.constant 0 : index
    %7 = vector.load %arg5[%c0_5, %c0_6] : memref<1x128xf32, #tpu.memory_space<vmem>>, vector<1x128xf32>
    %8 = vector.broadcast %7 : vector<1x128xf32> to vector<64x128xf32>
    %9 = arith.addf %6, %8 : vector<64x128xf32>
    %10 = vector.shape_cast %9 : vector<64x128xf32> to vector<8x8x128xf32>
    %c0_7 = arith.constant 0 : index
    %c0_8 = arith.constant 0 : index
    %c0_9 = arith.constant 0 : index
    %11 = vector.load %arg10[%c0_7, %c0_8, %c0_9] : memref<8x8x128xf32, #tpu.memory_space<vmem>>, vector<8x8x128xf32>
    tpu.vector_store %arg10[%c0_7, %c0_8, %c0_9], %10 {strides = array<i32>} : memref<8x8x128xf32, #tpu.memory_space<vmem>>, vector<8x8x128xf32>,
    %c0_10 = arith.constant 0 : index
    %c0_11 = arith.constant 0 : index
    %12 = vector.load %arg9[%c0_10, %c0_11] : memref<8x128xf32, #tpu.memory_space<vmem>>, vector<8x128xf32>
    %c0_i32_12 = arith.constant 0 : i32
    %13 = arith.index_cast %c0_i32_12 : i32 to index
    %c0_13 = arith.constant 0 : index
    %c0_14 = arith.constant 0 : index
    %14 = vector.load %arg10[%13, %c0_13, %c0_14] : memref<8x8x128xf32, #tpu.memory_space<vmem>>, vector<1x8x128xf32>
    %15 = vector.shape_cast %14 : vector<1x8x128xf32> to vector<8x128xf32>
    %c0_15 = arith.constant 0 : index
    %c0_16 = arith.constant 0 : index
    %16 = vector.load %arg3[%c0_15, %c0_16] : memref<128x128xf32, #tpu.memory_space<vmem>>, vector<128x128xf32>
    %cst_17 = arith.constant dense<0.000000e+00> : vector<8x128xf32>
    %17 = tpu.matmul %12, %16, %cst_17 {dimension_numbers = #tpu.dot_dimension_numbers<[1], [0], [0], [1], [0, 0, 1, 1], [], []>} : vector<8x128xf32>, vector<128x128xf32>, vector<8x128xf32> -> vector<8x128xf32>
    %18 = arith.addf %15, %17 : vector<8x128xf32>
    %19 = math.tanh %18 : vector<8x128xf32>
    %20 = arith.index_cast %c0_i32_12 : i32 to index
    %c0_18 = arith.constant 0 : index
    %c0_19 = arith.constant 0 : index
    %21 = vector.load %arg11[%20, %c0_18, %c0_19] : memref<8x8x128xf32, #tpu.memory_space<vmem>>, vector<1x8x128xf32>
    %22 = vector.shape_cast %21 : vector<1x8x128xf32> to vector<8x128xf32>
    %23 = vector.shape_cast %19 : vector<8x128xf32> to vector<1x8x128xf32>
    tpu.vector_store %arg11[%20, %c0_18, %c0_19], %23 {strides = array<i32>} : memref<8x8x128xf32, #tpu.memory_space<vmem>>, vector<1x8x128xf32>,
    %c8_i32 = arith.constant 8 : i32
    %24 = arith.muli %arg0, %c8_i32 : i32
    %25 = arith.addi %24, %c0_i32_12 : i32
    %c7_i32 = arith.constant 7 : i32
    %26 = arith.cmpi eq, %25, %c7_i32 : i32
    %27 = arith.extui %26 : i1 to i32
    %c0_i32_20 = arith.constant 0 : i32
    %28 = arith.cmpi ne, %27, %c0_i32_20 : i32
    scf.if %28 {
      %c0_106 = arith.constant 0 : index
      %c0_107 = arith.constant 0 : index
      %151 = vector.load %arg8[%c0_106, %c0_107] : memref<8x128xf32, #tpu.memory_space<vmem>>, vector<8x128xf32>
      tpu.vector_store %arg8[%c0_106, %c0_107], %19 {strides = array<i32>} : memref<8x128xf32, #tpu.memory_space<vmem>>, vector<8x128xf32>,
    } else {
    }
    %c1_i32 = arith.constant 1 : i32
    %29 = arith.index_cast %c1_i32 : i32 to index
    %c0_21 = arith.constant 0 : index
    %c0_22 = arith.constant 0 : index
    %30 = vector.load %arg10[%29, %c0_21, %c0_22] : memref<8x8x128xf32, #tpu.memory_space<vmem>>, vector<1x8x128xf32>
    %31 = vector.shape_cast %30 : vector<1x8x128xf32> to vector<8x128xf32>
    %c0_23 = arith.constant 0 : index
    %c0_24 = arith.constant 0 : index
    %32 = vector.load %arg3[%c0_23, %c0_24] : memref<128x128xf32, #tpu.memory_space<vmem>>, vector<128x128xf32>
    %cst_25 = arith.constant dense<0.000000e+00> : vector<8x128xf32>
    %33 = tpu.matmul %19, %32, %cst_25 {dimension_numbers = #tpu.dot_dimension_numbers<[1], [0], [0], [1], [0, 0, 1, 1], [], []>} : vector<8x128xf32>, vector<128x128xf32>, vector<8x128xf32> -> vector<8x128xf32>
    %34 = arith.addf %31, %33 : vector<8x128xf32>
    %35 = math.tanh %34 : vector<8x128xf32>
    %36 = arith.index_cast %c1_i32 : i32 to index
    %c0_26 = arith.constant 0 : index
    %c0_27 = arith.constant 0 : index
    %37 = vector.load %arg11[%36, %c0_26, %c0_27] : memref<8x8x128xf32, #tpu.memory_space<vmem>>, vector<1x8x128xf32>
    %38 = vector.shape_cast %37 : vector<1x8x128xf32> to vector<8x128xf32>
    %39 = vector.shape_cast %35 : vector<8x128xf32> to vector<1x8x128xf32>
    tpu.vector_store %arg11[%36, %c0_26, %c0_27], %39 {strides = array<i32>} : memref<8x8x128xf32, #tpu.memory_space<vmem>>, vector<1x8x128xf32>,
    %c8_i32_28 = arith.constant 8 : i32
    %40 = arith.muli %arg0, %c8_i32_28 : i32
    %41 = arith.addi %40, %c1_i32 : i32
    %c7_i32_29 = arith.constant 7 : i32
    %42 = arith.cmpi eq, %41, %c7_i32_29 : i32
    %43 = arith.extui %42 : i1 to i32
    %c0_i32_30 = arith.constant 0 : i32
    %44 = arith.cmpi ne, %43, %c0_i32_30 : i32
    scf.if %44 {
      %c0_106 = arith.constant 0 : index
      %c0_107 = arith.constant 0 : index
      %151 = vector.load %arg8[%c0_106, %c0_107] : memref<8x128xf32, #tpu.memory_space<vmem>>, vector<8x128xf32>
      tpu.vector_store %arg8[%c0_106, %c0_107], %35 {strides = array<i32>} : memref<8x128xf32, #tpu.memory_space<vmem>>, vector<8x128xf32>,
    } else {
    }
    %c2_i32 = arith.constant 2 : i32
    %45 = arith.index_cast %c2_i32 : i32 to index
    %c0_31 = arith.constant 0 : index
    %c0_32 = arith.constant 0 : index
    %46 = vector.load %arg10[%45, %c0_31, %c0_32] : memref<8x8x128xf32, #tpu.memory_space<vmem>>, vector<1x8x128xf32>
    %47 = vector.shape_cast %46 : vector<1x8x128xf32> to vector<8x128xf32>
    %c0_33 = arith.constant 0 : index
    %c0_34 = arith.constant 0 : index
    %48 = vector.load %arg3[%c0_33, %c0_34] : memref<128x128xf32, #tpu.memory_space<vmem>>, vector<128x128xf32>
    %cst_35 = arith.constant dense<0.000000e+00> : vector<8x128xf32>
    %49 = tpu.matmul %35, %48, %cst_35 {dimension_numbers = #tpu.dot_dimension_numbers<[1], [0], [0], [1], [0, 0, 1, 1], [], []>} : vector<8x128xf32>, vector<128x128xf32>, vector<8x128xf32> -> vector<8x128xf32>
    %50 = arith.addf %47, %49 : vector<8x128xf32>
    %51 = math.tanh %50 : vector<8x128xf32>
    %52 = arith.index_cast %c2_i32 : i32 to index
    %c0_36 = arith.constant 0 : index
    %c0_37 = arith.constant 0 : index
    %53 = vector.load %arg11[%52, %c0_36, %c0_37] : memref<8x8x128xf32, #tpu.memory_space<vmem>>, vector<1x8x128xf32>
    %54 = vector.shape_cast %53 : vector<1x8x128xf32> to vector<8x128xf32>
    %55 = vector.shape_cast %51 : vector<8x128xf32> to vector<1x8x128xf32>
    tpu.vector_store %arg11[%52, %c0_36, %c0_37], %55 {strides = array<i32>} : memref<8x8x128xf32, #tpu.memory_space<vmem>>, vector<1x8x128xf32>,
    %c8_i32_38 = arith.constant 8 : i32
    %56 = arith.muli %arg0, %c8_i32_38 : i32
    %57 = arith.addi %56, %c2_i32 : i32
    %c7_i32_39 = arith.constant 7 : i32
    %58 = arith.cmpi eq, %57, %c7_i32_39 : i32
    %59 = arith.extui %58 : i1 to i32
    %c0_i32_40 = arith.constant 0 : i32
    %60 = arith.cmpi ne, %59, %c0_i32_40 : i32
    scf.if %60 {
      %c0_106 = arith.constant 0 : index
      %c0_107 = arith.constant 0 : index
      %151 = vector.load %arg8[%c0_106, %c0_107] : memref<8x128xf32, #tpu.memory_space<vmem>>, vector<8x128xf32>
      tpu.vector_store %arg8[%c0_106, %c0_107], %51 {strides = array<i32>} : memref<8x128xf32, #tpu.memory_space<vmem>>, vector<8x128xf32>,
    } else {
    }
    %c3_i32 = arith.constant 3 : i32
    %61 = arith.index_cast %c3_i32 : i32 to index
    %c0_41 = arith.constant 0 : index
    %c0_42 = arith.constant 0 : index
    %62 = vector.load %arg10[%61, %c0_41, %c0_42] : memref<8x8x128xf32, #tpu.memory_space<vmem>>, vector<1x8x128xf32>
    %63 = vector.shape_cast %62 : vector<1x8x128xf32> to vector<8x128xf32>
    %c0_43 = arith.constant 0 : index
    %c0_44 = arith.constant 0 : index
    %64 = vector.load %arg3[%c0_43, %c0_44] : memref<128x128xf32, #tpu.memory_space<vmem>>, vector<128x128xf32>
    %cst_45 = arith.constant dense<0.000000e+00> : vector<8x128xf32>
    %65 = tpu.matmul %51, %64, %cst_45 {dimension_numbers = #tpu.dot_dimension_numbers<[1], [0], [0], [1], [0, 0, 1, 1], [], []>} : vector<8x128xf32>, vector<128x128xf32>, vector<8x128xf32> -> vector<8x128xf32>
    %66 = arith.addf %63, %65 : vector<8x128xf32>
    %67 = math.tanh %66 : vector<8x128xf32>
    %68 = arith.index_cast %c3_i32 : i32 to index
    %c0_46 = arith.constant 0 : index
    %c0_47 = arith.constant 0 : index
    %69 = vector.load %arg11[%68, %c0_46, %c0_47] : memref<8x8x128xf32, #tpu.memory_space<vmem>>, vector<1x8x128xf32>
    %70 = vector.shape_cast %69 : vector<1x8x128xf32> to vector<8x128xf32>
    %71 = vector.shape_cast %67 : vector<8x128xf32> to vector<1x8x128xf32>
    tpu.vector_store %arg11[%68, %c0_46, %c0_47], %71 {strides = array<i32>} : memref<8x8x128xf32, #tpu.memory_space<vmem>>, vector<1x8x128xf32>,
    %c8_i32_48 = arith.constant 8 : i32
    %72 = arith.muli %arg0, %c8_i32_48 : i32
    %73 = arith.addi %72, %c3_i32 : i32
    %c7_i32_49 = arith.constant 7 : i32
    %74 = arith.cmpi eq, %73, %c7_i32_49 : i32
    %75 = arith.extui %74 : i1 to i32
    %c0_i32_50 = arith.constant 0 : i32
    %76 = arith.cmpi ne, %75, %c0_i32_50 : i32
    scf.if %76 {
      %c0_106 = arith.constant 0 : index
      %c0_107 = arith.constant 0 : index
      %151 = vector.load %arg8[%c0_106, %c0_107] : memref<8x128xf32, #tpu.memory_space<vmem>>, vector<8x128xf32>
      tpu.vector_store %arg8[%c0_106, %c0_107], %67 {strides = array<i32>} : memref<8x128xf32, #tpu.memory_space<vmem>>, vector<8x128xf32>,
    } else {
    }
    %c4_i32 = arith.constant 4 : i32
    %77 = arith.index_cast %c4_i32 : i32 to index
    %c0_51 = arith.constant 0 : index
    %c0_52 = arith.constant 0 : index
    %78 = vector.load %arg10[%77, %c0_51, %c0_52] : memref<8x8x128xf32, #tpu.memory_space<vmem>>, vector<1x8x128xf32>
    %79 = vector.shape_cast %78 : vector<1x8x128xf32> to vector<8x128xf32>
    %c0_53 = arith.constant 0 : index
    %c0_54 = arith.constant 0 : index
    %80 = vector.load %arg3[%c0_53, %c0_54] : memref<128x128xf32, #tpu.memory_space<vmem>>, vector<128x128xf32>
    %cst_55 = arith.constant dense<0.000000e+00> : vector<8x128xf32>
    %81 = tpu.matmul %67, %80, %cst_55 {dimension_numbers = #tpu.dot_dimension_numbers<[1], [0], [0], [1], [0, 0, 1, 1], [], []>} : vector<8x128xf32>, vector<128x128xf32>, vector<8x128xf32> -> vector<8x128xf32>
    %82 = arith.addf %79, %81 : vector<8x128xf32>
    %83 = math.tanh %82 : vector<8x128xf32>
    %84 = arith.index_cast %c4_i32 : i32 to index
    %c0_56 = arith.constant 0 : index
    %c0_57 = arith.constant 0 : index
    %85 = vector.load %arg11[%84, %c0_56, %c0_57] : memref<8x8x128xf32, #tpu.memory_space<vmem>>, vector<1x8x128xf32>
    %86 = vector.shape_cast %85 : vector<1x8x128xf32> to vector<8x128xf32>
    %87 = vector.shape_cast %83 : vector<8x128xf32> to vector<1x8x128xf32>
    tpu.vector_store %arg11[%84, %c0_56, %c0_57], %87 {strides = array<i32>} : memref<8x8x128xf32, #tpu.memory_space<vmem>>, vector<1x8x128xf32>,
    %c8_i32_58 = arith.constant 8 : i32
    %88 = arith.muli %arg0, %c8_i32_58 : i32
    %89 = arith.addi %88, %c4_i32 : i32
    %c7_i32_59 = arith.constant 7 : i32
    %90 = arith.cmpi eq, %89, %c7_i32_59 : i32
    %91 = arith.extui %90 : i1 to i32
    %c0_i32_60 = arith.constant 0 : i32
    %92 = arith.cmpi ne, %91, %c0_i32_60 : i32
    scf.if %92 {
      %c0_106 = arith.constant 0 : index
      %c0_107 = arith.constant 0 : index
      %151 = vector.load %arg8[%c0_106, %c0_107] : memref<8x128xf32, #tpu.memory_space<vmem>>, vector<8x128xf32>
      tpu.vector_store %arg8[%c0_106, %c0_107], %83 {strides = array<i32>} : memref<8x128xf32, #tpu.memory_space<vmem>>, vector<8x128xf32>,
    } else {
    }
    %c5_i32 = arith.constant 5 : i32
    %93 = arith.index_cast %c5_i32 : i32 to index
    %c0_61 = arith.constant 0 : index
    %c0_62 = arith.constant 0 : index
    %94 = vector.load %arg10[%93, %c0_61, %c0_62] : memref<8x8x128xf32, #tpu.memory_space<vmem>>, vector<1x8x128xf32>
    %95 = vector.shape_cast %94 : vector<1x8x128xf32> to vector<8x128xf32>
    %c0_63 = arith.constant 0 : index
    %c0_64 = arith.constant 0 : index
    %96 = vector.load %arg3[%c0_63, %c0_64] : memref<128x128xf32, #tpu.memory_space<vmem>>, vector<128x128xf32>
    %cst_65 = arith.constant dense<0.000000e+00> : vector<8x128xf32>
    %97 = tpu.matmul %83, %96, %cst_65 {dimension_numbers = #tpu.dot_dimension_numbers<[1], [0], [0], [1], [0, 0, 1, 1], [], []>} : vector<8x128xf32>, vector<128x128xf32>, vector<8x128xf32> -> vector<8x128xf32>
    %98 = arith.addf %95, %97 : vector<8x128xf32>
    %99 = math.tanh %98 : vector<8x128xf32>
    %100 = arith.index_cast %c5_i32 : i32 to index
    %c0_66 = arith.constant 0 : index
    %c0_67 = arith.constant 0 : index
    %101 = vector.load %arg11[%100, %c0_66, %c0_67] : memref<8x8x128xf32, #tpu.memory_space<vmem>>, vector<1x8x128xf32>
    %102 = vector.shape_cast %101 : vector<1x8x128xf32> to vector<8x128xf32>
    %103 = vector.shape_cast %99 : vector<8x128xf32> to vector<1x8x128xf32>
    tpu.vector_store %arg11[%100, %c0_66, %c0_67], %103 {strides = array<i32>} : memref<8x8x128xf32, #tpu.memory_space<vmem>>, vector<1x8x128xf32>,
    %c8_i32_68 = arith.constant 8 : i32
    %104 = arith.muli %arg0, %c8_i32_68 : i32
    %105 = arith.addi %104, %c5_i32 : i32
    %c7_i32_69 = arith.constant 7 : i32
    %106 = arith.cmpi eq, %105, %c7_i32_69 : i32
    %107 = arith.extui %106 : i1 to i32
    %c0_i32_70 = arith.constant 0 : i32
    %108 = arith.cmpi ne, %107, %c0_i32_70 : i32
    scf.if %108 {
      %c0_106 = arith.constant 0 : index
      %c0_107 = arith.constant 0 : index
      %151 = vector.load %arg8[%c0_106, %c0_107] : memref<8x128xf32, #tpu.memory_space<vmem>>, vector<8x128xf32>
      tpu.vector_store %arg8[%c0_106, %c0_107], %99 {strides = array<i32>} : memref<8x128xf32, #tpu.memory_space<vmem>>, vector<8x128xf32>,
    } else {
    }
    %c6_i32 = arith.constant 6 : i32
    %109 = arith.index_cast %c6_i32 : i32 to index
    %c0_71 = arith.constant 0 : index
    %c0_72 = arith.constant 0 : index
    %110 = vector.load %arg10[%109, %c0_71, %c0_72] : memref<8x8x128xf32, #tpu.memory_space<vmem>>, vector<1x8x128xf32>
    %111 = vector.shape_cast %110 : vector<1x8x128xf32> to vector<8x128xf32>
    %c0_73 = arith.constant 0 : index
    %c0_74 = arith.constant 0 : index
    %112 = vector.load %arg3[%c0_73, %c0_74] : memref<128x128xf32, #tpu.memory_space<vmem>>, vector<128x128xf32>
    %cst_75 = arith.constant dense<0.000000e+00> : vector<8x128xf32>
    %113 = tpu.matmul %99, %112, %cst_75 {dimension_numbers = #tpu.dot_dimension_numbers<[1], [0], [0], [1], [0, 0, 1, 1], [], []>} : vector<8x128xf32>, vector<128x128xf32>, vector<8x128xf32> -> vector<8x128xf32>
    %114 = arith.addf %111, %113 : vector<8x128xf32>
    %115 = math.tanh %114 : vector<8x128xf32>
    %116 = arith.index_cast %c6_i32 : i32 to index
    %c0_76 = arith.constant 0 : index
    %c0_77 = arith.constant 0 : index
    %117 = vector.load %arg11[%116, %c0_76, %c0_77] : memref<8x8x128xf32, #tpu.memory_space<vmem>>, vector<1x8x128xf32>
    %118 = vector.shape_cast %117 : vector<1x8x128xf32> to vector<8x128xf32>
    %119 = vector.shape_cast %115 : vector<8x128xf32> to vector<1x8x128xf32>
    tpu.vector_store %arg11[%116, %c0_76, %c0_77], %119 {strides = array<i32>} : memref<8x8x128xf32, #tpu.memory_space<vmem>>, vector<1x8x128xf32>,
    %c8_i32_78 = arith.constant 8 : i32
    %120 = arith.muli %arg0, %c8_i32_78 : i32
    %121 = arith.addi %120, %c6_i32 : i32
    %c7_i32_79 = arith.constant 7 : i32
    %122 = arith.cmpi eq, %121, %c7_i32_79 : i32
    %123 = arith.extui %122 : i1 to i32
    %c0_i32_80 = arith.constant 0 : i32
    %124 = arith.cmpi ne, %123, %c0_i32_80 : i32
    scf.if %124 {
      %c0_106 = arith.constant 0 : index
      %c0_107 = arith.constant 0 : index
      %151 = vector.load %arg8[%c0_106, %c0_107] : memref<8x128xf32, #tpu.memory_space<vmem>>, vector<8x128xf32>
      tpu.vector_store %arg8[%c0_106, %c0_107], %115 {strides = array<i32>} : memref<8x128xf32, #tpu.memory_space<vmem>>, vector<8x128xf32>,
    } else {
    }
    %c7_i32_81 = arith.constant 7 : i32
    %125 = arith.index_cast %c7_i32_81 : i32 to index
    %c0_82 = arith.constant 0 : index
    %c0_83 = arith.constant 0 : index
    %126 = vector.load %arg10[%125, %c0_82, %c0_83] : memref<8x8x128xf32, #tpu.memory_space<vmem>>, vector<1x8x128xf32>
    %127 = vector.shape_cast %126 : vector<1x8x128xf32> to vector<8x128xf32>
    %c0_84 = arith.constant 0 : index
    %c0_85 = arith.constant 0 : index
    %128 = vector.load %arg3[%c0_84, %c0_85] : memref<128x128xf32, #tpu.memory_space<vmem>>, vector<128x128xf32>
    %cst_86 = arith.constant dense<0.000000e+00> : vector<8x128xf32>
    %129 = tpu.matmul %115, %128, %cst_86 {dimension_numbers = #tpu.dot_dimension_numbers<[1], [0], [0], [1], [0, 0, 1, 1], [], []>} : vector<8x128xf32>, vector<128x128xf32>, vector<8x128xf32> -> vector<8x128xf32>
    %130 = arith.addf %127, %129 : vector<8x128xf32>
    %131 = math.tanh %130 : vector<8x128xf32>
    %132 = arith.index_cast %c7_i32_81 : i32 to index
    %c0_87 = arith.constant 0 : index
    %c0_88 = arith.constant 0 : index
    %133 = vector.load %arg11[%132, %c0_87, %c0_88] : memref<8x8x128xf32, #tpu.memory_space<vmem>>, vector<1x8x128xf32>
    %134 = vector.shape_cast %133 : vector<1x8x128xf32> to vector<8x128xf32>
    %135 = vector.shape_cast %131 : vector<8x128xf32> to vector<1x8x128xf32>
    tpu.vector_store %arg11[%132, %c0_87, %c0_88], %135 {strides = array<i32>} : memref<8x8x128xf32, #tpu.memory_space<vmem>>, vector<1x8x128xf32>,
    %c8_i32_89 = arith.constant 8 : i32
    %136 = arith.muli %arg0, %c8_i32_89 : i32
    %137 = arith.addi %136, %c7_i32_81 : i32
    %c7_i32_90 = arith.constant 7 : i32
    %138 = arith.cmpi eq, %137, %c7_i32_90 : i32
    %139 = arith.extui %138 : i1 to i32
    %c0_i32_91 = arith.constant 0 : i32
    %140 = arith.cmpi ne, %139, %c0_i32_91 : i32
    scf.if %140 {
      %c0_106 = arith.constant 0 : index
      %c0_107 = arith.constant 0 : index
      %151 = vector.load %arg8[%c0_106, %c0_107] : memref<8x128xf32, #tpu.memory_space<vmem>>, vector<8x128xf32>
      tpu.vector_store %arg8[%c0_106, %c0_107], %131 {strides = array<i32>} : memref<8x128xf32, #tpu.memory_space<vmem>>, vector<8x128xf32>,
    } else {
    }
    %c8_i32_92 = arith.constant 8 : i32
    %c0_93 = arith.constant 0 : index
    %c0_94 = arith.constant 0 : index
    %141 = vector.load %arg9[%c0_93, %c0_94] : memref<8x128xf32, #tpu.memory_space<vmem>>, vector<8x128xf32>
    tpu.vector_store %arg9[%c0_93, %c0_94], %131 {strides = array<i32>} : memref<8x128xf32, #tpu.memory_space<vmem>>, vector<8x128xf32>,
    %c0_95 = arith.constant 0 : index
    %c0_96 = arith.constant 0 : index
    %c0_97 = arith.constant 0 : index
    %142 = vector.load %arg11[%c0_95, %c0_96, %c0_97] : memref<8x8x128xf32, #tpu.memory_space<vmem>>, vector<8x8x128xf32>
    %143 = vector.shape_cast %142 : vector<8x8x128xf32> to vector<64x128xf32>
    %c0_98 = arith.constant 0 : index
    %c0_99 = arith.constant 0 : index
    %144 = vector.load %arg4[%c0_98, %c0_99] : memref<128x128xf32, #tpu.memory_space<vmem>>, vector<128x128xf32>
    %cst_100 = arith.constant dense<0.000000e+00> : vector<64x128xf32>
    %145 = tpu.matmul %143, %144, %cst_100 {dimension_numbers = #tpu.dot_dimension_numbers<[1], [0], [0], [1], [0, 0, 1, 1], [], []>} : vector<64x128xf32>, vector<128x128xf32>, vector<64x128xf32> -> vector<64x128xf32>
    %c0_101 = arith.constant 0 : index
    %c0_102 = arith.constant 0 : index
    %146 = vector.load %arg6[%c0_101, %c0_102] : memref<1x128xf32, #tpu.memory_space<vmem>>, vector<1x128xf32>
    %147 = vector.broadcast %146 : vector<1x128xf32> to vector<64x128xf32>
    %148 = arith.addf %145, %147 : vector<64x128xf32>
    %149 = vector.shape_cast %148 : vector<64x128xf32> to vector<8x8x128xf32>
    %c0_103 = arith.constant 0 : index
    %c0_104 = arith.constant 0 : index
    %c0_105 = arith.constant 0 : index
    %150 = vector.load %arg7[%c0_103, %c0_104, %c0_105] : memref<8x8x128xf32, #tpu.memory_space<vmem>>, vector<8x8x128xf32>
    tpu.vector_store %arg7[%c0_103, %c0_104, %c0_105], %149 {strides = array<i32>} : memref<8x8x128xf32, #tpu.memory_space<vmem>>, vector<8x8x128xf32>,
    return
  }
  func.func @transform_0(%arg0: i32) -> (i32, i32, i32) {
    %c0_i32 = arith.constant 0 : i32
    %c0_i32_0 = arith.constant 0 : i32
    %c0_i32_1 = arith.constant 0 : i32
    return %arg0, %c0_i32, %c0_i32_0 : i32, i32, i32
  }
  func.func @transform_1(%arg0: i32) -> (i32, i32) {
    %c0_i32 = arith.constant 0 : i32
    %c0_i32_0 = arith.constant 0 : i32
    %c0_i32_1 = arith.constant 0 : i32
    return %c0_i32, %c0_i32_0 : i32, i32
  }
  func.func @transform_2(%arg0: i32) -> (i32, i32) {
    %c0_i32 = arith.constant 0 : i32
    %c0_i32_0 = arith.constant 0 : i32
    %c0_i32_1 = arith.constant 0 : i32
    return %c0_i32, %c0_i32_0 : i32, i32
  }
  func.func @transform_3(%arg0: i32) -> (i32, i32) {
    %c0_i32 = arith.constant 0 : i32
    %c0_i32_0 = arith.constant 0 : i32
    %c0_i32_1 = arith.constant 0 : i32
    return %c0_i32, %c0_i32_0 : i32, i32
  }
  func.func @transform_4(%arg0: i32) -> (i32, i32) {
    %c0_i32 = arith.constant 0 : i32
    %c0_i32_0 = arith.constant 0 : i32
    %c0_i32_1 = arith.constant 0 : i32
    return %c0_i32, %c0_i32_0 : i32, i32
  }
  func.func @transform_5(%arg0: i32) -> (i32, i32) {
    %c0_i32 = arith.constant 0 : i32
    %c0_i32_0 = arith.constant 0 : i32
    %c0_i32_1 = arith.constant 0 : i32
    return %c0_i32, %c0_i32_0 : i32, i32
  }
  func.func @transform_6(%arg0: i32) -> (i32, i32, i32) {
    %c0_i32 = arith.constant 0 : i32
    %c0_i32_0 = arith.constant 0 : i32
    %c0_i32_1 = arith.constant 0 : i32
    return %arg0, %c0_i32, %c0_i32_0 : i32, i32, i32
  }
  func.func @transform_7(%arg0: i32) -> (i32, i32) {
    %c0_i32 = arith.constant 0 : i32
    %c0_i32_0 = arith.constant 0 : i32
    %c0_i32_1 = arith.constant 0 : i32
    return %c0_i32, %c0_i32_0 : i32, i32
  }
}

</mosaic_0001>

<llo_original>
// kernel: tpu_custom_call.1
$region0: #{tpu_custom_call.1}
  #allocation0 [shape = 'u32[]', space=smem, size = 0x4, offset = 0x4, fixed_abs, tag = 'smem constant byte address 0x4 - core index']
  #allocation1 [shape = 'u32[144,128]{1,0:T(1,128)}', space=vmem, size = 0x12000, scoped, tag = 'internal scratch']
  #allocation2 [shape = 'f32[8,128]{1,0:T(8,128)}', space=vmem, size = 0x1000, scoped, tag = 'scratch operand']
  #allocation3 [shape = 'f32[8,8,128]{2,1,0:T(8,128)}', space=vmem, size = 0x8000, scoped, tag = 'scratch operand']
  #allocation4 [shape = 'f32[8,8,128]{2,1,0:T(8,128)}', space=vmem, size = 0x8000, scoped, tag = 'scratch operand']
  %s0 = inlined_call_operand.vmem [shape: f32[8,8,4], index: 0, kind: input, shape index: {}]
  %s1 = inlined_call_operand.vmem [shape: f32[4,128], index: 1, kind: input, shape index: {}]
  %s2 = inlined_call_operand.hbm [shape: f32[128,128], index: 2, kind: input, shape index: {}]
  %s3 = inlined_call_operand.hbm [shape: f32[128,128], index: 3, kind: input, shape index: {}]
  %s4 = inlined_call_operand.vmem [shape: f32[1,128], index: 4, kind: input, shape index: {}]
  %s5 = inlined_call_operand.vmem [shape: f32[1,128], index: 5, kind: input, shape index: {}]
  %s6 = inlined_call_operand.hbm [shape: f32[8,8,128], index: 6, kind: output, shape index: {0}]
  %s7 = inlined_call_operand.hbm [shape: f32[8,128], index: 7, kind: output, shape index: {1}]
  %8 = xla_tuple %s6, %s7
  %s9 = sld [smem:[#allocation0]]
  $region86: #{tpu_custom_call.1} parent=0
    _
  %s11 = ssub.s32 1, %s9
  %s12 = scalar_select 0, %s11, %s9
  $region1: #{tpu_custom_call.1} parent=0
    #allocation5 [shape = 'u8[65536]{0}', space=vmem, size = 0x10000, scoped, tag = 'input window, operand 2, single buffered']
    #allocation6 [shape = 's32[1]{0}', space=sflag, size = 0x4, scoped, tag = 'scoped memory for tpu_custom_call.1']
    #allocation7 [shape = 's32[1]{0}', space=sflag, size = 0x4, scoped, tag = 'scoped memory for tpu_custom_call.1']
    #allocation8 [shape = 'u8[65536]{0}', space=vmem, size = 0x10000, scoped, tag = 'input window, operand 3, single buffered']
    #allocation9 [shape = 's32[1]{0}', space=sflag, size = 0x4, scoped, tag = 'scoped memory for tpu_custom_call.1']
    #allocation10 [shape = 'u8[32768]{0}', space=vmem, size = 0x8000, scoped, tag = 'output window, operand 0, single buffered']
    #allocation11 [shape = 'u8[4096]{0}', space=vmem, size = 0x1000, scoped, tag = 'output window, operand 1, single buffered']
    #allocation12 [shape = 's32[1]{0}', space=sflag, size = 0x4, scoped, tag = 'scoped memory for tpu_custom_call.1']
    %13 = vsyncpa [#allocation6], 0
    %14 = vsyncpa [#allocation9], 0
    %15 = vsyncpa [#allocation7], 0
    %16 = vsyncpa [#allocation12], 0
    // Predicated region
    $region2: #{tpu_custom_call.1} parent=1 // pred_check
      _
    $region3: #{tpu_custom_call.1} parent=1 // pred_check_branch
      %18 = sbr.rel (0) target = $region5
    $region4: #{tpu_custom_call.1} parent=1 // pred_region
      _
    $region5: #{tpu_custom_call.1} parent=1 // pred_fallthru
      _
    // Predicated region
    $region6: #{tpu_custom_call.1} parent=1 // pred_check
      _
    $region7: #{tpu_custom_call.1} parent=1 // pred_check_branch
      %20 = sbr.rel (0) target = $region9
    $region8: #{tpu_custom_call.1} parent=1 // pred_region
      _
    $region9: #{tpu_custom_call.1} parent=1 // pred_fallthru
      _
    // Predicated region
    $region10: #{tpu_custom_call.1} parent=1 // pred_check
      _
    $region11: #{tpu_custom_call.1} parent=1 // pred_check_branch
      %22 = sbr.rel (0) target = $region13
    $region12: #{tpu_custom_call.1} parent=1 // pred_region
      %s24 = ssub.s32 2048, 2048
      %25 = vsyncadd [#allocation6], %s24
      %s26 = sshll.u32 [#allocation5], 4
      %s27 = int_to_ptr.vmem [resolvable:$true] %s26
      %32 = dma.hbm_to_vmem [thread:$0]  %s2, 2048, %s27, [#allocation6], 128, 128, 8
    $region13: #{tpu_custom_call.1} parent=1 // pred_fallthru
      _
    // Predicated region
    $region14: #{tpu_custom_call.1} parent=1 // pred_check
      _
    $region15: #{tpu_custom_call.1} parent=1 // pred_check_branch
      %34 = sbr.rel (0) target = $region17
    $region16: #{tpu_custom_call.1} parent=1 // pred_region
      %s36 = ssub.s32 2048, 2048
      %37 = vsyncadd [#allocation9], %s36
      %s38 = sshll.u32 [#allocation8], 4
      %s39 = int_to_ptr.vmem [resolvable:$true] %s38
      %44 = dma.hbm_to_vmem [thread:$0]  %s3, 2048, %s39, [#allocation9], 128, 128, 8
    $region17: #{tpu_custom_call.1} parent=1 // pred_fallthru
      _
    // Predicated region
    $region18: #{tpu_custom_call.1} parent=1 // pred_check
      _
    $region19: #{tpu_custom_call.1} parent=1 // pred_check_branch
      %46 = sbr.rel (0) target = $region21
    $region20: #{tpu_custom_call.1} parent=1 // pred_region
      _
    $region21: #{tpu_custom_call.1} parent=1 // pred_fallthru
      _
    // Predicated region
    $region22: #{tpu_custom_call.1} parent=1 // pred_check
      _
    $region23: #{tpu_custom_call.1} parent=1 // pred_check_branch
      %48 = sbr.rel (0) target = $region25
    $region24: #{tpu_custom_call.1} parent=1 // pred_region
      _
    $region25: #{tpu_custom_call.1} parent=1 // pred_fallthru
      _
    // Predicated region
    $region26: #{tpu_custom_call.1} parent=1 // pred_check
      _
    $region27: #{tpu_custom_call.1} parent=1 // pred_check_branch
      %50 = sbr.rel (0) target = $region29
    $region28: #{tpu_custom_call.1} parent=1 // pred_region
      %51 = dma.done [#allocation6], 2048
    $region29: #{tpu_custom_call.1} parent=1 // pred_fallthru
      _
    // Predicated region
    $region30: #{tpu_custom_call.1} parent=1 // pred_check
      _
    $region31: #{tpu_custom_call.1} parent=1 // pred_check_branch
      %53 = sbr.rel (0) target = $region33
    $region32: #{tpu_custom_call.1} parent=1 // pred_region
      %54 = dma.done [#allocation9], 2048
    $region33: #{tpu_custom_call.1} parent=1 // pred_fallthru
      _
    %p55 = scmp.eq.s32.totalorder 0, 0
    // Predicated region
    $region34: #{tpu_custom_call.1} parent=1 // pred_check
      %p56 = pneg %p55
    $region35: #{tpu_custom_call.1} parent=1 // pred_check_branch
      %58 = sbr.rel (%p56) target = $region37
    $region36: #{tpu_custom_call.1} parent=1 // pred_region
      %59 = vst [vmem:[#allocation2] sm:$0xff] 0.0
      %60 = vst [vmem:[#allocation11] sm:$0xff] 0.0
    $region37: #{tpu_custom_call.1} parent=1 // pred_fallthru
      _
    %v61 = vld [vmem:[%s0] sm:$0xff]
    %v62 = vld [vmem:[%s0 + $0x8] sm:$0xff]
    %v63 = vld [vmem:[%s0 + $0x10] sm:$0xff]
    %v64 = vld [vmem:[%s0 + $0x18] sm:$0xff]
    %v65 = vld [vmem:[%s0 + $0x20] sm:$0xff]
    %v66 = vld [vmem:[%s0 + $0x28] sm:$0xff]
    %v67 = vld [vmem:[%s0 + $0x30] sm:$0xff]
    %v68 = vld [vmem:[%s0 + $0x38] sm:$0xff]
    %v69 = vld [vmem:[%s1] sm:$0xf]
    %v70 = vld [vmem:[%s4] sm:$0x1]
    %v72 = vlaneseq
    %v73 = vshrl.u32 %v72, 7
    %v74 = vsub.s32 0, %v73
    %v75 = vrot.slane %v70, %v74
    %vm77 = vcmask 31744
    %v79 = vsel %vm77, %v61, 0
    %v82 = vsel %vm77, %v62, 0
    %v85 = vsel %vm77, %v63, 0
    %v88 = vsel %vm77, %v64, 0
    %v91 = vsel %vm77, %v65, 0
    %v94 = vsel %vm77, %v66, 0
    %v97 = vsel %vm77, %v67, 0
    %v100 = vsel %vm77, %v68, 0
    %vm102 = vcmask 1043456
    %v104 = vsel %vm102, %v69, 0
    %106 = vmatprep.subr.mxu0 0.0
    %107 = vmatpush1.msra.mxu0 %v104
    %108 = vmatprep.subr.mxu0 0.0
    %109 = vmatpush1.msra.mxu0 0.0
    %110 = vmatprep.subr.mxu0 0.0
    %111 = vmatpush1.msra.mxu0 0.0
    %112 = vmatprep.subr.mxu0 0.0
    %113 = vmatpush1.msra.mxu0 0.0
    %114 = vmatprep.subr.mxu0 0.0
    %115 = vmatpush1.msra.mxu0 0.0
    %116 = vmatprep.subr.mxu0 0.0
    %117 = vmatpush1.msra.mxu0 0.0
    %118 = vmatprep.subr.mxu0 0.0
    %119 = vmatpush1.msra.mxu0 0.0
    %120 = vmatprep.subr.mxu0 0.0
    %121 = vmatpush1.msra.mxu0 0.0
    %122 = vmatprep.subr.mxu0 0.0
    %123 = vmatpush1.msra.mxu0 0.0
    %124 = vmatprep.subr.mxu0 0.0
    %125 = vmatpush1.msra.mxu0 0.0
    %126 = vmatprep.subr.mxu0 0.0
    %127 = vmatpush1.msra.mxu0 0.0
    %128 = vmatprep.subr.mxu0 0.0
    %129 = vmatpush1.msra.mxu0 0.0
    %130 = vmatprep.subr.mxu0 0.0
    %131 = vmatpush1.msra.mxu0 0.0
    %132 = vmatprep.subr.mxu0 0.0
    %133 = vmatpush1.msra.mxu0 0.0
    %134 = vmatprep.subr.mxu0 0.0
    %135 = vmatpush1.msra.mxu0 0.0
    %136 = vmatprep.subr.mxu0 0.0
    %137 = vmatpush1.msra.mxu0 0.0
    %138 = vmatprep.subr.mxu0 0.0
    %139 = vmatpush1.msra.mxu0 0.0
    %140 = vmatprep.subr.mxu0 0.0
    %141 = vmatpush1.msra.mxu0 0.0
    %142 = vmatprep.subr.mxu0 0.0
    %143 = vmatpush1.msra.mxu0 0.0
    %144 = vmatprep.subr.mxu0 0.0
    %145 = vmatpush1.msra.mxu0 0.0
    %146 = vmatprep.subr.mxu0 0.0
    %147 = vmatpush1.msra.mxu0 0.0
    %148 = vmatprep.subr.mxu0 0.0
    %149 = vmatpush1.msra.mxu0 0.0
    %150 = vmatprep.subr.mxu0 0.0
    %151 = vmatpush1.msra.mxu0 0.0
    %152 = vmatprep.subr.mxu0 0.0
    %153 = vmatpush1.msra.mxu0 0.0
    %154 = vmatprep.subr.mxu0 0.0
    %155 = vmatpush1.msra.mxu0 0.0
    %156 = vmatprep.subr.mxu0 0.0
    %157 = vmatpush1.msra.mxu0 0.0
    %158 = vmatprep.subr.mxu0 0.0
    %159 = vmatpush1.msra.mxu0 0.0
    %160 = vmatprep.subr.mxu0 0.0
    %161 = vmatpush1.msra.mxu0 0.0
    %162 = vmatprep.subr.mxu0 0.0
    %163 = vmatpush1.msra.mxu0 0.0
    %164 = vmatprep.subr.mxu0 0.0
    %165 = vmatpush1.msra.mxu0 0.0
    %166 = vmatprep.subr.mxu0 0.0
    %167 = vmatpush1.msra.mxu0 0.0
    %168 = vmatprep.subr.mxu0 0.0
    %169 = vmatpush1.msra.mxu0 0.0
    %170 = vmatprep.mubr.f32.mxu0 0.0
    %171 = vmatmul.mubr.f32.gmra.mrb[0].mxu0 %v79
    %v172 = vpop.f32.mrb[0].mxu0
    %v173 = vadd.f32 %v75, %v172
    %v174 = vpop.f32.mrb[0].mxu0
    %175 = vmatprep.mubr.f32.mxu0 0.0
    %176 = vmatmul.mubr.f32.gmra.mrb[0].mxu0 %v82
    %v177 = vpop.f32.mrb[0].mxu0
    %v178 = vadd.f32 %v75, %v177
    %v179 = vpop.f32.mrb[0].mxu0
    %180 = vmatprep.mubr.f32.mxu0 0.0
    %181 = vmatmul.mubr.f32.gmra.mrb[0].mxu0 %v85
    %v182 = vpop.f32.mrb[0].mxu0
    %v183 = vadd.f32 %v75, %v182
    %v184 = vpop.f32.mrb[0].mxu0
    %185 = vmatprep.mubr.f32.mxu0 0.0
    %186 = vmatmul.mubr.f32.gmra.mrb[0].mxu0 %v88
    %v187 = vpop.f32.mrb[0].mxu0
    %v188 = vadd.f32 %v75, %v187
    %v189 = vpop.f32.mrb[0].mxu0
    %190 = vmatprep.mubr.f32.mxu0 0.0
    %191 = vmatmul.mubr.f32.gmra.mrb[0].mxu0 %v91
    %v192 = vpop.f32.mrb[0].mxu0
    %v193 = vadd.f32 %v75, %v192
    %v194 = vpop.f32.mrb[0].mxu0
    %195 = vmatprep.mubr.f32.mxu0 0.0
    %196 = vmatmul.mubr.f32.gmra.mrb[0].mxu0 %v94
    %v197 = vpop.f32.mrb[0].mxu0
    %v198 = vadd.f32 %v75, %v197
    %v199 = vpop.f32.mrb[0].mxu0
    %200 = vmatprep.mubr.f32.mxu0 0.0
    %201 = vmatmul.mubr.f32.gmra.mrb[0].mxu0 %v97
    %v202 = vpop.f32.mrb[0].mxu0
    %v203 = vadd.f32 %v75, %v202
    %v204 = vpop.f32.mrb[0].mxu0
    %205 = vmatprep.mubr.f32.mxu0 0.0
    %206 = vmatmul.mubr.f32.gmra.mrb[0].mxu0 %v100
    %v207 = vpop.f32.mrb[0].mxu0
    %v208 = vadd.f32 %v75, %v207
    %v209 = vpop.f32.mrb[0].mxu0
    %210 = vdwg.mxu0
    %211 = vst [vmem:[#allocation3] sm:$0xff] %v173
    %212 = vst [vmem:[#allocation3 + $0x8] sm:$0xff] %v178
    %213 = vst [vmem:[#allocation3 + $0x10] sm:$0xff] %v183
    %214 = vst [vmem:[#allocation3 + $0x18] sm:$0xff] %v188
    %215 = vst [vmem:[#allocation3 + $0x20] sm:$0xff] %v193
    %216 = vst [vmem:[#allocation3 + $0x28] sm:$0xff] %v198
    %217 = vst [vmem:[#allocation3 + $0x30] sm:$0xff] %v203
    %218 = vst [vmem:[#allocation3 + $0x38] sm:$0xff] %v208
    %v219 = vld [vmem:[#allocation2] sm:$0xff]
    %v220 = vld [vmem:[#allocation3] sm:$0xff]
    %v221 = vld [vmem:[#allocation5] sm:$0xff]
    %v222 = vld [vmem:[#allocation5 + $0x8] sm:$0xff]
    %v223 = vld [vmem:[#allocation5 + $0x10] sm:$0xff]
    %v224 = vld [vmem:[#allocation5 + $0x18] sm:$0xff]
    %v225 = vld [vmem:[#allocation5 + $0x20] sm:$0xff]
    %v226 = vld [vmem:[#allocation5 + $0x28] sm:$0xff]
    %v227 = vld [vmem:[#allocation5 + $0x30] sm:$0xff]
    %v228 = vld [vmem:[#allocation5 + $0x38] sm:$0xff]
    %v229 = vld [vmem:[#allocation5 + $0x40] sm:$0xff]
    %v230 = vld [vmem:[#allocation5 + $0x48] sm:$0xff]
    %v231 = vld [vmem:[#allocation5 + $0x50] sm:$0xff]
    %v232 = vld [vmem:[#allocation5 + $0x58] sm:$0xff]
    %v233 = vld [vmem:[#allocation5 + $0x60] sm:$0xff]
    %v234 = vld [vmem:[#allocation5 + $0x68] sm:$0xff]
    %v235 = vld [vmem:[#allocation5 + $0x70] sm:$0xff]
    %v236 = vld [vmem:[#allocation5 + $0x78] sm:$0xff]
    %237 = vmatprep.subr.mxu0 0.0
    %238 = vmatpush1.msra.mxu0 %v221
    %239 = vmatprep.subr.mxu0 0.0
    %240 = vmatpush1.msra.mxu0 %v222
    %241 = vmatprep.subr.mxu0 0.0
    %242 = vmatpush1.msra.mxu0 %v223
    %243 = vmatprep.subr.mxu0 0.0
    %244 = vmatpush1.msra.mxu0 %v224
    %245 = vmatprep.subr.mxu0 0.0
    %246 = vmatpush1.msra.mxu0 %v225
    %247 = vmatprep.subr.mxu0 0.0
    %248 = vmatpush1.msra.mxu0 %v226
    %249 = vmatprep.subr.mxu0 0.0
    %250 = vmatpush1.msra.mxu0 %v227
    %251 = vmatprep.subr.mxu0 0.0
    %252 = vmatpush1.msra.mxu0 %v228
    %253 = vmatprep.subr.mxu0 0.0
    %254 = vmatpush1.msra.mxu0 %v229
    %255 = vmatprep.subr.mxu0 0.0
    %256 = vmatpush1.msra.mxu0 %v230
    %257 = vmatprep.subr.mxu0 0.0
    %258 = vmatpush1.msra.mxu0 %v231
    %259 = vmatprep.subr.mxu0 0.0
    %260 = vmatpush1.msra.mxu0 %v232
    %261 = vmatprep.subr.mxu0 0.0
    %262 = vmatpush1.msra.mxu0 %v233
    %263 = vmatprep.subr.mxu0 0.0
    %264 = vmatpush1.msra.mxu0 %v234
    %265 = vmatprep.subr.mxu0 0.0
    %266 = vmatpush1.msra.mxu0 %v235
    %267 = vmatprep.subr.mxu0 0.0
    %268 = vmatpush1.msra.mxu0 %v236
    %269 = vmatprep.subr.mxu0 0.0
    %270 = vmatpush1.msra.mxu0 0.0
    %271 = vmatprep.subr.mxu0 0.0
    %272 = vmatpush1.msra.mxu0 0.0
    %273 = vmatprep.subr.mxu0 0.0
    %274 = vmatpush1.msra.mxu0 0.0
    %275 = vmatprep.subr.mxu0 0.0
    %276 = vmatpush1.msra.mxu0 0.0
    %277 = vmatprep.subr.mxu0 0.0
    %278 = vmatpush1.msra.mxu0 0.0
    %279 = vmatprep.subr.mxu0 0.0
    %280 = vmatpush1.msra.mxu0 0.0
    %281 = vmatprep.subr.mxu0 0.0
    %282 = vmatpush1.msra.mxu0 0.0
    %283 = vmatprep.subr.mxu0 0.0
    %284 = vmatpush1.msra.mxu0 0.0
    %285 = vmatprep.subr.mxu0 0.0
    %286 = vmatpush1.msra.mxu0 0.0
    %287 = vmatprep.subr.mxu0 0.0
    %288 = vmatpush1.msra.mxu0 0.0
    %289 = vmatprep.subr.mxu0 0.0
    %290 = vmatpush1.msra.mxu0 0.0
    %291 = vmatprep.subr.mxu0 0.0
    %292 = vmatpush1.msra.mxu0 0.0
    %293 = vmatprep.subr.mxu0 0.0
    %294 = vmatpush1.msra.mxu0 0.0
    %295 = vmatprep.subr.mxu0 0.0
    %296 = vmatpush1.msra.mxu0 0.0
    %297 = vmatprep.subr.mxu0 0.0
    %298 = vmatpush1.msra.mxu0 0.0
    %299 = vmatprep.subr.mxu0 0.0
    %300 = vmatpush1.msra.mxu0 0.0
    %301 = vmatprep.mubr.f32.mxu0 0.0
    %302 = vmatmul.mubr.f32.gmra.mrb[0].mxu0 %v219
    %v303 = vpop.f32.mrb[0].mxu0
    %v304 = vadd.f32 0.0, %v303
    %v305 = vpop.f32.mrb[0].mxu0
    %306 = vdwg.mxu0
    %v307 = vadd.f32 %v220, %v304
    %v308 = vtanh.pop %v307
    %309 = vst [vmem:[#allocation4] sm:$0xff] %v308
    %s310 = smul.u32 0, 8
    %p311 = scmp.eq.s32.totalorder %s310, 7
    // Predicated region
    $region38: #{tpu_custom_call.1} parent=1 // pred_check
      %p312 = pneg %p311
    $region39: #{tpu_custom_call.1} parent=1 // pred_check_branch
      %314 = sbr.rel (%p312) target = $region41
    $region40: #{tpu_custom_call.1} parent=1 // pred_region
      %315 = vst [vmem:[#allocation11] sm:$0xff] %v308
    $region41: #{tpu_custom_call.1} parent=1 // pred_fallthru
      _
    %s316 = scalar_lea.vmem [#allocation3], 8
    %v317 = vld [vmem:[%s316] sm:$0xff]
    %v318 = vld [vmem:[#allocation5] sm:$0xff]
    %v319 = vld [vmem:[#allocation5 + $0x8] sm:$0xff]
    %v320 = vld [vmem:[#allocation5 + $0x10] sm:$0xff]
    %v321 = vld [vmem:[#allocation5 + $0x18] sm:$0xff]
    %v322 = vld [vmem:[#allocation5 + $0x20] sm:$0xff]
    %v323 = vld [vmem:[#allocation5 + $0x28] sm:$0xff]
    %v324 = vld [vmem:[#allocation5 + $0x30] sm:$0xff]
    %v325 = vld [vmem:[#allocation5 + $0x38] sm:$0xff]
    %v326 = vld [vmem:[#allocation5 + $0x40] sm:$0xff]
    %v327 = vld [vmem:[#allocation5 + $0x48] sm:$0xff]
    %v328 = vld [vmem:[#allocation5 + $0x50] sm:$0xff]
    %v329 = vld [vmem:[#allocation5 + $0x58] sm:$0xff]
    %v330 = vld [vmem:[#allocation5 + $0x60] sm:$0xff]
    %v331 = vld [vmem:[#allocation5 + $0x68] sm:$0xff]
    %v332 = vld [vmem:[#allocation5 + $0x70] sm:$0xff]
    %v333 = vld [vmem:[#allocation5 + $0x78] sm:$0xff]
    %334 = vmatprep.subr.mxu0 0.0
    %335 = vmatpush1.msra.mxu0 %v318
    %336 = vmatprep.subr.mxu0 0.0
    %337 = vmatpush1.msra.mxu0 %v319
    %338 = vmatprep.subr.mxu0 0.0
    %339 = vmatpush1.msra.mxu0 %v320
    %340 = vmatprep.subr.mxu0 0.0
    %341 = vmatpush1.msra.mxu0 %v321
    %342 = vmatprep.subr.mxu0 0.0
    %343 = vmatpush1.msra.mxu0 %v322
    %344 = vmatprep.subr.mxu0 0.0
    %345 = vmatpush1.msra.mxu0 %v323
    %346 = vmatprep.subr.mxu0 0.0
    %347 = vmatpush1.msra.mxu0 %v324
    %348 = vmatprep.subr.mxu0 0.0
    %349 = vmatpush1.msra.mxu0 %v325
    %350 = vmatprep.subr.mxu0 0.0
    %351 = vmatpush1.msra.mxu0 %v326
    %352 = vmatprep.subr.mxu0 0.0
    %353 = vmatpush1.msra.mxu0 %v327
    %354 = vmatprep.subr.mxu0 0.0
    %355 = vmatpush1.msra.mxu0 %v328
    %356 = vmatprep.subr.mxu0 0.0
    %357 = vmatpush1.msra.mxu0 %v329
    %358 = vmatprep.subr.mxu0 0.0
    %359 = vmatpush1.msra.mxu0 %v330
    %360 = vmatprep.subr.mxu0 0.0
    %361 = vmatpush1.msra.mxu0 %v331
    %362 = vmatprep.subr.mxu0 0.0
    %363 = vmatpush1.msra.mxu0 %v332
    %364 = vmatprep.subr.mxu0 0.0
    %365 = vmatpush1.msra.mxu0 %v333
    %366 = vmatprep.subr.mxu0 0.0
    %367 = vmatpush1.msra.mxu0 0.0
    %368 = vmatprep.subr.mxu0 0.0
    %369 = vmatpush1.msra.mxu0 0.0
    %370 = vmatprep.subr.mxu0 0.0
    %371 = vmatpush1.msra.mxu0 0.0
    %372 = vmatprep.subr.mxu0 0.0
    %373 = vmatpush1.msra.mxu0 0.0
    %374 = vmatprep.subr.mxu0 0.0
    %375 = vmatpush1.msra.mxu0 0.0
    %376 = vmatprep.subr.mxu0 0.0
    %377 = vmatpush1.msra.mxu0 0.0
    %378 = vmatprep.subr.mxu0 0.0
    %379 = vmatpush1.msra.mxu0 0.0
    %380 = vmatprep.subr.mxu0 0.0
    %381 = vmatpush1.msra.mxu0 0.0
    %382 = vmatprep.subr.mxu0 0.0
    %383 = vmatpush1.msra.mxu0 0.0
    %384 = vmatprep.subr.mxu0 0.0
    %385 = vmatpush1.msra.mxu0 0.0
    %386 = vmatprep.subr.mxu0 0.0
    %387 = vmatpush1.msra.mxu0 0.0
    %388 = vmatprep.subr.mxu0 0.0
    %389 = vmatpush1.msra.mxu0 0.0
    %390 = vmatprep.subr.mxu0 0.0
    %391 = vmatpush1.msra.mxu0 0.0
    %392 = vmatprep.subr.mxu0 0.0
    %393 = vmatpush1.msra.mxu0 0.0
    %394 = vmatprep.subr.mxu0 0.0
    %395 = vmatpush1.msra.mxu0 0.0
    %396 = vmatprep.subr.mxu0 0.0
    %397 = vmatpush1.msra.mxu0 0.0
    %398 = vmatprep.mubr.f32.mxu0 0.0
    %399 = vmatmul.mubr.f32.gmra.mrb[0].mxu0 %v308
    %v400 = vpop.f32.mrb[0].mxu0
    %v401 = vadd.f32 0.0, %v400
    %v402 = vpop.f32.mrb[0].mxu0
    %403 = vdwg.mxu0
    %v404 = vadd.f32 %v317, %v401
    %v405 = vtanh.pop %v404
    %s406 = scalar_lea.vmem [#allocation4], 8
    %407 = vst [vmem:[%s406] sm:$0xff] %v405
    %s408 = sadd.s32 %s310, 1
    %p409 = scmp.eq.s32.totalorder %s408, 7
    // Predicated region
    $region42: #{tpu_custom_call.1} parent=1 // pred_check
      %p410 = pneg %p409
    $region43: #{tpu_custom_call.1} parent=1 // pred_check_branch
      %412 = sbr.rel (%p410) target = $region45
    $region44: #{tpu_custom_call.1} parent=1 // pred_region
      %413 = vst [vmem:[#allocation11] sm:$0xff] %v405
    $region45: #{tpu_custom_call.1} parent=1 // pred_fallthru
      _
    %s414 = scalar_lea.vmem [#allocation3], 16
    %v415 = vld [vmem:[%s414] sm:$0xff]
    %v416 = vld [vmem:[#allocation5] sm:$0xff]
    %v417 = vld [vmem:[#allocation5 + $0x8] sm:$0xff]
    %v418 = vld [vmem:[#allocation5 + $0x10] sm:$0xff]
    %v419 = vld [vmem:[#allocation5 + $0x18] sm:$0xff]
    %v420 = vld [vmem:[#allocation5 + $0x20] sm:$0xff]
    %v421 = vld [vmem:[#allocation5 + $0x28] sm:$0xff]
    %v422 = vld [vmem:[#allocation5 + $0x30] sm:$0xff]
    %v423 = vld [vmem:[#allocation5 + $0x38] sm:$0xff]
    %v424 = vld [vmem:[#allocation5 + $0x40] sm:$0xff]
    %v425 = vld [vmem:[#allocation5 + $0x48] sm:$0xff]
    %v426 = vld [vmem:[#allocation5 + $0x50] sm:$0xff]
    %v427 = vld [vmem:[#allocation5 + $0x58] sm:$0xff]
    %v428 = vld [vmem:[#allocation5 + $0x60] sm:$0xff]
    %v429 = vld [vmem:[#allocation5 + $0x68] sm:$0xff]
    %v430 = vld [vmem:[#allocation5 + $0x70] sm:$0xff]
    %v431 = vld [vmem:[#allocation5 + $0x78] sm:$0xff]
    %432 = vmatprep.subr.mxu0 0.0
    %433 = vmatpush1.msra.mxu0 %v416
    %434 = vmatprep.subr.mxu0 0.0
    %435 = vmatpush1.msra.mxu0 %v417
    %436 = vmatprep.subr.mxu0 0.0
    %437 = vmatpush1.msra.mxu0 %v418
    %438 = vmatprep.subr.mxu0 0.0
    %439 = vmatpush1.msra.mxu0 %v419
    %440 = vmatprep.subr.mxu0 0.0
    %441 = vmatpush1.msra.mxu0 %v420
    %442 = vmatprep.subr.mxu0 0.0
    %443 = vmatpush1.msra.mxu0 %v421
    %444 = vmatprep.subr.mxu0 0.0
    %445 = vmatpush1.msra.mxu0 %v422
    %446 = vmatprep.subr.mxu0 0.0
    %447 = vmatpush1.msra.mxu0 %v423
    %448 = vmatprep.subr.mxu0 0.0
    %449 = vmatpush1.msra.mxu0 %v424
    %450 = vmatprep.subr.mxu0 0.0
    %451 = vmatpush1.msra.mxu0 %v425
    %452 = vmatprep.subr.mxu0 0.0
    %453 = vmatpush1.msra.mxu0 %v426
    %454 = vmatprep.subr.mxu0 0.0
    %455 = vmatpush1.msra.mxu0 %v427
    %456 = vmatprep.subr.mxu0 0.0
    %457 = vmatpush1.msra.mxu0 %v428
    %458 = vmatprep.subr.mxu0 0.0
    %459 = vmatpush1.msra.mxu0 %v429
    %460 = vmatprep.subr.mxu0 0.0
    %461 = vmatpush1.msra.mxu0 %v430
    %462 = vmatprep.subr.mxu0 0.0
    %463 = vmatpush1.msra.mxu0 %v431
    %464 = vmatprep.subr.mxu0 0.0
    %465 = vmatpush1.msra.mxu0 0.0
    %466 = vmatprep.subr.mxu0 0.0
    %467 = vmatpush1.msra.mxu0 0.0
    %468 = vmatprep.subr.mxu0 0.0
    %469 = vmatpush1.msra.mxu0 0.0
    %470 = vmatprep.subr.mxu0 0.0
    %471 = vmatpush1.msra.mxu0 0.0
    %472 = vmatprep.subr.mxu0 0.0
    %473 = vmatpush1.msra.mxu0 0.0
    %474 = vmatprep.subr.mxu0 0.0
    %475 = vmatpush1.msra.mxu0 0.0
    %476 = vmatprep.subr.mxu0 0.0
    %477 = vmatpush1.msra.mxu0 0.0
    %478 = vmatprep.subr.mxu0 0.0
    %479 = vmatpush1.msra.mxu0 0.0
    %480 = vmatprep.subr.mxu0 0.0
    %481 = vmatpush1.msra.mxu0 0.0
    %482 = vmatprep.subr.mxu0 0.0
    %483 = vmatpush1.msra.mxu0 0.0
    %484 = vmatprep.subr.mxu0 0.0
    %485 = vmatpush1.msra.mxu0 0.0
    %486 = vmatprep.subr.mxu0 0.0
    %487 = vmatpush1.msra.mxu0 0.0
    %488 = vmatprep.subr.mxu0 0.0
    %489 = vmatpush1.msra.mxu0 0.0
    %490 = vmatprep.subr.mxu0 0.0
    %491 = vmatpush1.msra.mxu0 0.0
    %492 = vmatprep.subr.mxu0 0.0
    %493 = vmatpush1.msra.mxu0 0.0
    %494 = vmatprep.subr.mxu0 0.0
    %495 = vmatpush1.msra.mxu0 0.0
    %496 = vmatprep.mubr.f32.mxu0 0.0
    %497 = vmatmul.mubr.f32.gmra.mrb[0].mxu0 %v405
    %v498 = vpop.f32.mrb[0].mxu0
    %v499 = vadd.f32 0.0, %v498
    %v500 = vpop.f32.mrb[0].mxu0
    %501 = vdwg.mxu0
    %v502 = vadd.f32 %v415, %v499
    %v503 = vtanh.pop %v502
    %s504 = scalar_lea.vmem [#allocation4], 16
    %505 = vst [vmem:[%s504] sm:$0xff] %v503
    %s506 = sadd.s32 %s310, 2
    %p507 = scmp.eq.s32.totalorder %s506, 7
    // Predicated region
    $region46: #{tpu_custom_call.1} parent=1 // pred_check
      %p508 = pneg %p507
    $region47: #{tpu_custom_call.1} parent=1 // pred_check_branch
      %510 = sbr.rel (%p508) target = $region49
    $region48: #{tpu_custom_call.1} parent=1 // pred_region
      %511 = vst [vmem:[#allocation11] sm:$0xff] %v503
    $region49: #{tpu_custom_call.1} parent=1 // pred_fallthru
      _
    %s512 = scalar_lea.vmem [#allocation3], 24
    %v513 = vld [vmem:[%s512] sm:$0xff]
    %v514 = vld [vmem:[#allocation5] sm:$0xff]
    %v515 = vld [vmem:[#allocation5 + $0x8] sm:$0xff]
    %v516 = vld [vmem:[#allocation5 + $0x10] sm:$0xff]
    %v517 = vld [vmem:[#allocation5 + $0x18] sm:$0xff]
    %v518 = vld [vmem:[#allocation5 + $0x20] sm:$0xff]
    %v519 = vld [vmem:[#allocation5 + $0x28] sm:$0xff]
    %v520 = vld [vmem:[#allocation5 + $0x30] sm:$0xff]
    %v521 = vld [vmem:[#allocation5 + $0x38] sm:$0xff]
    %v522 = vld [vmem:[#allocation5 + $0x40] sm:$0xff]
    %v523 = vld [vmem:[#allocation5 + $0x48] sm:$0xff]
    %v524 = vld [vmem:[#allocation5 + $0x50] sm:$0xff]
    %v525 = vld [vmem:[#allocation5 + $0x58] sm:$0xff]
    %v526 = vld [vmem:[#allocation5 + $0x60] sm:$0xff]
    %v527 = vld [vmem:[#allocation5 + $0x68] sm:$0xff]
    %v528 = vld [vmem:[#allocation5 + $0x70] sm:$0xff]
    %v529 = vld [vmem:[#allocation5 + $0x78] sm:$0xff]
    %530 = vmatprep.subr.mxu0 0.0
    %531 = vmatpush1.msra.mxu0 %v514
    %532 = vmatprep.subr.mxu0 0.0
    %533 = vmatpush1.msra.mxu0 %v515
    %534 = vmatprep.subr.mxu0 0.0
    %535 = vmatpush1.msra.mxu0 %v516
    %536 = vmatprep.subr.mxu0 0.0
    %537 = vmatpush1.msra.mxu0 %v517
    %538 = vmatprep.subr.mxu0 0.0
    %539 = vmatpush1.msra.mxu0 %v518
    %540 = vmatprep.subr.mxu0 0.0
    %541 = vmatpush1.msra.mxu0 %v519
    %542 = vmatprep.subr.mxu0 0.0
    %543 = vmatpush1.msra.mxu0 %v520
    %544 = vmatprep.subr.mxu0 0.0
    %545 = vmatpush1.msra.mxu0 %v521
    %546 = vmatprep.subr.mxu0 0.0
    %547 = vmatpush1.msra.mxu0 %v522
    %548 = vmatprep.subr.mxu0 0.0
    %549 = vmatpush1.msra.mxu0 %v523
    %550 = vmatprep.subr.mxu0 0.0
    %551 = vmatpush1.msra.mxu0 %v524
    %552 = vmatprep.subr.mxu0 0.0
    %553 = vmatpush1.msra.mxu0 %v525
    %554 = vmatprep.subr.mxu0 0.0
    %555 = vmatpush1.msra.mxu0 %v526
    %556 = vmatprep.subr.mxu0 0.0
    %557 = vmatpush1.msra.mxu0 %v527
    %558 = vmatprep.subr.mxu0 0.0
    %559 = vmatpush1.msra.mxu0 %v528
    %560 = vmatprep.subr.mxu0 0.0
    %561 = vmatpush1.msra.mxu0 %v529
    %562 = vmatprep.subr.mxu0 0.0
    %563 = vmatpush1.msra.mxu0 0.0
    %564 = vmatprep.subr.mxu0 0.0
    %565 = vmatpush1.msra.mxu0 0.0
    %566 = vmatprep.subr.mxu0 0.0
    %567 = vmatpush1.msra.mxu0 0.0
    %568 = vmatprep.subr.mxu0 0.0
    %569 = vmatpush1.msra.mxu0 0.0
    %570 = vmatprep.subr.mxu0 0.0
    %571 = vmatpush1.msra.mxu0 0.0
    %572 = vmatprep.subr.mxu0 0.0
    %573 = vmatpush1.msra.mxu0 0.0
    %574 = vmatprep.subr.mxu0 0.0
    %575 = vmatpush1.msra.mxu0 0.0
    %576 = vmatprep.subr.mxu0 0.0
    %577 = vmatpush1.msra.mxu0 0.0
    %578 = vmatprep.subr.mxu0 0.0
    %579 = vmatpush1.msra.mxu0 0.0
    %580 = vmatprep.subr.mxu0 0.0
    %581 = vmatpush1.msra.mxu0 0.0
    %582 = vmatprep.subr.mxu0 0.0
    %583 = vmatpush1.msra.mxu0 0.0
    %584 = vmatprep.subr.mxu0 0.0
    %585 = vmatpush1.msra.mxu0 0.0
    %586 = vmatprep.subr.mxu0 0.0
    %587 = vmatpush1.msra.mxu0 0.0
    %588 = vmatprep.subr.mxu0 0.0
    %589 = vmatpush1.msra.mxu0 0.0
    %590 = vmatprep.subr.mxu0 0.0
    %591 = vmatpush1.msra.mxu0 0.0
    %592 = vmatprep.subr.mxu0 0.0
    %593 = vmatpush1.msra.mxu0 0.0
    %594 = vmatprep.mubr.f32.mxu0 0.0
    %595 = vmatmul.mubr.f32.gmra.mrb[0].mxu0 %v503
    %v596 = vpop.f32.mrb[0].mxu0
    %v597 = vadd.f32 0.0, %v596
    %v598 = vpop.f32.mrb[0].mxu0
    %599 = vdwg.mxu0
    %v600 = vadd.f32 %v513, %v597
    %v601 = vtanh.pop %v600
    %s602 = scalar_lea.vmem [#allocation4], 24
    %603 = vst [vmem:[%s602] sm:$0xff] %v601
    %s604 = sadd.s32 %s310, 3
    %p605 = scmp.eq.s32.totalorder %s604, 7
    // Predicated region
    $region50: #{tpu_custom_call.1} parent=1 // pred_check
      %p606 = pneg %p605
    $region51: #{tpu_custom_call.1} parent=1 // pred_check_branch
      %608 = sbr.rel (%p606) target = $region53
    $region52: #{tpu_custom_call.1} parent=1 // pred_region
      %609 = vst [vmem:[#allocation11] sm:$0xff] %v601
    $region53: #{tpu_custom_call.1} parent=1 // pred_fallthru
      _
    %s610 = scalar_lea.vmem [#allocation3], 32
    %v611 = vld [vmem:[%s610] sm:$0xff]
    %v612 = vld [vmem:[#allocation5] sm:$0xff]
    %v613 = vld [vmem:[#allocation5 + $0x8] sm:$0xff]
    %v614 = vld [vmem:[#allocation5 + $0x10] sm:$0xff]
    %v615 = vld [vmem:[#allocation5 + $0x18] sm:$0xff]
    %v616 = vld [vmem:[#allocation5 + $0x20] sm:$0xff]
    %v617 = vld [vmem:[#allocation5 + $0x28] sm:$0xff]
    %v618 = vld [vmem:[#allocation5 + $0x30] sm:$0xff]
    %v619 = vld [vmem:[#allocation5 + $0x38] sm:$0xff]
    %v620 = vld [vmem:[#allocation5 + $0x40] sm:$0xff]
    %v621 = vld [vmem:[#allocation5 + $0x48] sm:$0xff]
    %v622 = vld [vmem:[#allocation5 + $0x50] sm:$0xff]
    %v623 = vld [vmem:[#allocation5 + $0x58] sm:$0xff]
    %v624 = vld [vmem:[#allocation5 + $0x60] sm:$0xff]
    %v625 = vld [vmem:[#allocation5 + $0x68] sm:$0xff]
    %v626 = vld [vmem:[#allocation5 + $0x70] sm:$0xff]
    %v627 = vld [vmem:[#allocation5 + $0x78] sm:$0xff]
    %628 = vmatprep.subr.mxu0 0.0
    %629 = vmatpush1.msra.mxu0 %v612
    %630 = vmatprep.subr.mxu0 0.0
    %631 = vmatpush1.msra.mxu0 %v613
    %632 = vmatprep.subr.mxu0 0.0
    %633 = vmatpush1.msra.mxu0 %v614
    %634 = vmatprep.subr.mxu0 0.0
    %635 = vmatpush1.msra.mxu0 %v615
    %636 = vmatprep.subr.mxu0 0.0
    %637 = vmatpush1.msra.mxu0 %v616
    %638 = vmatprep.subr.mxu0 0.0
    %639 = vmatpush1.msra.mxu0 %v617
    %640 = vmatprep.subr.mxu0 0.0
    %641 = vmatpush1.msra.mxu0 %v618
    %642 = vmatprep.subr.mxu0 0.0
    %643 = vmatpush1.msra.mxu0 %v619
    %644 = vmatprep.subr.mxu0 0.0
    %645 = vmatpush1.msra.mxu0 %v620
    %646 = vmatprep.subr.mxu0 0.0
    %647 = vmatpush1.msra.mxu0 %v621
    %648 = vmatprep.subr.mxu0 0.0
    %649 = vmatpush1.msra.mxu0 %v622
    %650 = vmatprep.subr.mxu0 0.0
    %651 = vmatpush1.msra.mxu0 %v623
    %652 = vmatprep.subr.mxu0 0.0
    %653 = vmatpush1.msra.mxu0 %v624
    %654 = vmatprep.subr.mxu0 0.0
    %655 = vmatpush1.msra.mxu0 %v625
    %656 = vmatprep.subr.mxu0 0.0
    %657 = vmatpush1.msra.mxu0 %v626
    %658 = vmatprep.subr.mxu0 0.0
    %659 = vmatpush1.msra.mxu0 %v627
    %660 = vmatprep.subr.mxu0 0.0
    %661 = vmatpush1.msra.mxu0 0.0
    %662 = vmatprep.subr.mxu0 0.0
    %663 = vmatpush1.msra.mxu0 0.0
    %664 = vmatprep.subr.mxu0 0.0
    %665 = vmatpush1.msra.mxu0 0.0
    %666 = vmatprep.subr.mxu0 0.0
    %667 = vmatpush1.msra.mxu0 0.0
    %668 = vmatprep.subr.mxu0 0.0
    %669 = vmatpush1.msra.mxu0 0.0
    %670 = vmatprep.subr.mxu0 0.0
    %671 = vmatpush1.msra.mxu0 0.0
    %672 = vmatprep.subr.mxu0 0.0
    %673 = vmatpush1.msra.mxu0 0.0
    %674 = vmatprep.subr.mxu0 0.0
    %675 = vmatpush1.msra.mxu0 0.0
    %676 = vmatprep.subr.mxu0 0.0
    %677 = vmatpush1.msra.mxu0 0.0
    %678 = vmatprep.subr.mxu0 0.0
    %679 = vmatpush1.msra.mxu0 0.0
    %680 = vmatprep.subr.mxu0 0.0
    %681 = vmatpush1.msra.mxu0 0.0
    %682 = vmatprep.subr.mxu0 0.0
    %683 = vmatpush1.msra.mxu0 0.0
    %684 = vmatprep.subr.mxu0 0.0
    %685 = vmatpush1.msra.mxu0 0.0
    %686 = vmatprep.subr.mxu0 0.0
    %687 = vmatpush1.msra.mxu0 0.0
    %688 = vmatprep.subr.mxu0 0.0
    %689 = vmatpush1.msra.mxu0 0.0
    %690 = vmatprep.subr.mxu0 0.0
    %691 = vmatpush1.msra.mxu0 0.0
    %692 = vmatprep.mubr.f32.mxu0 0.0
    %693 = vmatmul.mubr.f32.gmra.mrb[0].mxu0 %v601
    %v694 = vpop.f32.mrb[0].mxu0
    %v695 = vadd.f32 0.0, %v694
    %v696 = vpop.f32.mrb[0].mxu0
    %697 = vdwg.mxu0
    %v698 = vadd.f32 %v611, %v695
    %v699 = vtanh.pop %v698
    %s700 = scalar_lea.vmem [#allocation4], 32
    %701 = vst [vmem:[%s700] sm:$0xff] %v699
    %s702 = sadd.s32 %s310, 4
    %p703 = scmp.eq.s32.totalorder %s702, 7
    // Predicated region
    $region54: #{tpu_custom_call.1} parent=1 // pred_check
      %p704 = pneg %p703
    $region55: #{tpu_custom_call.1} parent=1 // pred_check_branch
      %706 = sbr.rel (%p704) target = $region57
    $region56: #{tpu_custom_call.1} parent=1 // pred_region
      %707 = vst [vmem:[#allocation11] sm:$0xff] %v699
    $region57: #{tpu_custom_call.1} parent=1 // pred_fallthru
      _
    %s708 = scalar_lea.vmem [#allocation3], 40
    %v709 = vld [vmem:[%s708] sm:$0xff]
    %v710 = vld [vmem:[#allocation5] sm:$0xff]
    %v711 = vld [vmem:[#allocation5 + $0x8] sm:$0xff]
    %v712 = vld [vmem:[#allocation5 + $0x10] sm:$0xff]
    %v713 = vld [vmem:[#allocation5 + $0x18] sm:$0xff]
    %v714 = vld [vmem:[#allocation5 + $0x20] sm:$0xff]
    %v715 = vld [vmem:[#allocation5 + $0x28] sm:$0xff]
    %v716 = vld [vmem:[#allocation5 + $0x30] sm:$0xff]
    %v717 = vld [vmem:[#allocation5 + $0x38] sm:$0xff]
    %v718 = vld [vmem:[#allocation5 + $0x40] sm:$0xff]
    %v719 = vld [vmem:[#allocation5 + $0x48] sm:$0xff]
    %v720 = vld [vmem:[#allocation5 + $0x50] sm:$0xff]
    %v721 = vld [vmem:[#allocation5 + $0x58] sm:$0xff]
    %v722 = vld [vmem:[#allocation5 + $0x60] sm:$0xff]
    %v723 = vld [vmem:[#allocation5 + $0x68] sm:$0xff]
    %v724 = vld [vmem:[#allocation5 + $0x70] sm:$0xff]
    %v725 = vld [vmem:[#allocation5 + $0x78] sm:$0xff]
    %726 = vmatprep.subr.mxu0 0.0
    %727 = vmatpush1.msra.mxu0 %v710
    %728 = vmatprep.subr.mxu0 0.0
    %729 = vmatpush1.msra.mxu0 %v711
    %730 = vmatprep.subr.mxu0 0.0
    %731 = vmatpush1.msra.mxu0 %v712
    %732 = vmatprep.subr.mxu0 0.0
    %733 = vmatpush1.msra.mxu0 %v713
    %734 = vmatprep.subr.mxu0 0.0
    %735 = vmatpush1.msra.mxu0 %v714
    %736 = vmatprep.subr.mxu0 0.0
    %737 = vmatpush1.msra.mxu0 %v715
    %738 = vmatprep.subr.mxu0 0.0
    %739 = vmatpush1.msra.mxu0 %v716
    %740 = vmatprep.subr.mxu0 0.0
    %741 = vmatpush1.msra.mxu0 %v717
    %742 = vmatprep.subr.mxu0 0.0
    %743 = vmatpush1.msra.mxu0 %v718
    %744 = vmatprep.subr.mxu0 0.0
    %745 = vmatpush1.msra.mxu0 %v719
    %746 = vmatprep.subr.mxu0 0.0
    %747 = vmatpush1.msra.mxu0 %v720
    %748 = vmatprep.subr.mxu0 0.0
    %749 = vmatpush1.msra.mxu0 %v721
    %750 = vmatprep.subr.mxu0 0.0
    %751 = vmatpush1.msra.mxu0 %v722
    %752 = vmatprep.subr.mxu0 0.0
    %753 = vmatpush1.msra.mxu0 %v723
    %754 = vmatprep.subr.mxu0 0.0
    %755 = vmatpush1.msra.mxu0 %v724
    %756 = vmatprep.subr.mxu0 0.0
    %757 = vmatpush1.msra.mxu0 %v725
    %758 = vmatprep.subr.mxu0 0.0
    %759 = vmatpush1.msra.mxu0 0.0
    %760 = vmatprep.subr.mxu0 0.0
    %761 = vmatpush1.msra.mxu0 0.0
    %762 = vmatprep.subr.mxu0 0.0
    %763 = vmatpush1.msra.mxu0 0.0
    %764 = vmatprep.subr.mxu0 0.0
    %765 = vmatpush1.msra.mxu0 0.0
    %766 = vmatprep.subr.mxu0 0.0
    %767 = vmatpush1.msra.mxu0 0.0
    %768 = vmatprep.subr.mxu0 0.0
    %769 = vmatpush1.msra.mxu0 0.0
    %770 = vmatprep.subr.mxu0 0.0
    %771 = vmatpush1.msra.mxu0 0.0
    %772 = vmatprep.subr.mxu0 0.0
    %773 = vmatpush1.msra.mxu0 0.0
    %774 = vmatprep.subr.mxu0 0.0
    %775 = vmatpush1.msra.mxu0 0.0
    %776 = vmatprep.subr.mxu0 0.0
    %777 = vmatpush1.msra.mxu0 0.0
    %778 = vmatprep.subr.mxu0 0.0
    %779 = vmatpush1.msra.mxu0 0.0
    %780 = vmatprep.subr.mxu0 0.0
    %781 = vmatpush1.msra.mxu0 0.0
    %782 = vmatprep.subr.mxu0 0.0
    %783 = vmatpush1.msra.mxu0 0.0
    %784 = vmatprep.subr.mxu0 0.0
    %785 = vmatpush1.msra.mxu0 0.0
    %786 = vmatprep.subr.mxu0 0.0
    %787 = vmatpush1.msra.mxu0 0.0
    %788 = vmatprep.subr.mxu0 0.0
    %789 = vmatpush1.msra.mxu0 0.0
    %790 = vmatprep.mubr.f32.mxu0 0.0
    %791 = vmatmul.mubr.f32.gmra.mrb[0].mxu0 %v699
    %v792 = vpop.f32.mrb[0].mxu0
    %v793 = vadd.f32 0.0, %v792
    %v794 = vpop.f32.mrb[0].mxu0
    %795 = vdwg.mxu0
    %v796 = vadd.f32 %v709, %v793
    %v797 = vtanh.pop %v796
    %s798 = scalar_lea.vmem [#allocation4], 40
    %799 = vst [vmem:[%s798] sm:$0xff] %v797
    %s800 = sadd.s32 %s310, 5
    %p801 = scmp.eq.s32.totalorder %s800, 7
    // Predicated region
    $region58: #{tpu_custom_call.1} parent=1 // pred_check
      %p802 = pneg %p801
    $region59: #{tpu_custom_call.1} parent=1 // pred_check_branch
      %804 = sbr.rel (%p802) target = $region61
    $region60: #{tpu_custom_call.1} parent=1 // pred_region
      %805 = vst [vmem:[#allocation11] sm:$0xff] %v797
    $region61: #{tpu_custom_call.1} parent=1 // pred_fallthru
      _
    %s806 = scalar_lea.vmem [#allocation3], 48
    %v807 = vld [vmem:[%s806] sm:$0xff]
    %v808 = vld [vmem:[#allocation5] sm:$0xff]
    %v809 = vld [vmem:[#allocation5 + $0x8] sm:$0xff]
    %v810 = vld [vmem:[#allocation5 + $0x10] sm:$0xff]
    %v811 = vld [vmem:[#allocation5 + $0x18] sm:$0xff]
    %v812 = vld [vmem:[#allocation5 + $0x20] sm:$0xff]
    %v813 = vld [vmem:[#allocation5 + $0x28] sm:$0xff]
    %v814 = vld [vmem:[#allocation5 + $0x30] sm:$0xff]
    %v815 = vld [vmem:[#allocation5 + $0x38] sm:$0xff]
    %v816 = vld [vmem:[#allocation5 + $0x40] sm:$0xff]
    %v817 = vld [vmem:[#allocation5 + $0x48] sm:$0xff]
    %v818 = vld [vmem:[#allocation5 + $0x50] sm:$0xff]
    %v819 = vld [vmem:[#allocation5 + $0x58] sm:$0xff]
    %v820 = vld [vmem:[#allocation5 + $0x60] sm:$0xff]
    %v821 = vld [vmem:[#allocation5 + $0x68] sm:$0xff]
    %v822 = vld [vmem:[#allocation5 + $0x70] sm:$0xff]
    %v823 = vld [vmem:[#allocation5 + $0x78] sm:$0xff]
    %824 = vmatprep.subr.mxu0 0.0
    %825 = vmatpush1.msra.mxu0 %v808
    %826 = vmatprep.subr.mxu0 0.0
    %827 = vmatpush1.msra.mxu0 %v809
    %828 = vmatprep.subr.mxu0 0.0
    %829 = vmatpush1.msra.mxu0 %v810
    %830 = vmatprep.subr.mxu0 0.0
    %831 = vmatpush1.msra.mxu0 %v811
    %832 = vmatprep.subr.mxu0 0.0
    %833 = vmatpush1.msra.mxu0 %v812
    %834 = vmatprep.subr.mxu0 0.0
    %835 = vmatpush1.msra.mxu0 %v813
    %836 = vmatprep.subr.mxu0 0.0
    %837 = vmatpush1.msra.mxu0 %v814
    %838 = vmatprep.subr.mxu0 0.0
    %839 = vmatpush1.msra.mxu0 %v815
    %840 = vmatprep.subr.mxu0 0.0
    %841 = vmatpush1.msra.mxu0 %v816
    %842 = vmatprep.subr.mxu0 0.0
    %843 = vmatpush1.msra.mxu0 %v817
    %844 = vmatprep.subr.mxu0 0.0
    %845 = vmatpush1.msra.mxu0 %v818
    %846 = vmatprep.subr.mxu0 0.0
    %847 = vmatpush1.msra.mxu0 %v819
    %848 = vmatprep.subr.mxu0 0.0
    %849 = vmatpush1.msra.mxu0 %v820
    %850 = vmatprep.subr.mxu0 0.0
    %851 = vmatpush1.msra.mxu0 %v821
    %852 = vmatprep.subr.mxu0 0.0
    %853 = vmatpush1.msra.mxu0 %v822
    %854 = vmatprep.subr.mxu0 0.0
    %855 = vmatpush1.msra.mxu0 %v823
    %856 = vmatprep.subr.mxu0 0.0
    %857 = vmatpush1.msra.mxu0 0.0
    %858 = vmatprep.subr.mxu0 0.0
    %859 = vmatpush1.msra.mxu0 0.0
    %860 = vmatprep.subr.mxu0 0.0
    %861 = vmatpush1.msra.mxu0 0.0
    %862 = vmatprep.subr.mxu0 0.0
    %863 = vmatpush1.msra.mxu0 0.0
    %864 = vmatprep.subr.mxu0 0.0
    %865 = vmatpush1.msra.mxu0 0.0
    %866 = vmatprep.subr.mxu0 0.0
    %867 = vmatpush1.msra.mxu0 0.0
    %868 = vmatprep.subr.mxu0 0.0
    %869 = vmatpush1.msra.mxu0 0.0
    %870 = vmatprep.subr.mxu0 0.0
    %871 = vmatpush1.msra.mxu0 0.0
    %872 = vmatprep.subr.mxu0 0.0
    %873 = vmatpush1.msra.mxu0 0.0
    %874 = vmatprep.subr.mxu0 0.0
    %875 = vmatpush1.msra.mxu0 0.0
    %876 = vmatprep.subr.mxu0 0.0
    %877 = vmatpush1.msra.mxu0 0.0
    %878 = vmatprep.subr.mxu0 0.0
    %879 = vmatpush1.msra.mxu0 0.0
    %880 = vmatprep.subr.mxu0 0.0
    %881 = vmatpush1.msra.mxu0 0.0
    %882 = vmatprep.subr.mxu0 0.0
    %883 = vmatpush1.msra.mxu0 0.0
    %884 = vmatprep.subr.mxu0 0.0
    %885 = vmatpush1.msra.mxu0 0.0
    %886 = vmatprep.subr.mxu0 0.0
    %887 = vmatpush1.msra.mxu0 0.0
    %888 = vmatprep.mubr.f32.mxu0 0.0
    %889 = vmatmul.mubr.f32.gmra.mrb[0].mxu0 %v797
    %v890 = vpop.f32.mrb[0].mxu0
    %v891 = vadd.f32 0.0, %v890
    %v892 = vpop.f32.mrb[0].mxu0
    %893 = vdwg.mxu0
    %v894 = vadd.f32 %v807, %v891
    %v895 = vtanh.pop %v894
    %s896 = scalar_lea.vmem [#allocation4], 48
    %897 = vst [vmem:[%s896] sm:$0xff] %v895
    %s898 = sadd.s32 %s310, 6
    %p899 = scmp.eq.s32.totalorder %s898, 7
    // Predicated region
    $region62: #{tpu_custom_call.1} parent=1 // pred_check
      %p900 = pneg %p899
    $region63: #{tpu_custom_call.1} parent=1 // pred_check_branch
      %902 = sbr.rel (%p900) target = $region65
    $region64: #{tpu_custom_call.1} parent=1 // pred_region
      %903 = vst [vmem:[#allocation11] sm:$0xff] %v895
    $region65: #{tpu_custom_call.1} parent=1 // pred_fallthru
      _
    %s904 = scalar_lea.vmem [#allocation3], 56
    %v905 = vld [vmem:[%s904] sm:$0xff]
    %v906 = vld [vmem:[#allocation5] sm:$0xff]
    %v907 = vld [vmem:[#allocation5 + $0x8] sm:$0xff]
    %v908 = vld [vmem:[#allocation5 + $0x10] sm:$0xff]
    %v909 = vld [vmem:[#allocation5 + $0x18] sm:$0xff]
    %v910 = vld [vmem:[#allocation5 + $0x20] sm:$0xff]
    %v911 = vld [vmem:[#allocation5 + $0x28] sm:$0xff]
    %v912 = vld [vmem:[#allocation5 + $0x30] sm:$0xff]
    %v913 = vld [vmem:[#allocation5 + $0x38] sm:$0xff]
    %v914 = vld [vmem:[#allocation5 + $0x40] sm:$0xff]
    %v915 = vld [vmem:[#allocation5 + $0x48] sm:$0xff]
    %v916 = vld [vmem:[#allocation5 + $0x50] sm:$0xff]
    %v917 = vld [vmem:[#allocation5 + $0x58] sm:$0xff]
    %v918 = vld [vmem:[#allocation5 + $0x60] sm:$0xff]
    %v919 = vld [vmem:[#allocation5 + $0x68] sm:$0xff]
    %v920 = vld [vmem:[#allocation5 + $0x70] sm:$0xff]
    %v921 = vld [vmem:[#allocation5 + $0x78] sm:$0xff]
    %922 = vmatprep.subr.mxu0 0.0
    %923 = vmatpush1.msra.mxu0 %v906
    %924 = vmatprep.subr.mxu0 0.0
    %925 = vmatpush1.msra.mxu0 %v907
    %926 = vmatprep.subr.mxu0 0.0
    %927 = vmatpush1.msra.mxu0 %v908
    %928 = vmatprep.subr.mxu0 0.0
    %929 = vmatpush1.msra.mxu0 %v909
    %930 = vmatprep.subr.mxu0 0.0
    %931 = vmatpush1.msra.mxu0 %v910
    %932 = vmatprep.subr.mxu0 0.0
    %933 = vmatpush1.msra.mxu0 %v911
    %934 = vmatprep.subr.mxu0 0.0
    %935 = vmatpush1.msra.mxu0 %v912
    %936 = vmatprep.subr.mxu0 0.0
    %937 = vmatpush1.msra.mxu0 %v913
    %938 = vmatprep.subr.mxu0 0.0
    %939 = vmatpush1.msra.mxu0 %v914
    %940 = vmatprep.subr.mxu0 0.0
    %941 = vmatpush1.msra.mxu0 %v915
    %942 = vmatprep.subr.mxu0 0.0
    %943 = vmatpush1.msra.mxu0 %v916
    %944 = vmatprep.subr.mxu0 0.0
    %945 = vmatpush1.msra.mxu0 %v917
    %946 = vmatprep.subr.mxu0 0.0
    %947 = vmatpush1.msra.mxu0 %v918
    %948 = vmatprep.subr.mxu0 0.0
    %949 = vmatpush1.msra.mxu0 %v919
    %950 = vmatprep.subr.mxu0 0.0
    %951 = vmatpush1.msra.mxu0 %v920
    %952 = vmatprep.subr.mxu0 0.0
    %953 = vmatpush1.msra.mxu0 %v921
    %954 = vmatprep.subr.mxu0 0.0
    %955 = vmatpush1.msra.mxu0 0.0
    %956 = vmatprep.subr.mxu0 0.0
    %957 = vmatpush1.msra.mxu0 0.0
    %958 = vmatprep.subr.mxu0 0.0
    %959 = vmatpush1.msra.mxu0 0.0
    %960 = vmatprep.subr.mxu0 0.0
    %961 = vmatpush1.msra.mxu0 0.0
    %962 = vmatprep.subr.mxu0 0.0
    %963 = vmatpush1.msra.mxu0 0.0
    %964 = vmatprep.subr.mxu0 0.0
    %965 = vmatpush1.msra.mxu0 0.0
    %966 = vmatprep.subr.mxu0 0.0
    %967 = vmatpush1.msra.mxu0 0.0
    %968 = vmatprep.subr.mxu0 0.0
    %969 = vmatpush1.msra.mxu0 0.0
    %970 = vmatprep.subr.mxu0 0.0
    %971 = vmatpush1.msra.mxu0 0.0
    %972 = vmatprep.subr.mxu0 0.0
    %973 = vmatpush1.msra.mxu0 0.0
    %974 = vmatprep.subr.mxu0 0.0
    %975 = vmatpush1.msra.mxu0 0.0
    %976 = vmatprep.subr.mxu0 0.0
    %977 = vmatpush1.msra.mxu0 0.0
    %978 = vmatprep.subr.mxu0 0.0
    %979 = vmatpush1.msra.mxu0 0.0
    %980 = vmatprep.subr.mxu0 0.0
    %981 = vmatpush1.msra.mxu0 0.0
    %982 = vmatprep.subr.mxu0 0.0
    %983 = vmatpush1.msra.mxu0 0.0
    %984 = vmatprep.subr.mxu0 0.0
    %985 = vmatpush1.msra.mxu0 0.0
    %986 = vmatprep.mubr.f32.mxu0 0.0
    %987 = vmatmul.mubr.f32.gmra.mrb[0].mxu0 %v895
    %v988 = vpop.f32.mrb[0].mxu0
    %v989 = vadd.f32 0.0, %v988
    %v990 = vpop.f32.mrb[0].mxu0
    %991 = vdwg.mxu0
    %v992 = vadd.f32 %v905, %v989
    %v993 = vtanh.pop %v992
    %s994 = scalar_lea.vmem [#allocation4], 56
    %995 = vst [vmem:[%s994] sm:$0xff] %v993
    %s996 = sadd.s32 %s310, 7
    %p997 = scmp.eq.s32.totalorder %s996, 7
    // Predicated region
    $region66: #{tpu_custom_call.1} parent=1 // pred_check
      %p998 = pneg %p997
    $region67: #{tpu_custom_call.1} parent=1 // pred_check_branch
      %1000 = sbr.rel (%p998) target = $region69
    $region68: #{tpu_custom_call.1} parent=1 // pred_region
      %1001 = vst [vmem:[#allocation11] sm:$0xff] %v993
    $region69: #{tpu_custom_call.1} parent=1 // pred_fallthru
      _
    %1002 = vst [vmem:[#allocation2] sm:$0xff] %v993
    %v1003 = vld [vmem:[#allocation4] sm:$0xff]
    %v1004 = vld [vmem:[#allocation4 + $0x8] sm:$0xff]
    %v1005 = vld [vmem:[#allocation4 + $0x10] sm:$0xff]
    %v1006 = vld [vmem:[#allocation4 + $0x18] sm:$0xff]
    %v1007 = vld [vmem:[#allocation4 + $0x20] sm:$0xff]
    %v1008 = vld [vmem:[#allocation4 + $0x28] sm:$0xff]
    %v1009 = vld [vmem:[#allocation4 + $0x30] sm:$0xff]
    %v1010 = vld [vmem:[#allocation4 + $0x38] sm:$0xff]
    %v1011 = vld [vmem:[#allocation8] sm:$0xff]
    %v1012 = vld [vmem:[#allocation8 + $0x8] sm:$0xff]
    %v1013 = vld [vmem:[#allocation8 + $0x10] sm:$0xff]
    %v1014 = vld [vmem:[#allocation8 + $0x18] sm:$0xff]
    %v1015 = vld [vmem:[#allocation8 + $0x20] sm:$0xff]
    %v1016 = vld [vmem:[#allocation8 + $0x28] sm:$0xff]
    %v1017 = vld [vmem:[#allocation8 + $0x30] sm:$0xff]
    %v1018 = vld [vmem:[#allocation8 + $0x38] sm:$0xff]
    %v1019 = vld [vmem:[#allocation8 + $0x40] sm:$0xff]
    %v1020 = vld [vmem:[#allocation8 + $0x48] sm:$0xff]
    %v1021 = vld [vmem:[#allocation8 + $0x50] sm:$0xff]
    %v1022 = vld [vmem:[#allocation8 + $0x58] sm:$0xff]
    %v1023 = vld [vmem:[#allocation8 + $0x60] sm:$0xff]
    %v1024 = vld [vmem:[#allocation8 + $0x68] sm:$0xff]
    %v1025 = vld [vmem:[#allocation8 + $0x70] sm:$0xff]
    %v1026 = vld [vmem:[#allocation8 + $0x78] sm:$0xff]
    %v1027 = vld [vmem:[%s5] sm:$0x1]
    %v1029 = vlaneseq
    %v1030 = vshrl.u32 %v1029, 7
    %v1031 = vsub.s32 0, %v1030
    %v1032 = vrot.slane %v1027, %v1031
    %1034 = vmatprep.subr.mxu0 0.0
    %1035 = vmatpush1.msra.mxu0 %v1011
    %1036 = vmatprep.subr.mxu0 0.0
    %1037 = vmatpush1.msra.mxu0 %v1012
    %1038 = vmatprep.subr.mxu0 0.0
    %1039 = vmatpush1.msra.mxu0 %v1013
    %1040 = vmatprep.subr.mxu0 0.0
    %1041 = vmatpush1.msra.mxu0 %v1014
    %1042 = vmatprep.subr.mxu0 0.0
    %1043 = vmatpush1.msra.mxu0 %v1015
    %1044 = vmatprep.subr.mxu0 0.0
    %1045 = vmatpush1.msra.mxu0 %v1016
    %1046 = vmatprep.subr.mxu0 0.0
    %1047 = vmatpush1.msra.mxu0 %v1017
    %1048 = vmatprep.subr.mxu0 0.0
    %1049 = vmatpush1.msra.mxu0 %v1018
    %1050 = vmatprep.subr.mxu0 0.0
    %1051 = vmatpush1.msra.mxu0 %v1019
    %1052 = vmatprep.subr.mxu0 0.0
    %1053 = vmatpush1.msra.mxu0 %v1020
    %1054 = vmatprep.subr.mxu0 0.0
    %1055 = vmatpush1.msra.mxu0 %v1021
    %1056 = vmatprep.subr.mxu0 0.0
    %1057 = vmatpush1.msra.mxu0 %v1022
    %1058 = vmatprep.subr.mxu0 0.0
    %1059 = vmatpush1.msra.mxu0 %v1023
    %1060 = vmatprep.subr.mxu0 0.0
    %1061 = vmatpush1.msra.mxu0 %v1024
    %1062 = vmatprep.subr.mxu0 0.0
    %1063 = vmatpush1.msra.mxu0 %v1025
    %1064 = vmatprep.subr.mxu0 0.0
    %1065 = vmatpush1.msra.mxu0 %v1026
    %1066 = vmatprep.subr.mxu0 0.0
    %1067 = vmatpush1.msra.mxu0 0.0
    %1068 = vmatprep.subr.mxu0 0.0
    %1069 = vmatpush1.msra.mxu0 0.0
    %1070 = vmatprep.subr.mxu0 0.0
    %1071 = vmatpush1.msra.mxu0 0.0
    %1072 = vmatprep.subr.mxu0 0.0
    %1073 = vmatpush1.msra.mxu0 0.0
    %1074 = vmatprep.subr.mxu0 0.0
    %1075 = vmatpush1.msra.mxu0 0.0
    %1076 = vmatprep.subr.mxu0 0.0
    %1077 = vmatpush1.msra.mxu0 0.0
    %1078 = vmatprep.subr.mxu0 0.0
    %1079 = vmatpush1.msra.mxu0 0.0
    %1080 = vmatprep.subr.mxu0 0.0
    %1081 = vmatpush1.msra.mxu0 0.0
    %1082 = vmatprep.subr.mxu0 0.0
    %1083 = vmatpush1.msra.mxu0 0.0
    %1084 = vmatprep.subr.mxu0 0.0
    %1085 = vmatpush1.msra.mxu0 0.0
    %1086 = vmatprep.subr.mxu0 0.0
    %1087 = vmatpush1.msra.mxu0 0.0
    %1088 = vmatprep.subr.mxu0 0.0
    %1089 = vmatpush1.msra.mxu0 0.0
    %1090 = vmatprep.subr.mxu0 0.0
    %1091 = vmatpush1.msra.mxu0 0.0
    %1092 = vmatprep.subr.mxu0 0.0
    %1093 = vmatpush1.msra.mxu0 0.0
    %1094 = vmatprep.subr.mxu0 0.0
    %1095 = vmatpush1.msra.mxu0 0.0
    %1096 = vmatprep.subr.mxu0 0.0
    %1097 = vmatpush1.msra.mxu0 0.0
    %1098 = vmatprep.mubr.f32.mxu0 0.0
    %1099 = vmatmul.mubr.f32.gmra.mrb[0].mxu0 %v1003
    %v1100 = vpop.f32.mrb[0].mxu0
    %v1101 = vadd.f32 %v1032, %v1100
    %v1102 = vpop.f32.mrb[0].mxu0
    %1103 = vmatprep.mubr.f32.mxu0 0.0
    %1104 = vmatmul.mubr.f32.gmra.mrb[0].mxu0 %v1004
    %v1105 = vpop.f32.mrb[0].mxu0
    %v1106 = vadd.f32 %v1032, %v1105
    %v1107 = vpop.f32.mrb[0].mxu0
    %1108 = vmatprep.mubr.f32.mxu0 0.0
    %1109 = vmatmul.mubr.f32.gmra.mrb[0].mxu0 %v1005
    %v1110 = vpop.f32.mrb[0].mxu0
    %v1111 = vadd.f32 %v1032, %v1110
    %v1112 = vpop.f32.mrb[0].mxu0
    %1113 = vmatprep.mubr.f32.mxu0 0.0
    %1114 = vmatmul.mubr.f32.gmra.mrb[0].mxu0 %v1006
    %v1115 = vpop.f32.mrb[0].mxu0
    %v1116 = vadd.f32 %v1032, %v1115
    %v1117 = vpop.f32.mrb[0].mxu0
    %1118 = vmatprep.mubr.f32.mxu0 0.0
    %1119 = vmatmul.mubr.f32.gmra.mrb[0].mxu0 %v1007
    %v1120 = vpop.f32.mrb[0].mxu0
    %v1121 = vadd.f32 %v1032, %v1120
    %v1122 = vpop.f32.mrb[0].mxu0
    %1123 = vmatprep.mubr.f32.mxu0 0.0
    %1124 = vmatmul.mubr.f32.gmra.mrb[0].mxu0 %v1008
    %v1125 = vpop.f32.mrb[0].mxu0
    %v1126 = vadd.f32 %v1032, %v1125
    %v1127 = vpop.f32.mrb[0].mxu0
    %1128 = vmatprep.mubr.f32.mxu0 0.0
    %1129 = vmatmul.mubr.f32.gmra.mrb[0].mxu0 %v1009
    %v1130 = vpop.f32.mrb[0].mxu0
    %v1131 = vadd.f32 %v1032, %v1130
    %v1132 = vpop.f32.mrb[0].mxu0
    %1133 = vmatprep.mubr.f32.mxu0 0.0
    %1134 = vmatmul.mubr.f32.gmra.mrb[0].mxu0 %v1010
    %v1135 = vpop.f32.mrb[0].mxu0
    %v1136 = vadd.f32 %v1032, %v1135
    %v1137 = vpop.f32.mrb[0].mxu0
    %1138 = vdwg.mxu0
    %1139 = vst [vmem:[#allocation10] sm:$0xff] %v1101
    %1140 = vst [vmem:[#allocation10 + $0x8] sm:$0xff] %v1106
    %1141 = vst [vmem:[#allocation10 + $0x10] sm:$0xff] %v1111
    %1142 = vst [vmem:[#allocation10 + $0x18] sm:$0xff] %v1116
    %1143 = vst [vmem:[#allocation10 + $0x20] sm:$0xff] %v1121
    %1144 = vst [vmem:[#allocation10 + $0x28] sm:$0xff] %v1126
    %1145 = vst [vmem:[#allocation10 + $0x30] sm:$0xff] %v1131
    %1146 = vst [vmem:[#allocation10 + $0x38] sm:$0xff] %v1136
    // Predicated region
    $region70: #{tpu_custom_call.1} parent=1 // pred_check
      _
    $region71: #{tpu_custom_call.1} parent=1 // pred_check_branch
      %1148 = sbr.rel (0) target = $region73
    $region72: #{tpu_custom_call.1} parent=1 // pred_region
      %s1150 = ssub.s32 1024, 1024
      %1151 = vsyncadd [#allocation7], %s1150
      %s1152 = sshll.u32 [#allocation10], 4
      %s1153 = int_to_ptr.vmem [resolvable:$true] %s1152
      %1158 = dma.vmem_to_hbm [thread:$0]  %s1153, 1024, %s6, [#allocation7], 128, 128, 8
    $region73: #{tpu_custom_call.1} parent=1 // pred_fallthru
      _
    // Predicated region
    $region74: #{tpu_custom_call.1} parent=1 // pred_check
      _
    $region75: #{tpu_custom_call.1} parent=1 // pred_check_branch
      %1160 = sbr.rel (0) target = $region77
    $region76: #{tpu_custom_call.1} parent=1 // pred_region
      %s1162 = ssub.s32 128, 128
      %1163 = vsyncadd [#allocation12], %s1162
      %s1165 = sshll.u32 [#allocation11], 4
      %s1166 = int_to_ptr.vmem [resolvable:$true] %s1165
      %1168 = dma.vmem_to_hbm [thread:$0]  %s1166, 128, %s7, [#allocation12]
    $region77: #{tpu_custom_call.1} parent=1 // pred_fallthru
      _
    // Predicated region
    $region78: #{tpu_custom_call.1} parent=1 // pred_check
      _
    $region79: #{tpu_custom_call.1} parent=1 // pred_check_branch
      %1170 = sbr.rel (0) target = $region81
    $region80: #{tpu_custom_call.1} parent=1 // pred_region
      %1171 = dma.done [#allocation7], 1024
    $region81: #{tpu_custom_call.1} parent=1 // pred_fallthru
      _
    // Predicated region
    $region82: #{tpu_custom_call.1} parent=1 // pred_check
      _
    $region83: #{tpu_custom_call.1} parent=1 // pred_check_branch
      %1173 = sbr.rel (0) target = $region85
    $region84: #{tpu_custom_call.1} parent=1 // pred_region
      %1174 = dma.done [#allocation12], 128
    $region85: #{tpu_custom_call.1} parent=1 // pred_fallthru
      _
    %1175 = vsyncpa [#allocation6], 1
    %1176 = vsyncpa [#allocation9], 1
    %1177 = vsyncpa [#allocation7], 1
    %1178 = vsyncpa [#allocation12], 1

// kernel: tpu_custom_call.1
$region0: #{tpu_custom_call.1}
  #allocation0 [shape = 'u32[]', space=smem, size = 0x4, offset = 0x4, fixed_abs, tag = 'smem constant byte address 0x4 - core index']
  #allocation1 [shape = 'u32[144,128]{1,0:T(1,128)}', space=vmem, size = 0x12000, scoped, tag = 'internal scratch']
  #allocation2 [shape = 'f32[8,128]{1,0:T(8,128)}', space=vmem, size = 0x1000, scoped, tag = 'scratch operand']
  #allocation3 [shape = 'f32[8,8,128]{2,1,0:T(8,128)}', space=vmem, size = 0x8000, scoped, tag = 'scratch operand']
  #allocation4 [shape = 'f32[8,8,128]{2,1,0:T(8,128)}', space=vmem, size = 0x8000, scoped, tag = 'scratch operand']
  %s0 = inlined_call_operand.vmem [shape: f32[8,8,4], index: 0, kind: input, shape index: {}]
  %s1 = inlined_call_operand.vmem [shape: f32[4,128], index: 1, kind: input, shape index: {}]
  %s2 = inlined_call_operand.hbm [shape: f32[128,128], index: 2, kind: input, shape index: {}]
  %s3 = inlined_call_operand.hbm [shape: f32[128,128], index: 3, kind: input, shape index: {}]
  %s4 = inlined_call_operand.vmem [shape: f32[1,128], index: 4, kind: input, shape index: {}]
  %s5 = inlined_call_operand.vmem [shape: f32[1,128], index: 5, kind: input, shape index: {}]
  %s6 = inlined_call_operand.hbm [shape: f32[8,8,128], index: 6, kind: output, shape index: {0}]
  %s7 = inlined_call_operand.hbm [shape: f32[8,128], index: 7, kind: output, shape index: {1}]
  %8 = xla_tuple %s6, %s7
  %s9 = sld [smem:[#allocation0]]
  $region86: #{tpu_custom_call.1} parent=0
    _
  %s11 = ssub.s32 1, %s9
  %s12 = scalar_select 0, %s11, %s9
  $region1: #{tpu_custom_call.1} parent=0
    #allocation5 [shape = 'u8[65536]{0}', space=vmem, size = 0x10000, scoped, tag = 'input window, operand 2, single buffered']
    #allocation6 [shape = 's32[1]{0}', space=sflag, size = 0x4, scoped, tag = 'scoped memory for tpu_custom_call.1']
    #allocation7 [shape = 's32[1]{0}', space=sflag, size = 0x4, scoped, tag = 'scoped memory for tpu_custom_call.1']
    #allocation8 [shape = 'u8[65536]{0}', space=vmem, size = 0x10000, scoped, tag = 'input window, operand 3, single buffered']
    #allocation9 [shape = 's32[1]{0}', space=sflag, size = 0x4, scoped, tag = 'scoped memory for tpu_custom_call.1']
    #allocation10 [shape = 'u8[32768]{0}', space=vmem, size = 0x8000, scoped, tag = 'output window, operand 0, single buffered']
    #allocation11 [shape = 'u8[4096]{0}', space=vmem, size = 0x1000, scoped, tag = 'output window, operand 1, single buffered']
    #allocation12 [shape = 's32[1]{0}', space=sflag, size = 0x4, scoped, tag = 'scoped memory for tpu_custom_call.1']
    %13 = vsyncpa [#allocation6], 0
    %14 = vsyncpa [#allocation9], 0
    %15 = vsyncpa [#allocation7], 0
    %16 = vsyncpa [#allocation12], 0
    // Predicated region
    $region2: #{tpu_custom_call.1} parent=1 // pred_check
      _
    $region3: #{tpu_custom_call.1} parent=1 // pred_check_branch
      %18 = sbr.rel (0) target = $region5
    $region4: #{tpu_custom_call.1} parent=1 // pred_region
      _
    $region5: #{tpu_custom_call.1} parent=1 // pred_fallthru
      _
    // Predicated region
    $region6: #{tpu_custom_call.1} parent=1 // pred_check
      _
    $region7: #{tpu_custom_call.1} parent=1 // pred_check_branch
      %20 = sbr.rel (0) target = $region9
    $region8: #{tpu_custom_call.1} parent=1 // pred_region
      _
    $region9: #{tpu_custom_call.1} parent=1 // pred_fallthru
      _
    // Predicated region
    $region10: #{tpu_custom_call.1} parent=1 // pred_check
      _
    $region11: #{tpu_custom_call.1} parent=1 // pred_check_branch
      %22 = sbr.rel (0) target = $region13
    $region12: #{tpu_custom_call.1} parent=1 // pred_region
      %s24 = ssub.s32 2048, 2048
      %25 = vsyncadd [#allocation6], %s24
      %s26 = sshll.u32 [#allocation5], 4
      %s27 = int_to_ptr.vmem [resolvable:$true] %s26
      %32 = dma.hbm_to_vmem [thread:$0]  %s2, 2048, %s27, [#allocation6], 128, 128, 8
    $region13: #{tpu_custom_call.1} parent=1 // pred_fallthru
      _
    // Predicated region
    $region14: #{tpu_custom_call.1} parent=1 // pred_check
      _
    $region15: #{tpu_custom_call.1} parent=1 // pred_check_branch
      %34 = sbr.rel (0) target = $region17
    $region16: #{tpu_custom_call.1} parent=1 // pred_region
      %s36 = ssub.s32 2048, 2048
      %37 = vsyncadd [#allocation9], %s36
      %s38 = sshll.u32 [#allocation8], 4
      %s39 = int_to_ptr.vmem [resolvable:$true] %s38
      %44 = dma.hbm_to_vmem [thread:$0]  %s3, 2048, %s39, [#allocation9], 128, 128, 8
    $region17: #{tpu_custom_call.1} parent=1 // pred_fallthru
      _
    // Predicated region
    $region18: #{tpu_custom_call.1} parent=1 // pred_check
      _
    $region19: #{tpu_custom_call.1} parent=1 // pred_check_branch
      %46 = sbr.rel (0) target = $region21
    $region20: #{tpu_custom_call.1} parent=1 // pred_region
      _
    $region21: #{tpu_custom_call.1} parent=1 // pred_fallthru
      _
    // Predicated region
    $region22: #{tpu_custom_call.1} parent=1 // pred_check
      _
    $region23: #{tpu_custom_call.1} parent=1 // pred_check_branch
      %48 = sbr.rel (0) target = $region25
    $region24: #{tpu_custom_call.1} parent=1 // pred_region
      _
    $region25: #{tpu_custom_call.1} parent=1 // pred_fallthru
      _
    // Predicated region
    $region26: #{tpu_custom_call.1} parent=1 // pred_check
      _
    $region27: #{tpu_custom_call.1} parent=1 // pred_check_branch
      %50 = sbr.rel (0) target = $region29
    $region28: #{tpu_custom_call.1} parent=1 // pred_region
      %51 = dma.done [#allocation6], 2048
    $region29: #{tpu_custom_call.1} parent=1 // pred_fallthru
      _
    // Predicated region
    $region30: #{tpu_custom_call.1} parent=1 // pred_check
      _
    $region31: #{tpu_custom_call.1} parent=1 // pred_check_branch
      %53 = sbr.rel (0) target = $region33
    $region32: #{tpu_custom_call.1} parent=1 // pred_region
      %54 = dma.done [#allocation9], 2048
    $region33: #{tpu_custom_call.1} parent=1 // pred_fallthru
      _
    %p55 = scmp.eq.s32.totalorder 0, 0
    // Predicated region
    $region34: #{tpu_custom_call.1} parent=1 // pred_check
      %p56 = pneg %p55
    $region35: #{tpu_custom_call.1} parent=1 // pred_check_branch
      %58 = sbr.rel (%p56) target = $region37
    $region36: #{tpu_custom_call.1} parent=1 // pred_region
      %59 = vst [vmem:[#allocation2] sm:$0xff] 0.0
      %60 = vst [vmem:[#allocation11] sm:$0xff] 0.0
    $region37: #{tpu_custom_call.1} parent=1 // pred_fallthru
      _
    %v61 = vld [vmem:[%s0] sm:$0xff]
    %v62 = vld [vmem:[%s0 + $0x8] sm:$0xff]
    %v63 = vld [vmem:[%s0 + $0x10] sm:$0xff]
    %v64 = vld [vmem:[%s0 + $0x18] sm:$0xff]
    %v65 = vld [vmem:[%s0 + $0x20] sm:$0xff]
    %v66 = vld [vmem:[%s0 + $0x28] sm:$0xff]
    %v67 = vld [vmem:[%s0 + $0x30] sm:$0xff]
    %v68 = vld [vmem:[%s0 + $0x38] sm:$0xff]
    %v69 = vld [vmem:[%s1] sm:$0xf]
    %v70 = vld [vmem:[%s4] sm:$0x1]
    %v72 = vlaneseq
    %v73 = vshrl.u32 %v72, 7
    %v74 = vsub.s32 0, %v73
    %v75 = vrot.slane %v70, %v74
    %vm77 = vcmask 31744
    %v79 = vsel %vm77, %v61, 0
    %v82 = vsel %vm77, %v62, 0
    %v85 = vsel %vm77, %v63, 0
    %v88 = vsel %vm77, %v64, 0
    %v91 = vsel %vm77, %v65, 0
    %v94 = vsel %vm77, %v66, 0
    %v97 = vsel %vm77, %v67, 0
    %v100 = vsel %vm77, %v68, 0
    %vm102 = vcmask 1043456
    %v104 = vsel %vm102, %v69, 0
    %106 = vmatprep.subr.mxu0 0.0
    %107 = vmatpush1.msra.mxu0 %v104
    %108 = vmatprep.subr.mxu0 0.0
    %109 = vmatpush1.msra.mxu0 0.0
    %110 = vmatprep.subr.mxu0 0.0
    %111 = vmatpush1.msra.mxu0 0.0
    %112 = vmatprep.subr.mxu0 0.0
    %113 = vmatpush1.msra.mxu0 0.0
    %114 = vmatprep.subr.mxu0 0.0
    %115 = vmatpush1.msra.mxu0 0.0
    %116 = vmatprep.subr.mxu0 0.0
    %117 = vmatpush1.msra.mxu0 0.0
    %118 = vmatprep.subr.mxu0 0.0
    %119 = vmatpush1.msra.mxu0 0.0
    %120 = vmatprep.subr.mxu0 0.0
    %121 = vmatpush1.msra.mxu0 0.0
    %122 = vmatprep.subr.mxu0 0.0
    %123 = vmatpush1.msra.mxu0 0.0
    %124 = vmatprep.subr.mxu0 0.0
    %125 = vmatpush1.msra.mxu0 0.0
    %126 = vmatprep.subr.mxu0 0.0
    %127 = vmatpush1.msra.mxu0 0.0
    %128 = vmatprep.subr.mxu0 0.0
    %129 = vmatpush1.msra.mxu0 0.0
    %130 = vmatprep.subr.mxu0 0.0
    %131 = vmatpush1.msra.mxu0 0.0
    %132 = vmatprep.subr.mxu0 0.0
    %133 = vmatpush1.msra.mxu0 0.0
    %134 = vmatprep.subr.mxu0 0.0
    %135 = vmatpush1.msra.mxu0 0.0
    %136 = vmatprep.subr.mxu0 0.0
    %137 = vmatpush1.msra.mxu0 0.0
    %138 = vmatprep.subr.mxu0 0.0
    %139 = vmatpush1.msra.mxu0 0.0
    %140 = vmatprep.subr.mxu0 0.0
    %141 = vmatpush1.msra.mxu0 0.0
    %142 = vmatprep.subr.mxu0 0.0
    %143 = vmatpush1.msra.mxu0 0.0
    %144 = vmatprep.subr.mxu0 0.0
    %145 = vmatpush1.msra.mxu0 0.0
    %146 = vmatprep.subr.mxu0 0.0
    %147 = vmatpush1.msra.mxu0 0.0
    %148 = vmatprep.subr.mxu0 0.0
    %149 = vmatpush1.msra.mxu0 0.0
    %150 = vmatprep.subr.mxu0 0.0
    %151 = vmatpush1.msra.mxu0 0.0
    %152 = vmatprep.subr.mxu0 0.0
    %153 = vmatpush1.msra.mxu0 0.0
    %154 = vmatprep.subr.mxu0 0.0
    %155 = vmatpush1.msra.mxu0 0.0
    %156 = vmatprep.subr.mxu0 0.0
    %157 = vmatpush1.msra.mxu0 0.0
    %158 = vmatprep.subr.mxu0 0.0
    %159 = vmatpush1.msra.mxu0 0.0
    %160 = vmatprep.subr.mxu0 0.0
    %161 = vmatpush1.msra.mxu0 0.0
    %162 = vmatprep.subr.mxu0 0.0
    %163 = vmatpush1.msra.mxu0 0.0
    %164 = vmatprep.subr.mxu0 0.0
    %165 = vmatpush1.msra.mxu0 0.0
    %166 = vmatprep.subr.mxu0 0.0
    %167 = vmatpush1.msra.mxu0 0.0
    %168 = vmatprep.subr.mxu0 0.0
    %169 = vmatpush1.msra.mxu0 0.0
    %170 = vmatprep.mubr.f32.mxu0 0.0
    %171 = vmatmul.mubr.f32.gmra.mrb[0].mxu0 %v79
    %v172 = vpop.f32.mrb[0].mxu0
    %v173 = vadd.f32 %v75, %v172
    %v174 = vpop.f32.mrb[0].mxu0
    %175 = vmatprep.mubr.f32.mxu0 0.0
    %176 = vmatmul.mubr.f32.gmra.mrb[0].mxu0 %v82
    %v177 = vpop.f32.mrb[0].mxu0
    %v178 = vadd.f32 %v75, %v177
    %v179 = vpop.f32.mrb[0].mxu0
    %180 = vmatprep.mubr.f32.mxu0 0.0
    %181 = vmatmul.mubr.f32.gmra.mrb[0].mxu0 %v85
    %v182 = vpop.f32.mrb[0].mxu0
    %v183 = vadd.f32 %v75, %v182
    %v184 = vpop.f32.mrb[0].mxu0
    %185 = vmatprep.mubr.f32.mxu0 0.0
    %186 = vmatmul.mubr.f32.gmra.mrb[0].mxu0 %v88
    %v187 = vpop.f32.mrb[0].mxu0
    %v188 = vadd.f32 %v75, %v187
    %v189 = vpop.f32.mrb[0].mxu0
    %190 = vmatprep.mubr.f32.mxu0 0.0
    %191 = vmatmul.mubr.f32.gmra.mrb[0].mxu0 %v91
    %v192 = vpop.f32.mrb[0].mxu0
    %v193 = vadd.f32 %v75, %v192
    %v194 = vpop.f32.mrb[0].mxu0
    %195 = vmatprep.mubr.f32.mxu0 0.0
    %196 = vmatmul.mubr.f32.gmra.mrb[0].mxu0 %v94
    %v197 = vpop.f32.mrb[0].mxu0
    %v198 = vadd.f32 %v75, %v197
    %v199 = vpop.f32.mrb[0].mxu0
    %200 = vmatprep.mubr.f32.mxu0 0.0
    %201 = vmatmul.mubr.f32.gmra.mrb[0].mxu0 %v97
    %v202 = vpop.f32.mrb[0].mxu0
    %v203 = vadd.f32 %v75, %v202
    %v204 = vpop.f32.mrb[0].mxu0
    %205 = vmatprep.mubr.f32.mxu0 0.0
    %206 = vmatmul.mubr.f32.gmra.mrb[0].mxu0 %v100
    %v207 = vpop.f32.mrb[0].mxu0
    %v208 = vadd.f32 %v75, %v207
    %v209 = vpop.f32.mrb[0].mxu0
    %210 = vdwg.mxu0
    %211 = vst [vmem:[#allocation3] sm:$0xff] %v173
    %212 = vst [vmem:[#allocation3 + $0x8] sm:$0xff] %v178
    %213 = vst [vmem:[#allocation3 + $0x10] sm:$0xff] %v183
    %214 = vst [vmem:[#allocation3 + $0x18] sm:$0xff] %v188
    %215 = vst [vmem:[#allocation3 + $0x20] sm:$0xff] %v193
    %216 = vst [vmem:[#allocation3 + $0x28] sm:$0xff] %v198
    %217 = vst [vmem:[#allocation3 + $0x30] sm:$0xff] %v203
    %218 = vst [vmem:[#allocation3 + $0x38] sm:$0xff] %v208
    %v219 = vld [vmem:[#allocation2] sm:$0xff]
    %v220 = vld [vmem:[#allocation3] sm:$0xff]
    %v221 = vld [vmem:[#allocation5] sm:$0xff]
    %v222 = vld [vmem:[#allocation5 + $0x8] sm:$0xff]
    %v223 = vld [vmem:[#allocation5 + $0x10] sm:$0xff]
    %v224 = vld [vmem:[#allocation5 + $0x18] sm:$0xff]
    %v225 = vld [vmem:[#allocation5 + $0x20] sm:$0xff]
    %v226 = vld [vmem:[#allocation5 + $0x28] sm:$0xff]
    %v227 = vld [vmem:[#allocation5 + $0x30] sm:$0xff]
    %v228 = vld [vmem:[#allocation5 + $0x38] sm:$0xff]
    %v229 = vld [vmem:[#allocation5 + $0x40] sm:$0xff]
    %v230 = vld [vmem:[#allocation5 + $0x48] sm:$0xff]
    %v231 = vld [vmem:[#allocation5 + $0x50] sm:$0xff]
    %v232 = vld [vmem:[#allocation5 + $0x58] sm:$0xff]
    %v233 = vld [vmem:[#allocation5 + $0x60] sm:$0xff]
    %v234 = vld [vmem:[#allocation5 + $0x68] sm:$0xff]
    %v235 = vld [vmem:[#allocation5 + $0x70] sm:$0xff]
    %v236 = vld [vmem:[#allocation5 + $0x78] sm:$0xff]
    %237 = vmatprep.subr.mxu0 0.0
    %238 = vmatpush1.msra.mxu0 %v221
    %239 = vmatprep.subr.mxu0 0.0
    %240 = vmatpush1.msra.mxu0 %v222
    %241 = vmatprep.subr.mxu0 0.0
    %242 = vmatpush1.msra.mxu0 %v223
    %243 = vmatprep.subr.mxu0 0.0
    %244 = vmatpush1.msra.mxu0 %v224
    %245 = vmatprep.subr.mxu0 0.0
    %246 = vmatpush1.msra.mxu0 %v225
    %247 = vmatprep.subr.mxu0 0.0
    %248 = vmatpush1.msra.mxu0 %v226
    %249 = vmatprep.subr.mxu0 0.0
    %250 = vmatpush1.msra.mxu0 %v227
    %251 = vmatprep.subr.mxu0 0.0
    %252 = vmatpush1.msra.mxu0 %v228
    %253 = vmatprep.subr.mxu0 0.0
    %254 = vmatpush1.msra.mxu0 %v229
    %255 = vmatprep.subr.mxu0 0.0
    %256 = vmatpush1.msra.mxu0 %v230
    %257 = vmatprep.subr.mxu0 0.0
    %258 = vmatpush1.msra.mxu0 %v231
    %259 = vmatprep.subr.mxu0 0.0
    %260 = vmatpush1.msra.mxu0 %v232
    %261 = vmatprep.subr.mxu0 0.0
    %262 = vmatpush1.msra.mxu0 %v233
    %263 = vmatprep.subr.mxu0 0.0
    %264 = vmatpush1.msra.mxu0 %v234
    %265 = vmatprep.subr.mxu0 0.0
    %266 = vmatpush1.msra.mxu0 %v235
    %267 = vmatprep.subr.mxu0 0.0
    %268 = vmatpush1.msra.mxu0 %v236
    %269 = vmatprep.subr.mxu0 0.0
    %270 = vmatpush1.msra.mxu0 0.0
    %271 = vmatprep.subr.mxu0 0.0
    %272 = vmatpush1.msra.mxu0 0.0
    %273 = vmatprep.subr.mxu0 0.0
    %274 = vmatpush1.msra.mxu0 0.0
    %275 = vmatprep.subr.mxu0 0.0
    %276 = vmatpush1.msra.mxu0 0.0
    %277 = vmatprep.subr.mxu0 0.0
    %278 = vmatpush1.msra.mxu0 0.0
    %279 = vmatprep.subr.mxu0 0.0
    %280 = vmatpush1.msra.mxu0 0.0
    %281 = vmatprep.subr.mxu0 0.0
    %282 = vmatpush1.msra.mxu0 0.0
    %283 = vmatprep.subr.mxu0 0.0
    %284 = vmatpush1.msra.mxu0 0.0
    %285 = vmatprep.subr.mxu0 0.0
    %286 = vmatpush1.msra.mxu0 0.0
    %287 = vmatprep.subr.mxu0 0.0
    %288 = vmatpush1.msra.mxu0 0.0
    %289 = vmatprep.subr.mxu0 0.0
    %290 = vmatpush1.msra.mxu0 0.0
    %291 = vmatprep.subr.mxu0 0.0
    %292 = vmatpush1.msra.mxu0 0.0
    %293 = vmatprep.subr.mxu0 0.0
    %294 = vmatpush1.msra.mxu0 0.0
    %295 = vmatprep.subr.mxu0 0.0
    %296 = vmatpush1.msra.mxu0 0.0
    %297 = vmatprep.subr.mxu0 0.0
    %298 = vmatpush1.msra.mxu0 0.0
    %299 = vmatprep.subr.mxu0 0.0
    %300 = vmatpush1.msra.mxu0 0.0
    %301 = vmatprep.mubr.f32.mxu0 0.0
    %302 = vmatmul.mubr.f32.gmra.mrb[0].mxu0 %v219
    %v303 = vpop.f32.mrb[0].mxu0
    %v304 = vadd.f32 0.0, %v303
    %v305 = vpop.f32.mrb[0].mxu0
    %306 = vdwg.mxu0
    %v307 = vadd.f32 %v220, %v304
    %v308 = vtanh.pop %v307
    %309 = vst [vmem:[#allocation4] sm:$0xff] %v308
    %s310 = smul.u32 0, 8
    %p311 = scmp.eq.s32.totalorder %s310, 7
    // Predicated region
    $region38: #{tpu_custom_call.1} parent=1 // pred_check
      %p312 = pneg %p311
    $region39: #{tpu_custom_call.1} parent=1 // pred_check_branch
      %314 = sbr.rel (%p312) target = $region41
    $region40: #{tpu_custom_call.1} parent=1 // pred_region
      %315 = vst [vmem:[#allocation11] sm:$0xff] %v308
    $region41: #{tpu_custom_call.1} parent=1 // pred_fallthru
      _
    %s316 = scalar_lea.vmem [#allocation3], 8
    %v317 = vld [vmem:[%s316] sm:$0xff]
    %v318 = vld [vmem:[#allocation5] sm:$0xff]
    %v319 = vld [vmem:[#allocation5 + $0x8] sm:$0xff]
    %v320 = vld [vmem:[#allocation5 + $0x10] sm:$0xff]
    %v321 = vld [vmem:[#allocation5 + $0x18] sm:$0xff]
    %v322 = vld [vmem:[#allocation5 + $0x20] sm:$0xff]
    %v323 = vld [vmem:[#allocation5 + $0x28] sm:$0xff]
    %v324 = vld [vmem:[#allocation5 + $0x30] sm:$0xff]
    %v325 = vld [vmem:[#allocation5 + $0x38] sm:$0xff]
    %v326 = vld [vmem:[#allocation5 + $0x40] sm:$0xff]
    %v327 = vld [vmem:[#allocation5 + $0x48] sm:$0xff]
    %v328 = vld [vmem:[#allocation5 + $0x50] sm:$0xff]
    %v329 = vld [vmem:[#allocation5 + $0x58] sm:$0xff]
    %v330 = vld [vmem:[#allocation5 + $0x60] sm:$0xff]
    %v331 = vld [vmem:[#allocation5 + $0x68] sm:$0xff]
    %v332 = vld [vmem:[#allocation5 + $0x70] sm:$0xff]
    %v333 = vld [vmem:[#allocation5 + $0x78] sm:$0xff]
    %334 = vmatprep.subr.mxu0 0.0
    %335 = vmatpush1.msra.mxu0 %v318
    %336 = vmatprep.subr.mxu0 0.0
    %337 = vmatpush1.msra.mxu0 %v319
    %338 = vmatprep.subr.mxu0 0.0
    %339 = vmatpush1.msra.mxu0 %v320
    %340 = vmatprep.subr.mxu0 0.0
    %341 = vmatpush1.msra.mxu0 %v321
    %342 = vmatprep.subr.mxu0 0.0
    %343 = vmatpush1.msra.mxu0 %v322
    %344 = vmatprep.subr.mxu0 0.0
    %345 = vmatpush1.msra.mxu0 %v323
    %346 = vmatprep.subr.mxu0 0.0
    %347 = vmatpush1.msra.mxu0 %v324
    %348 = vmatprep.subr.mxu0 0.0
    %349 = vmatpush1.msra.mxu0 %v325
    %350 = vmatprep.subr.mxu0 0.0
    %351 = vmatpush1.msra.mxu0 %v326
    %352 = vmatprep.subr.mxu0 0.0
    %353 = vmatpush1.msra.mxu0 %v327
    %354 = vmatprep.subr.mxu0 0.0
    %355 = vmatpush1.msra.mxu0 %v328
    %356 = vmatprep.subr.mxu0 0.0
    %357 = vmatpush1.msra.mxu0 %v329
    %358 = vmatprep.subr.mxu0 0.0
    %359 = vmatpush1.msra.mxu0 %v330
    %360 = vmatprep.subr.mxu0 0.0
    %361 = vmatpush1.msra.mxu0 %v331
    %362 = vmatprep.subr.mxu0 0.0
    %363 = vmatpush1.msra.mxu0 %v332
    %364 = vmatprep.subr.mxu0 0.0
    %365 = vmatpush1.msra.mxu0 %v333
    %366 = vmatprep.subr.mxu0 0.0
    %367 = vmatpush1.msra.mxu0 0.0
    %368 = vmatprep.subr.mxu0 0.0
    %369 = vmatpush1.msra.mxu0 0.0
    %370 = vmatprep.subr.mxu0 0.0
    %371 = vmatpush1.msra.mxu0 0.0
    %372 = vmatprep.subr.mxu0 0.0
    %373 = vmatpush1.msra.mxu0 0.0
    %374 = vmatprep.subr.mxu0 0.0
    %375 = vmatpush1.msra.mxu0 0.0
    %376 = vmatprep.subr.mxu0 0.0
    %377 = vmatpush1.msra.mxu0 0.0
    %378 = vmatprep.subr.mxu0 0.0
    %379 = vmatpush1.msra.mxu0 0.0
    %380 = vmatprep.subr.mxu0 0.0
    %381 = vmatpush1.msra.mxu0 0.0
    %382 = vmatprep.subr.mxu0 0.0
    %383 = vmatpush1.msra.mxu0 0.0
    %384 = vmatprep.subr.mxu0 0.0
    %385 = vmatpush1.msra.mxu0 0.0
    %386 = vmatprep.subr.mxu0 0.0
    %387 = vmatpush1.msra.mxu0 0.0
    %388 = vmatprep.subr.mxu0 0.0
    %389 = vmatpush1.msra.mxu0 0.0
    %390 = vmatprep.subr.mxu0 0.0
    %391 = vmatpush1.msra.mxu0 0.0
    %392 = vmatprep.subr.mxu0 0.0
    %393 = vmatpush1.msra.mxu0 0.0
    %394 = vmatprep.subr.mxu0 0.0
    %395 = vmatpush1.msra.mxu0 0.0
    %396 = vmatprep.subr.mxu0 0.0
    %397 = vmatpush1.msra.mxu0 0.0
    %398 = vmatprep.mubr.f32.mxu0 0.0
    %399 = vmatmul.mubr.f32.gmra.mrb[0].mxu0 %v308
    %v400 = vpop.f32.mrb[0].mxu0
    %v401 = vadd.f32 0.0, %v400
    %v402 = vpop.f32.mrb[0].mxu0
    %403 = vdwg.mxu0
    %v404 = vadd.f32 %v317, %v401
    %v405 = vtanh.pop %v404
    %s406 = scalar_lea.vmem [#allocation4], 8
    %407 = vst [vmem:[%s406] sm:$0xff] %v405
    %s408 = sadd.s32 %s310, 1
    %p409 = scmp.eq.s32.totalorder %s408, 7
    // Predicated region
    $region42: #{tpu_custom_call.1} parent=1 // pred_check
      %p410 = pneg %p409
    $region43: #{tpu_custom_call.1} parent=1 // pred_check_branch
      %412 = sbr.rel (%p410) target = $region45
    $region44: #{tpu_custom_call.1} parent=1 // pred_region
      %413 = vst [vmem:[#allocation11] sm:$0xff] %v405
    $region45: #{tpu_custom_call.1} parent=1 // pred_fallthru
      _
    %s414 = scalar_lea.vmem [#allocation3], 16
    %v415 = vld [vmem:[%s414] sm:$0xff]
    %v416 = vld [vmem:[#allocation5] sm:$0xff]
    %v417 = vld [vmem:[#allocation5 + $0x8] sm:$0xff]
    %v418 = vld [vmem:[#allocation5 + $0x10] sm:$0xff]
    %v419 = vld [vmem:[#allocation5 + $0x18] sm:$0xff]
    %v420 = vld [vmem:[#allocation5 + $0x20] sm:$0xff]
    %v421 = vld [vmem:[#allocation5 + $0x28] sm:$0xff]
    %v422 = vld [vmem:[#allocation5 + $0x30] sm:$0xff]
    %v423 = vld [vmem:[#allocation5 + $0x38] sm:$0xff]
    %v424 = vld [vmem:[#allocation5 + $0x40] sm:$0xff]
    %v425 = vld [vmem:[#allocation5 + $0x48] sm:$0xff]
    %v426 = vld [vmem:[#allocation5 + $0x50] sm:$0xff]
    %v427 = vld [vmem:[#allocation5 + $0x58] sm:$0xff]
    %v428 = vld [vmem:[#allocation5 + $0x60] sm:$0xff]
    %v429 = vld [vmem:[#allocation5 + $0x68] sm:$0xff]
    %v430 = vld [vmem:[#allocation5 + $0x70] sm:$0xff]
    %v431 = vld [vmem:[#allocation5 + $0x78] sm:$0xff]
    %432 = vmatprep.subr.mxu0 0.0
    %433 = vmatpush1.msra.mxu0 %v416
    %434 = vmatprep.subr.mxu0 0.0
    %435 = vmatpush1.msra.mxu0 %v417
    %436 = vmatprep.subr.mxu0 0.0
    %437 = vmatpush1.msra.mxu0 %v418
    %438 = vmatprep.subr.mxu0 0.0
    %439 = vmatpush1.msra.mxu0 %v419
    %440 = vmatprep.subr.mxu0 0.0
    %441 = vmatpush1.msra.mxu0 %v420
    %442 = vmatprep.subr.mxu0 0.0
    %443 = vmatpush1.msra.mxu0 %v421
    %444 = vmatprep.subr.mxu0 0.0
    %445 = vmatpush1.msra.mxu0 %v422
    %446 = vmatprep.subr.mxu0 0.0
    %447 = vmatpush1.msra.mxu0 %v423
    %448 = vmatprep.subr.mxu0 0.0
    %449 = vmatpush1.msra.mxu0 %v424
    %450 = vmatprep.subr.mxu0 0.0
    %451 = vmatpush1.msra.mxu0 %v425
    %452 = vmatprep.subr.mxu0 0.0
    %453 = vmatpush1.msra.mxu0 %v426
    %454 = vmatprep.subr.mxu0 0.0
    %455 = vmatpush1.msra.mxu0 %v427
    %456 = vmatprep.subr.mxu0 0.0
    %457 = vmatpush1.msra.mxu0 %v428
    %458 = vmatprep.subr.mxu0 0.0
    %459 = vmatpush1.msra.mxu0 %v429
    %460 = vmatprep.subr.mxu0 0.0
    %461 = vmatpush1.msra.mxu0 %v430
    %462 = vmatprep.subr.mxu0 0.0
    %463 = vmatpush1.msra.mxu0 %v431
    %464 = vmatprep.subr.mxu0 0.0
    %465 = vmatpush1.msra.mxu0 0.0
    %466 = vmatprep.subr.mxu0 0.0
    %467 = vmatpush1.msra.mxu0 0.0
    %468 = vmatprep.subr.mxu0 0.0
    %469 = vmatpush1.msra.mxu0 0.0
    %470 = vmatprep.subr.mxu0 0.0
    %471 = vmatpush1.msra.mxu0 0.0
    %472 = vmatprep.subr.mxu0 0.0
    %473 = vmatpush1.msra.mxu0 0.0
    %474 = vmatprep.subr.mxu0 0.0
    %475 = vmatpush1.msra.mxu0 0.0
    %476 = vmatprep.subr.mxu0 0.0
    %477 = vmatpush1.msra.mxu0 0.0
    %478 = vmatprep.subr.mxu0 0.0
    %479 = vmatpush1.msra.mxu0 0.0
    %480 = vmatprep.subr.mxu0 0.0
    %481 = vmatpush1.msra.mxu0 0.0
    %482 = vmatprep.subr.mxu0 0.0
    %483 = vmatpush1.msra.mxu0 0.0
    %484 = vmatprep.subr.mxu0 0.0
    %485 = vmatpush1.msra.mxu0 0.0
    %486 = vmatprep.subr.mxu0 0.0
    %487 = vmatpush1.msra.mxu0 0.0
    %488 = vmatprep.subr.mxu0 0.0
    %489 = vmatpush1.msra.mxu0 0.0
    %490 = vmatprep.subr.mxu0 0.0
    %491 = vmatpush1.msra.mxu0 0.0
    %492 = vmatprep.subr.mxu0 0.0
    %493 = vmatpush1.msra.mxu0 0.0
    %494 = vmatprep.subr.mxu0 0.0
    %495 = vmatpush1.msra.mxu0 0.0
    %496 = vmatprep.mubr.f32.mxu0 0.0
    %497 = vmatmul.mubr.f32.gmra.mrb[0].mxu0 %v405
    %v498 = vpop.f32.mrb[0].mxu0
    %v499 = vadd.f32 0.0, %v498
    %v500 = vpop.f32.mrb[0].mxu0
    %501 = vdwg.mxu0
    %v502 = vadd.f32 %v415, %v499
    %v503 = vtanh.pop %v502
    %s504 = scalar_lea.vmem [#allocation4], 16
    %505 = vst [vmem:[%s504] sm:$0xff] %v503
    %s506 = sadd.s32 %s310, 2
    %p507 = scmp.eq.s32.totalorder %s506, 7
    // Predicated region
    $region46: #{tpu_custom_call.1} parent=1 // pred_check
      %p508 = pneg %p507
    $region47: #{tpu_custom_call.1} parent=1 // pred_check_branch
      %510 = sbr.rel (%p508) target = $region49
    $region48: #{tpu_custom_call.1} parent=1 // pred_region
      %511 = vst [vmem:[#allocation11] sm:$0xff] %v503
    $region49: #{tpu_custom_call.1} parent=1 // pred_fallthru
      _
    %s512 = scalar_lea.vmem [#allocation3], 24
    %v513 = vld [vmem:[%s512] sm:$0xff]
    %v514 = vld [vmem:[#allocation5] sm:$0xff]
    %v515 = vld [vmem:[#allocation5 + $0x8] sm:$0xff]
    %v516 = vld [vmem:[#allocation5 + $0x10] sm:$0xff]
    %v517 = vld [vmem:[#allocation5 + $0x18] sm:$0xff]
    %v518 = vld [vmem:[#allocation5 + $0x20] sm:$0xff]
    %v519 = vld [vmem:[#allocation5 + $0x28] sm:$0xff]
    %v520 = vld [vmem:[#allocation5 + $0x30] sm:$0xff]
    %v521 = vld [vmem:[#allocation5 + $0x38] sm:$0xff]
    %v522 = vld [vmem:[#allocation5 + $0x40] sm:$0xff]
    %v523 = vld [vmem:[#allocation5 + $0x48] sm:$0xff]
    %v524 = vld [vmem:[#allocation5 + $0x50] sm:$0xff]
    %v525 = vld [vmem:[#allocation5 + $0x58] sm:$0xff]
    %v526 = vld [vmem:[#allocation5 + $0x60] sm:$0xff]
    %v527 = vld [vmem:[#allocation5 + $0x68] sm:$0xff]
    %v528 = vld [vmem:[#allocation5 + $0x70] sm:$0xff]
    %v529 = vld [vmem:[#allocation5 + $0x78] sm:$0xff]
    %530 = vmatprep.subr.mxu0 0.0
    %531 = vmatpush1.msra.mxu0 %v514
    %532 = vmatprep.subr.mxu0 0.0
    %533 = vmatpush1.msra.mxu0 %v515
    %534 = vmatprep.subr.mxu0 0.0
    %535 = vmatpush1.msra.mxu0 %v516
    %536 = vmatprep.subr.mxu0 0.0
    %537 = vmatpush1.msra.mxu0 %v517
    %538 = vmatprep.subr.mxu0 0.0
    %539 = vmatpush1.msra.mxu0 %v518
    %540 = vmatprep.subr.mxu0 0.0
    %541 = vmatpush1.msra.mxu0 %v519
    %542 = vmatprep.subr.mxu0 0.0
    %543 = vmatpush1.msra.mxu0 %v520
    %544 = vmatprep.subr.mxu0 0.0
    %545 = vmatpush1.msra.mxu0 %v521
    %546 = vmatprep.subr.mxu0 0.0
    %547 = vmatpush1.msra.mxu0 %v522
    %548 = vmatprep.subr.mxu0 0.0
    %549 = vmatpush1.msra.mxu0 %v523
    %550 = vmatprep.subr.mxu0 0.0
    %551 = vmatpush1.msra.mxu0 %v524
    %552 = vmatprep.subr.mxu0 0.0
    %553 = vmatpush1.msra.mxu0 %v525
    %554 = vmatprep.subr.mxu0 0.0
    %555 = vmatpush1.msra.mxu0 %v526
    %556 = vmatprep.subr.mxu0 0.0
    %557 = vmatpush1.msra.mxu0 %v527
    %558 = vmatprep.subr.mxu0 0.0
    %559 = vmatpush1.msra.mxu0 %v528
    %560 = vmatprep.subr.mxu0 0.0
    %561 = vmatpush1.msra.mxu0 %v529
    %562 = vmatprep.subr.mxu0 0.0
    %563 = vmatpush1.msra.mxu0 0.0
    %564 = vmatprep.subr.mxu0 0.0
    %565 = vmatpush1.msra.mxu0 0.0
    %566 = vmatprep.subr.mxu0 0.0
    %567 = vmatpush1.msra.mxu0 0.0
    %568 = vmatprep.subr.mxu0 0.0
    %569 = vmatpush1.msra.mxu0 0.0
    %570 = vmatprep.subr.mxu0 0.0
    %571 = vmatpush1.msra.mxu0 0.0
    %572 = vmatprep.subr.mxu0 0.0
    %573 = vmatpush1.msra.mxu0 0.0
    %574 = vmatprep.subr.mxu0 0.0
    %575 = vmatpush1.msra.mxu0 0.0
    %576 = vmatprep.subr.mxu0 0.0
    %577 = vmatpush1.msra.mxu0 0.0
    %578 = vmatprep.subr.mxu0 0.0
    %579 = vmatpush1.msra.mxu0 0.0
    %580 = vmatprep.subr.mxu0 0.0
    %581 = vmatpush1.msra.mxu0 0.0
    %582 = vmatprep.subr.mxu0 0.0
    %583 = vmatpush1.msra.mxu0 0.0
    %584 = vmatprep.subr.mxu0 0.0
    %585 = vmatpush1.msra.mxu0 0.0
    %586 = vmatprep.subr.mxu0 0.0
    %587 = vmatpush1.msra.mxu0 0.0
    %588 = vmatprep.subr.mxu0 0.0
    %589 = vmatpush1.msra.mxu0 0.0
    %590 = vmatprep.subr.mxu0 0.0
    %591 = vmatpush1.msra.mxu0 0.0
    %592 = vmatprep.subr.mxu0 0.0
    %593 = vmatpush1.msra.mxu0 0.0
    %594 = vmatprep.mubr.f32.mxu0 0.0
    %595 = vmatmul.mubr.f32.gmra.mrb[0].mxu0 %v503
    %v596 = vpop.f32.mrb[0].mxu0
    %v597 = vadd.f32 0.0, %v596
    %v598 = vpop.f32.mrb[0].mxu0
    %599 = vdwg.mxu0
    %v600 = vadd.f32 %v513, %v597
    %v601 = vtanh.pop %v600
    %s602 = scalar_lea.vmem [#allocation4], 24
    %603 = vst [vmem:[%s602] sm:$0xff] %v601
    %s604 = sadd.s32 %s310, 3
    %p605 = scmp.eq.s32.totalorder %s604, 7
    // Predicated region
    $region50: #{tpu_custom_call.1} parent=1 // pred_check
      %p606 = pneg %p605
    $region51: #{tpu_custom_call.1} parent=1 // pred_check_branch
      %608 = sbr.rel (%p606) target = $region53
    $region52: #{tpu_custom_call.1} parent=1 // pred_region
      %609 = vst [vmem:[#allocation11] sm:$0xff] %v601
    $region53: #{tpu_custom_call.1} parent=1 // pred_fallthru
      _
    %s610 = scalar_lea.vmem [#allocation3], 32
    %v611 = vld [vmem:[%s610] sm:$0xff]
    %v612 = vld [vmem:[#allocation5] sm:$0xff]
    %v613 = vld [vmem:[#allocation5 + $0x8] sm:$0xff]
    %v614 = vld [vmem:[#allocation5 + $0x10] sm:$0xff]
    %v615 = vld [vmem:[#allocation5 + $0x18] sm:$0xff]
    %v616 = vld [vmem:[#allocation5 + $0x20] sm:$0xff]
    %v617 = vld [vmem:[#allocation5 + $0x28] sm:$0xff]
    %v618 = vld [vmem:[#allocation5 + $0x30] sm:$0xff]
    %v619 = vld [vmem:[#allocation5 + $0x38] sm:$0xff]
    %v620 = vld [vmem:[#allocation5 + $0x40] sm:$0xff]
    %v621 = vld [vmem:[#allocation5 + $0x48] sm:$0xff]
    %v622 = vld [vmem:[#allocation5 + $0x50] sm:$0xff]
    %v623 = vld [vmem:[#allocation5 + $0x58] sm:$0xff]
    %v624 = vld [vmem:[#allocation5 + $0x60] sm:$0xff]
    %v625 = vld [vmem:[#allocation5 + $0x68] sm:$0xff]
    %v626 = vld [vmem:[#allocation5 + $0x70] sm:$0xff]
    %v627 = vld [vmem:[#allocation5 + $0x78] sm:$0xff]
    %628 = vmatprep.subr.mxu0 0.0
    %629 = vmatpush1.msra.mxu0 %v612
    %630 = vmatprep.subr.mxu0 0.0
    %631 = vmatpush1.msra.mxu0 %v613
    %632 = vmatprep.subr.mxu0 0.0
    %633 = vmatpush1.msra.mxu0 %v614
    %634 = vmatprep.subr.mxu0 0.0
    %635 = vmatpush1.msra.mxu0 %v615
    %636 = vmatprep.subr.mxu0 0.0
    %637 = vmatpush1.msra.mxu0 %v616
    %638 = vmatprep.subr.mxu0 0.0
    %639 = vmatpush1.msra.mxu0 %v617
    %640 = vmatprep.subr.mxu0 0.0
    %641 = vmatpush1.msra.mxu0 %v618
    %642 = vmatprep.subr.mxu0 0.0
    %643 = vmatpush1.msra.mxu0 %v619
    %644 = vmatprep.subr.mxu0 0.0
    %645 = vmatpush1.msra.mxu0 %v620
    %646 = vmatprep.subr.mxu0 0.0
    %647 = vmatpush1.msra.mxu0 %v621
    %648 = vmatprep.subr.mxu0 0.0
    %649 = vmatpush1.msra.mxu0 %v622
    %650 = vmatprep.subr.mxu0 0.0
    %651 = vmatpush1.msra.mxu0 %v623
    %652 = vmatprep.subr.mxu0 0.0
    %653 = vmatpush1.msra.mxu0 %v624
    %654 = vmatprep.subr.mxu0 0.0
    %655 = vmatpush1.msra.mxu0 %v625
    %656 = vmatprep.subr.mxu0 0.0
    %657 = vmatpush1.msra.mxu0 %v626
    %658 = vmatprep.subr.mxu0 0.0
    %659 = vmatpush1.msra.mxu0 %v627
    %660 = vmatprep.subr.mxu0 0.0
    %661 = vmatpush1.msra.mxu0 0.0
    %662 = vmatprep.subr.mxu0 0.0
    %663 = vmatpush1.msra.mxu0 0.0
    %664 = vmatprep.subr.mxu0 0.0
    %665 = vmatpush1.msra.mxu0 0.0
    %666 = vmatprep.subr.mxu0 0.0
    %667 = vmatpush1.msra.mxu0 0.0
    %668 = vmatprep.subr.mxu0 0.0
    %669 = vmatpush1.msra.mxu0 0.0
    %670 = vmatprep.subr.mxu0 0.0
    %671 = vmatpush1.msra.mxu0 0.0
    %672 = vmatprep.subr.mxu0 0.0
    %673 = vmatpush1.msra.mxu0 0.0
    %674 = vmatprep.subr.mxu0 0.0
    %675 = vmatpush1.msra.mxu0 0.0
    %676 = vmatprep.subr.mxu0 0.0
    %677 = vmatpush1.msra.mxu0 0.0
    %678 = vmatprep.subr.mxu0 0.0
    %679 = vmatpush1.msra.mxu0 0.0
    %680 = vmatprep.subr.mxu0 0.0
    %681 = vmatpush1.msra.mxu0 0.0
    %682 = vmatprep.subr.mxu0 0.0
    %683 = vmatpush1.msra.mxu0 0.0
    %684 = vmatprep.subr.mxu0 0.0
    %685 = vmatpush1.msra.mxu0 0.0
    %686 = vmatprep.subr.mxu0 0.0
    %687 = vmatpush1.msra.mxu0 0.0
    %688 = vmatprep.subr.mxu0 0.0
    %689 = vmatpush1.msra.mxu0 0.0
    %690 = vmatprep.subr.mxu0 0.0
    %691 = vmatpush1.msra.mxu0 0.0
    %692 = vmatprep.mubr.f32.mxu0 0.0
    %693 = vmatmul.mubr.f32.gmra.mrb[0].mxu0 %v601
    %v694 = vpop.f32.mrb[0].mxu0
    %v695 = vadd.f32 0.0, %v694
    %v696 = vpop.f32.mrb[0].mxu0
    %697 = vdwg.mxu0
    %v698 = vadd.f32 %v611, %v695
    %v699 = vtanh.pop %v698
    %s700 = scalar_lea.vmem [#allocation4], 32
    %701 = vst [vmem:[%s700] sm:$0xff] %v699
    %s702 = sadd.s32 %s310, 4
    %p703 = scmp.eq.s32.totalorder %s702, 7
    // Predicated region
    $region54: #{tpu_custom_call.1} parent=1 // pred_check
      %p704 = pneg %p703
    $region55: #{tpu_custom_call.1} parent=1 // pred_check_branch
      %706 = sbr.rel (%p704) target = $region57
    $region56: #{tpu_custom_call.1} parent=1 // pred_region
      %707 = vst [vmem:[#allocation11] sm:$0xff] %v699
    $region57: #{tpu_custom_call.1} parent=1 // pred_fallthru
      _
    %s708 = scalar_lea.vmem [#allocation3], 40
    %v709 = vld [vmem:[%s708] sm:$0xff]
    %v710 = vld [vmem:[#allocation5] sm:$0xff]
    %v711 = vld [vmem:[#allocation5 + $0x8] sm:$0xff]
    %v712 = vld [vmem:[#allocation5 + $0x10] sm:$0xff]
    %v713 = vld [vmem:[#allocation5 + $0x18] sm:$0xff]
    %v714 = vld [vmem:[#allocation5 + $0x20] sm:$0xff]
    %v715 = vld [vmem:[#allocation5 + $0x28] sm:$0xff]
    %v716 = vld [vmem:[#allocation5 + $0x30] sm:$0xff]
    %v717 = vld [vmem:[#allocation5 + $0x38] sm:$0xff]
    %v718 = vld [vmem:[#allocation5 + $0x40] sm:$0xff]
    %v719 = vld [vmem:[#allocation5 + $0x48] sm:$0xff]
    %v720 = vld [vmem:[#allocation5 + $0x50] sm:$0xff]
    %v721 = vld [vmem:[#allocation5 + $0x58] sm:$0xff]
    %v722 = vld [vmem:[#allocation5 + $0x60] sm:$0xff]
    %v723 = vld [vmem:[#allocation5 + $0x68] sm:$0xff]
    %v724 = vld [vmem:[#allocation5 + $0x70] sm:$0xff]
    %v725 = vld [vmem:[#allocation5 + $0x78] sm:$0xff]
    %726 = vmatprep.subr.mxu0 0.0
    %727 = vmatpush1.msra.mxu0 %v710
    %728 = vmatprep.subr.mxu0 0.0
    %729 = vmatpush1.msra.mxu0 %v711
    %730 = vmatprep.subr.mxu0 0.0
    %731 = vmatpush1.msra.mxu0 %v712
    %732 = vmatprep.subr.mxu0 0.0
    %733 = vmatpush1.msra.mxu0 %v713
    %734 = vmatprep.subr.mxu0 0.0
    %735 = vmatpush1.msra.mxu0 %v714
    %736 = vmatprep.subr.mxu0 0.0
    %737 = vmatpush1.msra.mxu0 %v715
    %738 = vmatprep.subr.mxu0 0.0
    %739 = vmatpush1.msra.mxu0 %v716
    %740 = vmatprep.subr.mxu0 0.0
    %741 = vmatpush1.msra.mxu0 %v717
    %742 = vmatprep.subr.mxu0 0.0
    %743 = vmatpush1.msra.mxu0 %v718
    %744 = vmatprep.subr.mxu0 0.0
    %745 = vmatpush1.msra.mxu0 %v719
    %746 = vmatprep.subr.mxu0 0.0
    %747 = vmatpush1.msra.mxu0 %v720
    %748 = vmatprep.subr.mxu0 0.0
    %749 = vmatpush1.msra.mxu0 %v721
    %750 = vmatprep.subr.mxu0 0.0
    %751 = vmatpush1.msra.mxu0 %v722
    %752 = vmatprep.subr.mxu0 0.0
    %753 = vmatpush1.msra.mxu0 %v723
    %754 = vmatprep.subr.mxu0 0.0
    %755 = vmatpush1.msra.mxu0 %v724
    %756 = vmatprep.subr.mxu0 0.0
    %757 = vmatpush1.msra.mxu0 %v725
    %758 = vmatprep.subr.mxu0 0.0
    %759 = vmatpush1.msra.mxu0 0.0
    %760 = vmatprep.subr.mxu0 0.0
    %761 = vmatpush1.msra.mxu0 0.0
    %762 = vmatprep.subr.mxu0 0.0
    %763 = vmatpush1.msra.mxu0 0.0
    %764 = vmatprep.subr.mxu0 0.0
    %765 = vmatpush1.msra.mxu0 0.0
    %766 = vmatprep.subr.mxu0 0.0
    %767 = vmatpush1.msra.mxu0 0.0
    %768 = vmatprep.subr.mxu0 0.0
    %769 = vmatpush1.msra.mxu0 0.0
    %770 = vmatprep.subr.mxu0 0.0
    %771 = vmatpush1.msra.mxu0 0.0
    %772 = vmatprep.subr.mxu0 0.0
    %773 = vmatpush1.msra.mxu0 0.0
    %774 = vmatprep.subr.mxu0 0.0
    %775 = vmatpush1.msra.mxu0 0.0
    %776 = vmatprep.subr.mxu0 0.0
    %777 = vmatpush1.msra.mxu0 0.0
    %778 = vmatprep.subr.mxu0 0.0
    %779 = vmatpush1.msra.mxu0 0.0
    %780 = vmatprep.subr.mxu0 0.0
    %781 = vmatpush1.msra.mxu0 0.0
    %782 = vmatprep.subr.mxu0 0.0
    %783 = vmatpush1.msra.mxu0 0.0
    %784 = vmatprep.subr.mxu0 0.0
    %785 = vmatpush1.msra.mxu0 0.0
    %786 = vmatprep.subr.mxu0 0.0
    %787 = vmatpush1.msra.mxu0 0.0
    %788 = vmatprep.subr.mxu0 0.0
    %789 = vmatpush1.msra.mxu0 0.0
    %790 = vmatprep.mubr.f32.mxu0 0.0
    %791 = vmatmul.mubr.f32.gmra.mrb[0].mxu0 %v699
    %v792 = vpop.f32.mrb[0].mxu0
    %v793 = vadd.f32 0.0, %v792
    %v794 = vpop.f32.mrb[0].mxu0
    %795 = vdwg.mxu0
    %v796 = vadd.f32 %v709, %v793
    %v797 = vtanh.pop %v796
    %s798 = scalar_lea.vmem [#allocation4], 40
    %799 = vst [vmem:[%s798] sm:$0xff] %v797
    %s800 = sadd.s32 %s310, 5
    %p801 = scmp.eq.s32.totalorder %s800, 7
    // Predicated region
    $region58: #{tpu_custom_call.1} parent=1 // pred_check
      %p802 = pneg %p801
    $region59: #{tpu_custom_call.1} parent=1 // pred_check_branch
      %804 = sbr.rel (%p802) target = $region61
    $region60: #{tpu_custom_call.1} parent=1 // pred_region
      %805 = vst [vmem:[#allocation11] sm:$0xff] %v797
    $region61: #{tpu_custom_call.1} parent=1 // pred_fallthru
      _
    %s806 = scalar_lea.vmem [#allocation3], 48
    %v807 = vld [vmem:[%s806] sm:$0xff]
    %v808 = vld [vmem:[#allocation5] sm:$0xff]
    %v809 = vld [vmem:[#allocation5 + $0x8] sm:$0xff]
    %v810 = vld [vmem:[#allocation5 + $0x10] sm:$0xff]
    %v811 = vld [vmem:[#allocation5 + $0x18] sm:$0xff]
    %v812 = vld [vmem:[#allocation5 + $0x20] sm:$0xff]
    %v813 = vld [vmem:[#allocation5 + $0x28] sm:$0xff]
    %v814 = vld [vmem:[#allocation5 + $0x30] sm:$0xff]
    %v815 = vld [vmem:[#allocation5 + $0x38] sm:$0xff]
    %v816 = vld [vmem:[#allocation5 + $0x40] sm:$0xff]
    %v817 = vld [vmem:[#allocation5 + $0x48] sm:$0xff]
    %v818 = vld [vmem:[#allocation5 + $0x50] sm:$0xff]
    %v819 = vld [vmem:[#allocation5 + $0x58] sm:$0xff]
    %v820 = vld [vmem:[#allocation5 + $0x60] sm:$0xff]
    %v821 = vld [vmem:[#allocation5 + $0x68] sm:$0xff]
    %v822 = vld [vmem:[#allocation5 + $0x70] sm:$0xff]
    %v823 = vld [vmem:[#allocation5 + $0x78] sm:$0xff]
    %824 = vmatprep.subr.mxu0 0.0
    %825 = vmatpush1.msra.mxu0 %v808
    %826 = vmatprep.subr.mxu0 0.0
    %827 = vmatpush1.msra.mxu0 %v809
    %828 = vmatprep.subr.mxu0 0.0
    %829 = vmatpush1.msra.mxu0 %v810
    %830 = vmatprep.subr.mxu0 0.0
    %831 = vmatpush1.msra.mxu0 %v811
    %832 = vmatprep.subr.mxu0 0.0
    %833 = vmatpush1.msra.mxu0 %v812
    %834 = vmatprep.subr.mxu0 0.0
    %835 = vmatpush1.msra.mxu0 %v813
    %836 = vmatprep.subr.mxu0 0.0
    %837 = vmatpush1.msra.mxu0 %v814
    %838 = vmatprep.subr.mxu0 0.0
    %839 = vmatpush1.msra.mxu0 %v815
    %840 = vmatprep.subr.mxu0 0.0
    %841 = vmatpush1.msra.mxu0 %v816
    %842 = vmatprep.subr.mxu0 0.0
    %843 = vmatpush1.msra.mxu0 %v817
    %844 = vmatprep.subr.mxu0 0.0
    %845 = vmatpush1.msra.mxu0 %v818
    %846 = vmatprep.subr.mxu0 0.0
    %847 = vmatpush1.msra.mxu0 %v819
    %848 = vmatprep.subr.mxu0 0.0
    %849 = vmatpush1.msra.mxu0 %v820
    %850 = vmatprep.subr.mxu0 0.0
    %851 = vmatpush1.msra.mxu0 %v821
    %852 = vmatprep.subr.mxu0 0.0
    %853 = vmatpush1.msra.mxu0 %v822
    %854 = vmatprep.subr.mxu0 0.0
    %855 = vmatpush1.msra.mxu0 %v823
    %856 = vmatprep.subr.mxu0 0.0
    %857 = vmatpush1.msra.mxu0 0.0
    %858 = vmatprep.subr.mxu0 0.0
    %859 = vmatpush1.msra.mxu0 0.0
    %860 = vmatprep.subr.mxu0 0.0
    %861 = vmatpush1.msra.mxu0 0.0
    %862 = vmatprep.subr.mxu0 0.0
    %863 = vmatpush1.msra.mxu0 0.0
    %864 = vmatprep.subr.mxu0 0.0
    %865 = vmatpush1.msra.mxu0 0.0
    %866 = vmatprep.subr.mxu0 0.0
    %867 = vmatpush1.msra.mxu0 0.0
    %868 = vmatprep.subr.mxu0 0.0
    %869 = vmatpush1.msra.mxu0 0.0
    %870 = vmatprep.subr.mxu0 0.0
    %871 = vmatpush1.msra.mxu0 0.0
    %872 = vmatprep.subr.mxu0 0.0
    %873 = vmatpush1.msra.mxu0 0.0
    %874 = vmatprep.subr.mxu0 0.0
    %875 = vmatpush1.msra.mxu0 0.0
    %876 = vmatprep.subr.mxu0 0.0
    %877 = vmatpush1.msra.mxu0 0.0
    %878 = vmatprep.subr.mxu0 0.0
    %879 = vmatpush1.msra.mxu0 0.0
    %880 = vmatprep.subr.mxu0 0.0
    %881 = vmatpush1.msra.mxu0 0.0
    %882 = vmatprep.subr.mxu0 0.0
    %883 = vmatpush1.msra.mxu0 0.0
    %884 = vmatprep.subr.mxu0 0.0
    %885 = vmatpush1.msra.mxu0 0.0
    %886 = vmatprep.subr.mxu0 0.0
    %887 = vmatpush1.msra.mxu0 0.0
    %888 = vmatprep.mubr.f32.mxu0 0.0
    %889 = vmatmul.mubr.f32.gmra.mrb[0].mxu0 %v797
    %v890 = vpop.f32.mrb[0].mxu0
    %v891 = vadd.f32 0.0, %v890
    %v892 = vpop.f32.mrb[0].mxu0
    %893 = vdwg.mxu0
    %v894 = vadd.f32 %v807, %v891
    %v895 = vtanh.pop %v894
    %s896 = scalar_lea.vmem [#allocation4], 48
    %897 = vst [vmem:[%s896] sm:$0xff] %v895
    %s898 = sadd.s32 %s310, 6
    %p899 = scmp.eq.s32.totalorder %s898, 7
    // Predicated region
    $region62: #{tpu_custom_call.1} parent=1 // pred_check
      %p900 = pneg %p899
    $region63: #{tpu_custom_call.1} parent=1 // pred_check_branch
      %902 = sbr.rel (%p900) target = $region65
    $region64: #{tpu_custom_call.1} parent=1 // pred_region
      %903 = vst [vmem:[#allocation11] sm:$0xff] %v895
    $region65: #{tpu_custom_call.1} parent=1 // pred_fallthru
      _
    %s904 = scalar_lea.vmem [#allocation3], 56
    %v905 = vld [vmem:[%s904] sm:$0xff]
    %v906 = vld [vmem:[#allocation5] sm:$0xff]
    %v907 = vld [vmem:[#allocation5 + $0x8] sm:$0xff]
    %v908 = vld [vmem:[#allocation5 + $0x10] sm:$0xff]
    %v909 = vld [vmem:[#allocation5 + $0x18] sm:$0xff]
    %v910 = vld [vmem:[#allocation5 + $0x20] sm:$0xff]
    %v911 = vld [vmem:[#allocation5 + $0x28] sm:$0xff]
    %v912 = vld [vmem:[#allocation5 + $0x30] sm:$0xff]
    %v913 = vld [vmem:[#allocation5 + $0x38] sm:$0xff]
    %v914 = vld [vmem:[#allocation5 + $0x40] sm:$0xff]
    %v915 = vld [vmem:[#allocation5 + $0x48] sm:$0xff]
    %v916 = vld [vmem:[#allocation5 + $0x50] sm:$0xff]
    %v917 = vld [vmem:[#allocation5 + $0x58] sm:$0xff]
    %v918 = vld [vmem:[#allocation5 + $0x60] sm:$0xff]
    %v919 = vld [vmem:[#allocation5 + $0x68] sm:$0xff]
    %v920 = vld [vmem:[#allocation5 + $0x70] sm:$0xff]
    %v921 = vld [vmem:[#allocation5 + $0x78] sm:$0xff]
    %922 = vmatprep.subr.mxu0 0.0
    %923 = vmatpush1.msra.mxu0 %v906
    %924 = vmatprep.subr.mxu0 0.0
    %925 = vmatpush1.msra.mxu0 %v907
    %926 = vmatprep.subr.mxu0 0.0
    %927 = vmatpush1.msra.mxu0 %v908
    %928 = vmatprep.subr.mxu0 0.0
    %929 = vmatpush1.msra.mxu0 %v909
    %930 = vmatprep.subr.mxu0 0.0
    %931 = vmatpush1.msra.mxu0 %v910
    %932 = vmatprep.subr.mxu0 0.0
    %933 = vmatpush1.msra.mxu0 %v911
    %934 = vmatprep.subr.mxu0 0.0
    %935 = vmatpush1.msra.mxu0 %v912
    %936 = vmatprep.subr.mxu0 0.0
    %937 = vmatpush1.msra.mxu0 %v913
    %938 = vmatprep.subr.mxu0 0.0
    %939 = vmatpush1.msra.mxu0 %v914
    %940 = vmatprep.subr.mxu0 0.0
    %941 = vmatpush1.msra.mxu0 %v915
    %942 = vmatprep.subr.mxu0 0.0
    %943 = vmatpush1.msra.mxu0 %v916
    %944 = vmatprep.subr.mxu0 0.0
    %945 = vmatpush1.msra.mxu0 %v917
    %946 = vmatprep.subr.mxu0 0.0
    %947 = vmatpush1.msra.mxu0 %v918
    %948 = vmatprep.subr.mxu0 0.0
    %949 = vmatpush1.msra.mxu0 %v919
    %950 = vmatprep.subr.mxu0 0.0
    %951 = vmatpush1.msra.mxu0 %v920
    %952 = vmatprep.subr.mxu0 0.0
    %953 = vmatpush1.msra.mxu0 %v921
    %954 = vmatprep.subr.mxu0 0.0
    %955 = vmatpush1.msra.mxu0 0.0
    %956 = vmatprep.subr.mxu0 0.0
    %957 = vmatpush1.msra.mxu0 0.0
    %958 = vmatprep.subr.mxu0 0.0
    %959 = vmatpush1.msra.mxu0 0.0
    %960 = vmatprep.subr.mxu0 0.0
    %961 = vmatpush1.msra.mxu0 0.0
    %962 = vmatprep.subr.mxu0 0.0
    %963 = vmatpush1.msra.mxu0 0.0
    %964 = vmatprep.subr.mxu0 0.0
    %965 = vmatpush1.msra.mxu0 0.0
    %966 = vmatprep.subr.mxu0 0.0
    %967 = vmatpush1.msra.mxu0 0.0
    %968 = vmatprep.subr.mxu0 0.0
    %969 = vmatpush1.msra.mxu0 0.0
    %970 = vmatprep.subr.mxu0 0.0
    %971 = vmatpush1.msra.mxu0 0.0
    %972 = vmatprep.subr.mxu0 0.0
    %973 = vmatpush1.msra.mxu0 0.0
    %974 = vmatprep.subr.mxu0 0.0
    %975 = vmatpush1.msra.mxu0 0.0
    %976 = vmatprep.subr.mxu0 0.0
    %977 = vmatpush1.msra.mxu0 0.0
    %978 = vmatprep.subr.mxu0 0.0
    %979 = vmatpush1.msra.mxu0 0.0
    %980 = vmatprep.subr.mxu0 0.0
    %981 = vmatpush1.msra.mxu0 0.0
    %982 = vmatprep.subr.mxu0 0.0
    %983 = vmatpush1.msra.mxu0 0.0
    %984 = vmatprep.subr.mxu0 0.0
    %985 = vmatpush1.msra.mxu0 0.0
    %986 = vmatprep.mubr.f32.mxu0 0.0
    %987 = vmatmul.mubr.f32.gmra.mrb[0].mxu0 %v895
    %v988 = vpop.f32.mrb[0].mxu0
    %v989 = vadd.f32 0.0, %v988
    %v990 = vpop.f32.mrb[0].mxu0
    %991 = vdwg.mxu0
    %v992 = vadd.f32 %v905, %v989
    %v993 = vtanh.pop %v992
    %s994 = scalar_lea.vmem [#allocation4], 56
    %995 = vst [vmem:[%s994] sm:$0xff] %v993
    %s996 = sadd.s32 %s310, 7
    %p997 = scmp.eq.s32.totalorder %s996, 7
    // Predicated region
    $region66: #{tpu_custom_call.1} parent=1 // pred_check
      %p998 = pneg %p997
    $region67: #{tpu_custom_call.1} parent=1 // pred_check_branch
      %1000 = sbr.rel (%p998) target = $region69
    $region68: #{tpu_custom_call.1} parent=1 // pred_region
      %1001 = vst [vmem:[#allocation11] sm:$0xff] %v993
    $region69: #{tpu_custom_call.1} parent=1 // pred_fallthru
      _
    %1002 = vst [vmem:[#allocation2] sm:$0xff] %v993
    %v1003 = vld [vmem:[#allocation4] sm:$0xff]
    %v1004 = vld [vmem:[#allocation4 + $0x8] sm:$0xff]
    %v1005 = vld [vmem:[#allocation4 + $0x10] sm:$0xff]
    %v1006 = vld [vmem:[#allocation4 + $0x18] sm:$0xff]
    %v1007 = vld [vmem:[#allocation4 + $0x20] sm:$0xff]
    %v1008 = vld [vmem:[#allocation4 + $0x28] sm:$0xff]
    %v1009 = vld [vmem:[#allocation4 + $0x30] sm:$0xff]
    %v1010 = vld [vmem:[#allocation4 + $0x38] sm:$0xff]
    %v1011 = vld [vmem:[#allocation8] sm:$0xff]
    %v1012 = vld [vmem:[#allocation8 + $0x8] sm:$0xff]
    %v1013 = vld [vmem:[#allocation8 + $0x10] sm:$0xff]
    %v1014 = vld [vmem:[#allocation8 + $0x18] sm:$0xff]
    %v1015 = vld [vmem:[#allocation8 + $0x20] sm:$0xff]
    %v1016 = vld [vmem:[#allocation8 + $0x28] sm:$0xff]
    %v1017 = vld [vmem:[#allocation8 + $0x30] sm:$0xff]
    %v1018 = vld [vmem:[#allocation8 + $0x38] sm:$0xff]
    %v1019 = vld [vmem:[#allocation8 + $0x40] sm:$0xff]
    %v1020 = vld [vmem:[#allocation8 + $0x48] sm:$0xff]
    %v1021 = vld [vmem:[#allocation8 + $0x50] sm:$0xff]
    %v1022 = vld [vmem:[#allocation8 + $0x58] sm:$0xff]
    %v1023 = vld [vmem:[#allocation8 + $0x60] sm:$0xff]
    %v1024 = vld [vmem:[#allocation8 + $0x68] sm:$0xff]
    %v1025 = vld [vmem:[#allocation8 + $0x70] sm:$0xff]
    %v1026 = vld [vmem:[#allocation8 + $0x78] sm:$0xff]
    %v1027 = vld [vmem:[%s5] sm:$0x1]
    %v1029 = vlaneseq
    %v1030 = vshrl.u32 %v1029, 7
    %v1031 = vsub.s32 0, %v1030
    %v1032 = vrot.slane %v1027, %v1031
    %1034 = vmatprep.subr.mxu0 0.0
    %1035 = vmatpush1.msra.mxu0 %v1011
    %1036 = vmatprep.subr.mxu0 0.0
    %1037 = vmatpush1.msra.mxu0 %v1012
    %1038 = vmatprep.subr.mxu0 0.0
    %1039 = vmatpush1.msra.mxu0 %v1013
    %1040 = vmatprep.subr.mxu0 0.0
    %1041 = vmatpush1.msra.mxu0 %v1014
    %1042 = vmatprep.subr.mxu0 0.0
    %1043 = vmatpush1.msra.mxu0 %v1015
    %1044 = vmatprep.subr.mxu0 0.0
    %1045 = vmatpush1.msra.mxu0 %v1016
    %1046 = vmatprep.subr.mxu0 0.0
    %1047 = vmatpush1.msra.mxu0 %v1017
    %1048 = vmatprep.subr.mxu0 0.0
    %1049 = vmatpush1.msra.mxu0 %v1018
    %1050 = vmatprep.subr.mxu0 0.0
    %1051 = vmatpush1.msra.mxu0 %v1019
    %1052 = vmatprep.subr.mxu0 0.0
    %1053 = vmatpush1.msra.mxu0 %v1020
    %1054 = vmatprep.subr.mxu0 0.0
    %1055 = vmatpush1.msra.mxu0 %v1021
    %1056 = vmatprep.subr.mxu0 0.0
    %1057 = vmatpush1.msra.mxu0 %v1022
    %1058 = vmatprep.subr.mxu0 0.0
    %1059 = vmatpush1.msra.mxu0 %v1023
    %1060 = vmatprep.subr.mxu0 0.0
    %1061 = vmatpush1.msra.mxu0 %v1024
    %1062 = vmatprep.subr.mxu0 0.0
    %1063 = vmatpush1.msra.mxu0 %v1025
    %1064 = vmatprep.subr.mxu0 0.0
    %1065 = vmatpush1.msra.mxu0 %v1026
    %1066 = vmatprep.subr.mxu0 0.0
    %1067 = vmatpush1.msra.mxu0 0.0
    %1068 = vmatprep.subr.mxu0 0.0
    %1069 = vmatpush1.msra.mxu0 0.0
    %1070 = vmatprep.subr.mxu0 0.0
    %1071 = vmatpush1.msra.mxu0 0.0
    %1072 = vmatprep.subr.mxu0 0.0
    %1073 = vmatpush1.msra.mxu0 0.0
    %1074 = vmatprep.subr.mxu0 0.0
    %1075 = vmatpush1.msra.mxu0 0.0
    %1076 = vmatprep.subr.mxu0 0.0
    %1077 = vmatpush1.msra.mxu0 0.0
    %1078 = vmatprep.subr.mxu0 0.0
    %1079 = vmatpush1.msra.mxu0 0.0
    %1080 = vmatprep.subr.mxu0 0.0
    %1081 = vmatpush1.msra.mxu0 0.0
    %1082 = vmatprep.subr.mxu0 0.0
    %1083 = vmatpush1.msra.mxu0 0.0
    %1084 = vmatprep.subr.mxu0 0.0
    %1085 = vmatpush1.msra.mxu0 0.0
    %1086 = vmatprep.subr.mxu0 0.0
    %1087 = vmatpush1.msra.mxu0 0.0
    %1088 = vmatprep.subr.mxu0 0.0
    %1089 = vmatpush1.msra.mxu0 0.0
    %1090 = vmatprep.subr.mxu0 0.0
    %1091 = vmatpush1.msra.mxu0 0.0
    %1092 = vmatprep.subr.mxu0 0.0
    %1093 = vmatpush1.msra.mxu0 0.0
    %1094 = vmatprep.subr.mxu0 0.0
    %1095 = vmatpush1.msra.mxu0 0.0
    %1096 = vmatprep.subr.mxu0 0.0
    %1097 = vmatpush1.msra.mxu0 0.0
    %1098 = vmatprep.mubr.f32.mxu0 0.0
    %1099 = vmatmul.mubr.f32.gmra.mrb[0].mxu0 %v1003
    %v1100 = vpop.f32.mrb[0].mxu0
    %v1101 = vadd.f32 %v1032, %v1100
    %v1102 = vpop.f32.mrb[0].mxu0
    %1103 = vmatprep.mubr.f32.mxu0 0.0
    %1104 = vmatmul.mubr.f32.gmra.mrb[0].mxu0 %v1004
    %v1105 = vpop.f32.mrb[0].mxu0
    %v1106 = vadd.f32 %v1032, %v1105
    %v1107 = vpop.f32.mrb[0].mxu0
    %1108 = vmatprep.mubr.f32.mxu0 0.0
    %1109 = vmatmul.mubr.f32.gmra.mrb[0].mxu0 %v1005
    %v1110 = vpop.f32.mrb[0].mxu0
    %v1111 = vadd.f32 %v1032, %v1110
    %v1112 = vpop.f32.mrb[0].mxu0
    %1113 = vmatprep.mubr.f32.mxu0 0.0
    %1114 = vmatmul.mubr.f32.gmra.mrb[0].mxu0 %v1006
    %v1115 = vpop.f32.mrb[0].mxu0
    %v1116 = vadd.f32 %v1032, %v1115
    %v1117 = vpop.f32.mrb[0].mxu0
    %1118 = vmatprep.mubr.f32.mxu0 0.0
    %1119 = vmatmul.mubr.f32.gmra.mrb[0].mxu0 %v1007
    %v1120 = vpop.f32.mrb[0].mxu0
    %v1121 = vadd.f32 %v1032, %v1120
    %v1122 = vpop.f32.mrb[0].mxu0
    %1123 = vmatprep.mubr.f32.mxu0 0.0
    %1124 = vmatmul.mubr.f32.gmra.mrb[0].mxu0 %v1008
    %v1125 = vpop.f32.mrb[0].mxu0
    %v1126 = vadd.f32 %v1032, %v1125
    %v1127 = vpop.f32.mrb[0].mxu0
    %1128 = vmatprep.mubr.f32.mxu0 0.0
    %1129 = vmatmul.mubr.f32.gmra.mrb[0].mxu0 %v1009
    %v1130 = vpop.f32.mrb[0].mxu0
    %v1131 = vadd.f32 %v1032, %v1130
    %v1132 = vpop.f32.mrb[0].mxu0
    %1133 = vmatprep.mubr.f32.mxu0 0.0
    %1134 = vmatmul.mubr.f32.gmra.mrb[0].mxu0 %v1010
    %v1135 = vpop.f32.mrb[0].mxu0
    %v1136 = vadd.f32 %v1032, %v1135
    %v1137 = vpop.f32.mrb[0].mxu0
    %1138 = vdwg.mxu0
    %1139 = vst [vmem:[#allocation10] sm:$0xff] %v1101
    %1140 = vst [vmem:[#allocation10 + $0x8] sm:$0xff] %v1106
    %1141 = vst [vmem:[#allocation10 + $0x10] sm:$0xff] %v1111
    %1142 = vst [vmem:[#allocation10 + $0x18] sm:$0xff] %v1116
    %1143 = vst [vmem:[#allocation10 + $0x20] sm:$0xff] %v1121
    %1144 = vst [vmem:[#allocation10 + $0x28] sm:$0xff] %v1126
    %1145 = vst [vmem:[#allocation10 + $0x30] sm:$0xff] %v1131
    %1146 = vst [vmem:[#allocation10 + $0x38] sm:$0xff] %v1136
    // Predicated region
    $region70: #{tpu_custom_call.1} parent=1 // pred_check
      _
    $region71: #{tpu_custom_call.1} parent=1 // pred_check_branch
      %1148 = sbr.rel (0) target = $region73
    $region72: #{tpu_custom_call.1} parent=1 // pred_region
      %s1150 = ssub.s32 1024, 1024
      %1151 = vsyncadd [#allocation7], %s1150
      %s1152 = sshll.u32 [#allocation10], 4
      %s1153 = int_to_ptr.vmem [resolvable:$true] %s1152
      %1158 = dma.vmem_to_hbm [thread:$0]  %s1153, 1024, %s6, [#allocation7], 128, 128, 8
    $region73: #{tpu_custom_call.1} parent=1 // pred_fallthru
      _
    // Predicated region
    $region74: #{tpu_custom_call.1} parent=1 // pred_check
      _
    $region75: #{tpu_custom_call.1} parent=1 // pred_check_branch
      %1160 = sbr.rel (0) target = $region77
    $region76: #{tpu_custom_call.1} parent=1 // pred_region
      %s1162 = ssub.s32 128, 128
      %1163 = vsyncadd [#allocation12], %s1162
      %s1165 = sshll.u32 [#allocation11], 4
      %s1166 = int_to_ptr.vmem [resolvable:$true] %s1165
      %1168 = dma.vmem_to_hbm [thread:$0]  %s1166, 128, %s7, [#allocation12]
    $region77: #{tpu_custom_call.1} parent=1 // pred_fallthru
      _
    // Predicated region
    $region78: #{tpu_custom_call.1} parent=1 // pred_check
      _
    $region79: #{tpu_custom_call.1} parent=1 // pred_check_branch
      %1170 = sbr.rel (0) target = $region81
    $region80: #{tpu_custom_call.1} parent=1 // pred_region
      %1171 = dma.done [#allocation7], 1024
    $region81: #{tpu_custom_call.1} parent=1 // pred_fallthru
      _
    // Predicated region
    $region82: #{tpu_custom_call.1} parent=1 // pred_check
      _
    $region83: #{tpu_custom_call.1} parent=1 // pred_check_branch
      %1173 = sbr.rel (0) target = $region85
    $region84: #{tpu_custom_call.1} parent=1 // pred_region
      %1174 = dma.done [#allocation12], 128
    $region85: #{tpu_custom_call.1} parent=1 // pred_fallthru
      _
    %1175 = vsyncpa [#allocation6], 1
    %1176 = vsyncpa [#allocation9], 1
    %1177 = vsyncpa [#allocation7], 1
    %1178 = vsyncpa [#allocation12], 1

</llo_original>
